<compile_context>
chip_gen: v5e
topology: v5e:2x2
jax: 0.10.0
libtpu: 0.0.40
codegen_flags: <defaults>
</compile_context>

<pallas_src>
import functools

import jax
import jax.numpy as jnp
from jax import lax
from jax.experimental import pallas as pl
from jax.experimental.pallas import tpu as pltpu

_VMEM_LIMIT = 32 * 1024 * 1024  # explicit, safe on v5e/v6e/v7x


def _round_up(x, m):
    return ((x + m - 1) // m) * m


# ---------------------------------------------------------------------------
# Depthwise conv (groups == channels), channels-last, stride handled in-kernel,
# per-channel BN statistics (sum / sumsq) emitted as a fused side output.
# ---------------------------------------------------------------------------
def depthwise_conv2d(x_cl, w, *, k, stride, padding, out_dtype=jnp.bfloat16):
    """x_cl: (B, H, W, C) channels-last f32; w: (k*k, C) f32.
       Returns (y, stats): y (B, Ho, Wo, C) out_dtype; stats (B, 2, C) f32 [sum, sumsq]."""
    B, H, W, C = x_cl.shape
    Hp, Wp = H + 2 * padding, W + 2 * padding
    Ho = (Hp - k) // stride + 1
    Wo = (Wp - k) // stride + 1

    def kernel(x_ref, w_ref, o_ref, stats_ref, xpad_ref):
        # Zero-halo via scratch: memset + interior window write (no concatenates).
        if padding > 0:
            xpad_ref[...] = jnp.zeros((Hp, Wp, C), jnp.float32)
        xpad_ref[padding:padding + H, padding:padding + W, :] = x_ref[0]

        wv = w_ref[...]                                         # (k*k, C)
        acc = jnp.zeros((Ho, Wo, C), jnp.float32)
        for dy in range(k):
            for dx in range(k):
                if stride == 1:
                    tap = xpad_ref[dy:dy + Ho, dx:dx + Wo, :]
                else:
                    # Strided output computed directly: only kept rows/cols are read.
                    tap = xpad_ref[pl.ds(dy, Ho, stride=stride),
                                   pl.ds(dx, Wo, stride=stride), :]
                acc = acc + tap * wv[dy * k + dx, :]

        o_ref[0] = acc.astype(o_ref.dtype)

        # Fused BN statistics (f32), so BatchNorm never re-reads the activation.
        acc2 = acc.reshape(Ho * Wo, C)
        stats_ref[0] = jnp.concatenate(
            [jnp.sum(acc2, axis=0, keepdims=True),
             jnp.sum(acc2 * acc2, axis=0, keepdims=True)], axis=0)

    return pl.pallas_call(
        kernel,
        out_shape=(jax.ShapeDtypeStruct((B, Ho, Wo, C), out_dtype),
                   jax.ShapeDtypeStruct((B, 2, C), jnp.float32)),
        grid=(B,),
        in_specs=[pl.BlockSpec((1, H, W, C), lambda b: (b, 0, 0, 0)),
                  pl.BlockSpec((k * k, C), lambda b: (0, 0))],
        out_specs=(pl.BlockSpec((1, Ho, Wo, C), lambda b: (b, 0, 0, 0)),
                   pl.BlockSpec((1, 2, C), lambda b: (b, 0, 0))),
        scratch_shapes=[pltpu.VMEM((Hp, Wp, C), jnp.float32)],
        compiler_params=pltpu.CompilerParams(
            dimension_semantics=("parallel",),
            vmem_limit_bytes=_VMEM_LIMIT),
    )(x_cl, w)


# ---------------------------------------------------------------------------
# Fold BatchNorm (training-mode batch statistics, PyTorch default forward) into
# the 1x1-conv weights: bn(y) @ W + b == y @ W' + b'.   (f32 parameter-sized math)
# ---------------------------------------------------------------------------
def fold_bn_into_pointwise(stats, count, gamma, beta, pw_w, pw_b, eps=1e-5):
    tot = jnp.sum(stats, axis=0)                            # (2, C) over the batch
    mean = tot[0] / count
    var = jnp.maximum(tot[1] / count - mean * mean, 0.0)    # biased var, as in PyTorch
    s = gamma * lax.rsqrt(var + eps)                        # (C,)
    w_f = pw_w * s[:, None]                                 # (C, Cout)
    b_f = pw_b + (beta - mean * s) @ pw_w                   # (Cout,)
    return w_f, b_f


# ---------------------------------------------------------------------------
# 1x1 conv == matmul over tokens: (T, Cin) @ (Cin, Cout) + bias.
# bf16 MXU operands, f32 accumulation; token dim tiled with a cdiv grid (padded).
# ---------------------------------------------------------------------------
def _matmul_bias_kernel(x_ref, w_ref, b_ref, o_ref):
    acc = jnp.dot(x_ref[...], w_ref[...], preferred_element_type=jnp.float32)
    o_ref[...] = (acc + b_ref[...]).astype(o_ref.dtype)


def pointwise_matmul(xt, w, bias, *, row_block=1024, out_dtype=jnp.bfloat16):
    T, Cin = xt.shape
    Cout = w.shape[1]
    rb = min(row_block, _round_up(T, 8))                    # multiple of 8, VMEM-bounded
    Tp = _round_up(T, rb)
    if Tp != T:
        xt = jnp.pad(xt, ((0, Tp - T), (0, 0)))

    out = pl.pallas_call(
        _matmul_bias_kernel,
        out_shape=jax.ShapeDtypeStruct((Tp, Cout), out_dtype),
        grid=(Tp // rb,),
        in_specs=[pl.BlockSpec((rb, Cin), lambda i: (i, 0)),
                  pl.BlockSpec((Cin, Cout), lambda i: (0, 0)),
                  pl.BlockSpec((1, Cout), lambda i: (0, 0))],
        out_specs=pl.BlockSpec((rb, Cout), lambda i: (i, 0)),
        compiler_params=pltpu.CompilerParams(
            dimension_semantics=("parallel",),
            vmem_limit_bytes=_VMEM_LIMIT),
    )(xt.astype(jnp.bfloat16), w.astype(jnp.bfloat16),
      bias.reshape(1, Cout).astype(jnp.float32))
    return out[:T] if Tp != T else out


# ---------------------------------------------------------------------------
# Attention core: grid = (batch, query-tile).  All heads handled per step via ONE
# head-batched contraction (single in-kernel relayout to (heads, N, d)), f32 softmax,
# bf16 MXU operands, per-head results written directly into o_ref lane slices.
#   q: (B, Nq, inner)  k, v: (B, Nk, inner)  (all bf16) -> out: (B, Nq, inner) bf16
# ---------------------------------------------------------------------------
def attention_core(q, k, v, *, heads, dim_head, scale, q_block=512):
    B, Nq, inner = q.shape
    Nk = k.shape[1]
    q_blk = min(q_block, _round_up(Nq, 8))
    Nq_pad = _round_up(Nq, q_blk)
    if Nq_pad != Nq:
        q = jnp.pad(q, ((0, 0), (0, Nq_pad - Nq), (0, 0)))   # pad query rows (sliced off)

    def kernel(q_ref, k_ref, v_ref, o_ref):
        qv = q_ref[0]                                        # (q_blk, inner) bf16
        kv_ = k_ref[0]                                       # (Nk, inner)    bf16
        vv = v_ref[0]                                        # (Nk, inner)    bf16

        # One relayout to head-major (heads, N, d); feeds a single batched contraction.
        q3 = jnp.stack([qv[:, h * dim_head:(h + 1) * dim_head] for h in range(heads)], axis=0)
        k3 = jnp.stack([kv_[:, h * dim_head:(h + 1) * dim_head] for h in range(heads)], axis=0)
        v3 = jnp.stack([vv[:, h * dim_head:(h + 1) * dim_head] for h in range(heads)], axis=0)

        # QK^T contracting d directly (no XLU transpose of K), f32 accumulation.
        dots = jnp.einsum("hqd,hkd->hqk", q3, k3,
                          preferred_element_type=jnp.float32) * scale
        m = jnp.max(dots, axis=-1, keepdims=True)
        p = jnp.exp(dots - m)
        denom = jnp.sum(p, axis=-1, keepdims=True)
        attn = (p * pl.reciprocal(denom, approx=True)).astype(jnp.bfloat16)  # EUP slot

        out_h = jnp.einsum("hqk,hkd->hqd", attn, v3,
                           preferred_element_type=jnp.float32)               # (heads, q_blk, d)

        # Merge heads by storing straight into o_ref lane slices (no lane concat);
        # the full (q_blk, inner) output block stays lane-dense for the HBM writeback.
        for h in range(heads):
            o_ref[0, :, h * dim_head:(h + 1) * dim_head] = out_h[h].astype(o_ref.dtype)

    out = pl.pallas_call(
        kernel,
        out_shape=jax.ShapeDtypeStruct((B, Nq_pad, inner), jnp.bfloat16),
        grid=(B, Nq_pad // q_blk),
        in_specs=[pl.BlockSpec((1, q_blk, inner), lambda b, i: (b, i, 0)),
                  pl.BlockSpec((1, Nk, inner), lambda b, i: (b, 0, 0)),
                  pl.BlockSpec((1, Nk, inner), lambda b, i: (b, 0, 0))],
        out_specs=pl.BlockSpec((1, q_blk, inner), lambda b, i: (b, i, 0)),
        compiler_params=pltpu.CompilerParams(
            dimension_semantics=("parallel", "parallel"),
            vmem_limit_bytes=_VMEM_LIMIT),
    )(q.astype(jnp.bfloat16), k.astype(jnp.bfloat16), v.astype(jnp.bfloat16))
    return out[:, :Nq, :] if Nq_pad != Nq else out


# ---------------------------------------------------------------------------
# Full forward pass of the Attention module.
# ---------------------------------------------------------------------------
@functools.partial(jax.jit,
                   static_argnames=("heads", "dim_head", "proj_kernel", "kv_proj_stride"))
def attention_forward(x, params, *, heads, dim_head, proj_kernel, kv_proj_stride):
    B, dim, H, W = x.shape
    inner = heads * dim_head
    scale = dim_head ** -0.5
    padding = proj_kernel // 2

    # TODO(synk): drop this NCHW<->NHWC pair if the surrounding model goes channels-last.
    x_cl = jnp.transpose(x, (0, 2, 3, 1))                   # (B, H, W, C), C on lanes

    # ---- to_q: depthwise (stride 1) -> BN folded into 1x1 matmul (bias=False) ----
    q_dw, q_stats = depthwise_conv2d(x_cl, params["to_q"]["dw_w"],
                                     k=proj_kernel, stride=1, padding=padding)
    Hq, Wq = q_dw.shape[1], q_dw.shape[2]
    wq, bq = fold_bn_into_pointwise(q_stats, B * Hq * Wq,
                                    params["to_q"]["bn_gamma"], params["to_q"]["bn_beta"],
                                    params["to_q"]["pw_w"], params["to_q"]["pw_b"])
    q_tok = pointwise_matmul(q_dw.reshape(B * Hq * Wq, dim), wq, bq)       # (Tq, inner) bf16

    # ---- to_kv: depthwise (strided, computed in-kernel) -> BN folded 1x1 ----
    kv_dw, kv_stats = depthwise_conv2d(x_cl, params["to_kv"]["dw_w"],
                                       k=proj_kernel, stride=kv_proj_stride,
                                       padding=padding)
    Hk, Wk = kv_dw.shape[1], kv_dw.shape[2]
    wkv, bkv = fold_bn_into_pointwise(kv_stats, B * Hk * Wk,
                                      params["to_kv"]["bn_gamma"], params["to_kv"]["bn_beta"],
                                      params["to_kv"]["pw_w"], params["to_kv"]["pw_b"])
    kv_tok = pointwise_matmul(kv_dw.reshape(B * Hk * Wk, dim), wkv, bkv)   # (Tk, 2*inner) bf16

    # ---- attention (head-batched in-kernel, query-tiled, lane-dense output) ----
    Nq, Nk = Hq * Wq, Hk * Wk
    kv3 = kv_tok.reshape(B, Nk, 2 * inner)
    out = attention_core(q_tok.reshape(B, Nq, inner),
                         kv3[..., :inner],                   # k = first half of channels
                         kv3[..., inner:],                   # v = second half (chunk order)
                         heads=heads, dim_head=dim_head, scale=scale)      # (B, Nq, inner) bf16

    # ---- to_out: 1x1 conv (bias=True); Dropout(p=0.0) == identity ----
    o_tok = pointwise_matmul(out.reshape(B * Nq, inner),
                             params["out_w"], params["out_b"],
                             out_dtype=jnp.float32)                        # (Tq, dim) f32
    return jnp.transpose(o_tok.reshape(B, Hq, Wq, dim), (0, 3, 1, 2))


# ---------------------------------------------------------------------------
# Deterministic parameter initialization (synthetic weights, no checkpoint)
# ---------------------------------------------------------------------------
def init_params(key, dim, proj_kernel, heads, dim_head):
    inner = heads * dim_head
    ks = jax.random.split(key, 6)
    s = 0.05

    def norm(k, shape):
        return s * jax.random.normal(k, shape, jnp.float32)

    to_q = dict(
        dw_w=norm(ks[0], (proj_kernel * proj_kernel, dim)),   # (k*k, C), channel lane-major
        bn_gamma=jnp.ones((dim,), jnp.float32),
        bn_beta=jnp.zeros((dim,), jnp.float32),
        pw_w=norm(ks[1], (dim, inner)),
        pw_b=jnp.zeros((inner,), jnp.float32),                # bias=False in module
    )
    to_kv = dict(
        dw_w=norm(ks[2], (proj_kernel * proj_kernel, dim)),
        bn_gamma=jnp.ones((dim,), jnp.float32),
        bn_beta=jnp.zeros((dim,), jnp.float32),
        pw_w=norm(ks[3], (dim, 2 * inner)),
        pw_b=jnp.zeros((2 * inner,), jnp.float32),            # bias=False in module
    )
    return dict(
        to_q=to_q,
        to_kv=to_kv,
        out_w=norm(ks[4], (inner, dim)),
        out_b=norm(ks[5], (dim,)),
    )


if __name__ == "__main__":
    b, dim, H, W = 2, 32, 8, 8
    heads, dim_head = 2, 16
    proj_kernel, kv_proj_stride = 3, 2

    root = jax.random.PRNGKey(0)
    kp, kx = jax.random.split(root)
    params = init_params(kp, dim, proj_kernel, heads, dim_head)
    x = jax.random.normal(kx, (b, dim, H, W), jnp.float32)

    out = attention_forward(
        x, params,
        heads=heads, dim_head=dim_head,
        proj_kernel=proj_kernel, kv_proj_stride=kv_proj_stride,
    )
    jax.block_until_ready(out)
    assert out.shape == (b, dim, H, W), out.shape
    assert bool(jnp.all(jnp.isfinite(out)))
    print("KERNEL_OK")
</pallas_src>

<mosaic_0001>
module attributes {stable_mosaic.version = 11 : i64} {
  func.func @kernel(%arg0: i32, %arg1: memref<1x8x8x32xf32, #tpu.memory_space<vmem>>, %arg2: memref<9x32xf32, #tpu.memory_space<vmem>>, %arg3: memref<1x4x4x32xbf16, #tpu.memory_space<vmem>>, %arg4: memref<1x2x32xf32, #tpu.memory_space<vmem>>, %arg5: memref<10x10x32xf32, #tpu.memory_space<vmem>>) attributes {dimension_semantics = [#tpu.dimension_semantics<parallel>], iteration_bounds = array<i64: 2>, scalar_prefetch = 0 : i64, scratch_operands = 1 : i64, tpu.core_type = #tpu.core_type<tc>, window_params = [{transform_indices = @transform_0, window_bounds = array<i64: 1, 8, 8, 32>}, {pipeline_mode = #tpu.pipeline_mode<synchronous>, transform_indices = @transform_1, window_bounds = array<i64: 9, 32>}, {transform_indices = @transform_2, window_bounds = array<i64: 1, 4, 4, 32>}, {transform_indices = @transform_3, window_bounds = array<i64: 1, 2, 32>}]} {
    %cst = arith.constant 0.000000e+00 : f32
    %0 = vector.broadcast %cst : f32 to vector<10x10x32xf32>
    %c0 = arith.constant 0 : index
    %c0_0 = arith.constant 0 : index
    %c0_1 = arith.constant 0 : index
    %1 = vector.load %arg5[%c0, %c0_0, %c0_1] : memref<10x10x32xf32, #tpu.memory_space<vmem>>, vector<10x10x32xf32>
    tpu.vector_store %arg5[%c0, %c0_0, %c0_1], %0 {strides = array<i32>} : memref<10x10x32xf32, #tpu.memory_space<vmem>>, vector<10x10x32xf32>,
    %c0_2 = arith.constant 0 : index
    %c0_3 = arith.constant 0 : index
    %c0_4 = arith.constant 0 : index
    %c0_5 = arith.constant 0 : index
    %2 = vector.load %arg1[%c0_2, %c0_3, %c0_4, %c0_5] : memref<1x8x8x32xf32, #tpu.memory_space<vmem>>, vector<1x8x8x32xf32>
    %3 = vector.shape_cast %2 : vector<1x8x8x32xf32> to vector<8x8x32xf32>
    %c1 = arith.constant 1 : index
    %c1_6 = arith.constant 1 : index
    %c0_7 = arith.constant 0 : index
    %4 = vector.load %arg5[%c1, %c1_6, %c0_7] : memref<10x10x32xf32, #tpu.memory_space<vmem>>, vector<8x8x32xf32>
    tpu.vector_store %arg5[%c1, %c1_6, %c0_7], %3 {strides = array<i32>} : memref<10x10x32xf32, #tpu.memory_space<vmem>>, vector<8x8x32xf32>,
    %c0_8 = arith.constant 0 : index
    %c0_9 = arith.constant 0 : index
    %5 = vector.load %arg2[%c0_8, %c0_9] : memref<9x32xf32, #tpu.memory_space<vmem>>, vector<9x32xf32>
    %cst_10 = arith.constant 0.000000e+00 : f32
    %6 = vector.broadcast %cst_10 : f32 to vector<4x4x32xf32>
    %c0_11 = arith.constant 0 : index
    %c0_12 = arith.constant 0 : index
    %c0_13 = arith.constant 0 : index
    %7 = tpu.strided_load %arg5[%c0_11, %c0_12, %c0_13] {strides = array<i32: 2, 2, 1>} : memref<10x10x32xf32, #tpu.memory_space<vmem>>, vector<4x4x32xf32>
    %8 = vector.extract_strided_slice %5 {offsets = [0, 0], sizes = [1, 32], strides = [1, 1]} : vector<9x32xf32> to vector<1x32xf32>
    %9 = vector.shape_cast %8 : vector<1x32xf32> to vector<32xf32>
    %10 = vector.shape_cast %9 : vector<32xf32> to vector<1x1x32xf32>
    %11 = vector.broadcast %10 : vector<1x1x32xf32> to vector<4x4x32xf32>
    %12 = arith.mulf %7, %11 : vector<4x4x32xf32>
    %13 = arith.addf %6, %12 : vector<4x4x32xf32>
    %c0_14 = arith.constant 0 : index
    %c1_15 = arith.constant 1 : index
    %c0_16 = arith.constant 0 : index
    %14 = tpu.strided_load %arg5[%c0_14, %c1_15, %c0_16] {strides = array<i32: 2, 2, 1>} : memref<10x10x32xf32, #tpu.memory_space<vmem>>, vector<4x4x32xf32>
    %15 = vector.extract_strided_slice %5 {offsets = [1, 0], sizes = [1, 32], strides = [1, 1]} : vector<9x32xf32> to vector<1x32xf32>
    %16 = vector.shape_cast %15 : vector<1x32xf32> to vector<32xf32>
    %17 = vector.shape_cast %16 : vector<32xf32> to vector<1x1x32xf32>
    %18 = vector.broadcast %17 : vector<1x1x32xf32> to vector<4x4x32xf32>
    %19 = arith.mulf %14, %18 : vector<4x4x32xf32>
    %20 = arith.addf %13, %19 : vector<4x4x32xf32>
    %c0_17 = arith.constant 0 : index
    %c2 = arith.constant 2 : index
    %c0_18 = arith.constant 0 : index
    %21 = tpu.strided_load %arg5[%c0_17, %c2, %c0_18] {strides = array<i32: 2, 2, 1>} : memref<10x10x32xf32, #tpu.memory_space<vmem>>, vector<4x4x32xf32>
    %22 = vector.extract_strided_slice %5 {offsets = [2, 0], sizes = [1, 32], strides = [1, 1]} : vector<9x32xf32> to vector<1x32xf32>
    %23 = vector.shape_cast %22 : vector<1x32xf32> to vector<32xf32>
    %24 = vector.shape_cast %23 : vector<32xf32> to vector<1x1x32xf32>
    %25 = vector.broadcast %24 : vector<1x1x32xf32> to vector<4x4x32xf32>
    %26 = arith.mulf %21, %25 : vector<4x4x32xf32>
    %27 = arith.addf %20, %26 : vector<4x4x32xf32>
    %c1_19 = arith.constant 1 : index
    %c0_20 = arith.constant 0 : index
    %c0_21 = arith.constant 0 : index
    %28 = tpu.strided_load %arg5[%c1_19, %c0_20, %c0_21] {strides = array<i32: 2, 2, 1>} : memref<10x10x32xf32, #tpu.memory_space<vmem>>, vector<4x4x32xf32>
    %29 = vector.extract_strided_slice %5 {offsets = [3, 0], sizes = [1, 32], strides = [1, 1]} : vector<9x32xf32> to vector<1x32xf32>
    %30 = vector.shape_cast %29 : vector<1x32xf32> to vector<32xf32>
    %31 = vector.shape_cast %30 : vector<32xf32> to vector<1x1x32xf32>
    %32 = vector.broadcast %31 : vector<1x1x32xf32> to vector<4x4x32xf32>
    %33 = arith.mulf %28, %32 : vector<4x4x32xf32>
    %34 = arith.addf %27, %33 : vector<4x4x32xf32>
    %c1_22 = arith.constant 1 : index
    %c1_23 = arith.constant 1 : index
    %c0_24 = arith.constant 0 : index
    %35 = tpu.strided_load %arg5[%c1_22, %c1_23, %c0_24] {strides = array<i32: 2, 2, 1>} : memref<10x10x32xf32, #tpu.memory_space<vmem>>, vector<4x4x32xf32>
    %36 = vector.extract_strided_slice %5 {offsets = [4, 0], sizes = [1, 32], strides = [1, 1]} : vector<9x32xf32> to vector<1x32xf32>
    %37 = vector.shape_cast %36 : vector<1x32xf32> to vector<32xf32>
    %38 = vector.shape_cast %37 : vector<32xf32> to vector<1x1x32xf32>
    %39 = vector.broadcast %38 : vector<1x1x32xf32> to vector<4x4x32xf32>
    %40 = arith.mulf %35, %39 : vector<4x4x32xf32>
    %41 = arith.addf %34, %40 : vector<4x4x32xf32>
    %c1_25 = arith.constant 1 : index
    %c2_26 = arith.constant 2 : index
    %c0_27 = arith.constant 0 : index
    %42 = tpu.strided_load %arg5[%c1_25, %c2_26, %c0_27] {strides = array<i32: 2, 2, 1>} : memref<10x10x32xf32, #tpu.memory_space<vmem>>, vector<4x4x32xf32>
    %43 = vector.extract_strided_slice %5 {offsets = [5, 0], sizes = [1, 32], strides = [1, 1]} : vector<9x32xf32> to vector<1x32xf32>
    %44 = vector.shape_cast %43 : vector<1x32xf32> to vector<32xf32>
    %45 = vector.shape_cast %44 : vector<32xf32> to vector<1x1x32xf32>
    %46 = vector.broadcast %45 : vector<1x1x32xf32> to vector<4x4x32xf32>
    %47 = arith.mulf %42, %46 : vector<4x4x32xf32>
    %48 = arith.addf %41, %47 : vector<4x4x32xf32>
    %c2_28 = arith.constant 2 : index
    %c0_29 = arith.constant 0 : index
    %c0_30 = arith.constant 0 : index
    %49 = tpu.strided_load %arg5[%c2_28, %c0_29, %c0_30] {strides = array<i32: 2, 2, 1>} : memref<10x10x32xf32, #tpu.memory_space<vmem>>, vector<4x4x32xf32>
    %50 = vector.extract_strided_slice %5 {offsets = [6, 0], sizes = [1, 32], strides = [1, 1]} : vector<9x32xf32> to vector<1x32xf32>
    %51 = vector.shape_cast %50 : vector<1x32xf32> to vector<32xf32>
    %52 = vector.shape_cast %51 : vector<32xf32> to vector<1x1x32xf32>
    %53 = vector.broadcast %52 : vector<1x1x32xf32> to vector<4x4x32xf32>
    %54 = arith.mulf %49, %53 : vector<4x4x32xf32>
    %55 = arith.addf %48, %54 : vector<4x4x32xf32>
    %c2_31 = arith.constant 2 : index
    %c1_32 = arith.constant 1 : index
    %c0_33 = arith.constant 0 : index
    %56 = tpu.strided_load %arg5[%c2_31, %c1_32, %c0_33] {strides = array<i32: 2, 2, 1>} : memref<10x10x32xf32, #tpu.memory_space<vmem>>, vector<4x4x32xf32>
    %57 = vector.extract_strided_slice %5 {offsets = [7, 0], sizes = [1, 32], strides = [1, 1]} : vector<9x32xf32> to vector<1x32xf32>
    %58 = vector.shape_cast %57 : vector<1x32xf32> to vector<32xf32>
    %59 = vector.shape_cast %58 : vector<32xf32> to vector<1x1x32xf32>
    %60 = vector.broadcast %59 : vector<1x1x32xf32> to vector<4x4x32xf32>
    %61 = arith.mulf %56, %60 : vector<4x4x32xf32>
    %62 = arith.addf %55, %61 : vector<4x4x32xf32>
    %c2_34 = arith.constant 2 : index
    %c2_35 = arith.constant 2 : index
    %c0_36 = arith.constant 0 : index
    %63 = tpu.strided_load %arg5[%c2_34, %c2_35, %c0_36] {strides = array<i32: 2, 2, 1>} : memref<10x10x32xf32, #tpu.memory_space<vmem>>, vector<4x4x32xf32>
    %64 = vector.extract_strided_slice %5 {offsets = [8, 0], sizes = [1, 32], strides = [1, 1]} : vector<9x32xf32> to vector<1x32xf32>
    %65 = vector.shape_cast %64 : vector<1x32xf32> to vector<32xf32>
    %66 = vector.shape_cast %65 : vector<32xf32> to vector<1x1x32xf32>
    %67 = vector.broadcast %66 : vector<1x1x32xf32> to vector<4x4x32xf32>
    %68 = arith.mulf %63, %67 : vector<4x4x32xf32>
    %69 = arith.addf %62, %68 : vector<4x4x32xf32>
    %70 = arith.truncf %69 : vector<4x4x32xf32> to vector<4x4x32xbf16>
    %c0_37 = arith.constant 0 : index
    %c0_38 = arith.constant 0 : index
    %c0_39 = arith.constant 0 : index
    %c0_40 = arith.constant 0 : index
    %71 = vector.load %arg3[%c0_37, %c0_38, %c0_39, %c0_40] : memref<1x4x4x32xbf16, #tpu.memory_space<vmem>>, vector<1x4x4x32xbf16>
    %72 = vector.shape_cast %71 : vector<1x4x4x32xbf16> to vector<4x4x32xbf16>
    %73 = vector.shape_cast %70 : vector<4x4x32xbf16> to vector<1x4x4x32xbf16>
    tpu.vector_store %arg3[%c0_37, %c0_38, %c0_39, %c0_40], %73 {strides = array<i32>} : memref<1x4x4x32xbf16, #tpu.memory_space<vmem>>, vector<1x4x4x32xbf16>,
    %74 = vector.shape_cast %69 : vector<4x4x32xf32> to vector<16x32xf32>
    %cst_41 = arith.constant dense<0.000000e+00> : vector<32xf32>
    %75 = vector.multi_reduction <add>, %74, %cst_41 [0] : vector<16x32xf32> to vector<32xf32>
    %76 = vector.shape_cast %75 : vector<32xf32> to vector<1x32xf32>
    %77 = arith.mulf %74, %74 : vector<16x32xf32>
    %cst_42 = arith.constant dense<0.000000e+00> : vector<32xf32>
    %78 = vector.multi_reduction <add>, %77, %cst_42 [0] : vector<16x32xf32> to vector<32xf32>
    %79 = vector.shape_cast %78 : vector<32xf32> to vector<1x32xf32>
    %80 = tpu.concatenate %76, %79 in 0 : vector<1x32xf32>, vector<1x32xf32> -> vector<2x32xf32>
    %c0_43 = arith.constant 0 : index
    %c0_44 = arith.constant 0 : index
    %c0_45 = arith.constant 0 : index
    %81 = vector.load %arg4[%c0_43, %c0_44, %c0_45] : memref<1x2x32xf32, #tpu.memory_space<vmem>>, vector<1x2x32xf32>
    %82 = vector.shape_cast %81 : vector<1x2x32xf32> to vector<2x32xf32>
    %83 = vector.shape_cast %80 : vector<2x32xf32> to vector<1x2x32xf32>
    tpu.vector_store %arg4[%c0_43, %c0_44, %c0_45], %83 {strides = array<i32>} : memref<1x2x32xf32, #tpu.memory_space<vmem>>, vector<1x2x32xf32>,
    return
  }
  func.func @transform_0(%arg0: i32) -> (i32, i32, i32, i32) {
    %c0_i32 = arith.constant 0 : i32
    %c0_i32_0 = arith.constant 0 : i32
    %c0_i32_1 = arith.constant 0 : i32
    %c0_i32_2 = arith.constant 0 : i32
    return %arg0, %c0_i32, %c0_i32_0, %c0_i32_1 : i32, i32, i32, i32
  }
  func.func @transform_1(%arg0: i32) -> (i32, i32) {
    %c0_i32 = arith.constant 0 : i32
    %c0_i32_0 = arith.constant 0 : i32
    %c0_i32_1 = arith.constant 0 : i32
    return %c0_i32, %c0_i32_0 : i32, i32
  }
  func.func @transform_2(%arg0: i32) -> (i32, i32, i32, i32) {
    %c0_i32 = arith.constant 0 : i32
    %c0_i32_0 = arith.constant 0 : i32
    %c0_i32_1 = arith.constant 0 : i32
    %c0_i32_2 = arith.constant 0 : i32
    return %arg0, %c0_i32, %c0_i32_0, %c0_i32_1 : i32, i32, i32, i32
  }
  func.func @transform_3(%arg0: i32) -> (i32, i32, i32) {
    %c0_i32 = arith.constant 0 : i32
    %c0_i32_0 = arith.constant 0 : i32
    %c0_i32_1 = arith.constant 0 : i32
    return %arg0, %c0_i32, %c0_i32_0 : i32, i32, i32
  }
}

module attributes {stable_mosaic.version = 11 : i64} {
  func.func @_matmul_bias_kernel(%arg0: i32, %arg1: memref<32x32xbf16, #tpu.memory_space<vmem>>, %arg2: memref<32x64xbf16, #tpu.memory_space<vmem>>, %arg3: memref<1x64xf32, #tpu.memory_space<vmem>>, %arg4: memref<32x64xbf16, #tpu.memory_space<vmem>>) attributes {dimension_semantics = [#tpu.dimension_semantics<parallel>], iteration_bounds = array<i64: 1>, scalar_prefetch = 0 : i64, scratch_operands = 0 : i64, tpu.core_type = #tpu.core_type<tc>, window_params = [{transform_indices = @transform_0, window_bounds = array<i64: 32, 32>}, {pipeline_mode = #tpu.pipeline_mode<synchronous>, transform_indices = @transform_1, window_bounds = array<i64: 32, 64>}, {pipeline_mode = #tpu.pipeline_mode<synchronous>, transform_indices = @transform_2, window_bounds = array<i64: 1, 64>}, {transform_indices = @transform_3, window_bounds = array<i64: 32, 64>}]} {
    %c0 = arith.constant 0 : index
    %c0_0 = arith.constant 0 : index
    %0 = vector.load %arg1[%c0, %c0_0] : memref<32x32xbf16, #tpu.memory_space<vmem>>, vector<32x32xbf16>
    %c0_1 = arith.constant 0 : index
    %c0_2 = arith.constant 0 : index
    %1 = vector.load %arg2[%c0_1, %c0_2] : memref<32x64xbf16, #tpu.memory_space<vmem>>, vector<32x64xbf16>
    %cst = arith.constant dense<0.000000e+00> : vector<32x64xf32>
    %2 = tpu.matmul %0, %1, %cst {dimension_numbers = #tpu.dot_dimension_numbers<[1], [0], [0], [1], [0, 0, 1, 1], [], []>} : vector<32x32xbf16>, vector<32x64xbf16>, vector<32x64xf32> -> vector<32x64xf32>
    %c0_3 = arith.constant 0 : index
    %c0_4 = arith.constant 0 : index
    %3 = vector.load %arg3[%c0_3, %c0_4] : memref<1x64xf32, #tpu.memory_space<vmem>>, vector<1x64xf32>
    %4 = vector.broadcast %3 : vector<1x64xf32> to vector<32x64xf32>
    %5 = arith.addf %2, %4 : vector<32x64xf32>
    %6 = arith.truncf %5 : vector<32x64xf32> to vector<32x64xbf16>
    %c0_5 = arith.constant 0 : index
    %c0_6 = arith.constant 0 : index
    %7 = vector.load %arg4[%c0_5, %c0_6] : memref<32x64xbf16, #tpu.memory_space<vmem>>, vector<32x64xbf16>
    tpu.vector_store %arg4[%c0_5, %c0_6], %6 {strides = array<i32>} : memref<32x64xbf16, #tpu.memory_space<vmem>>, vector<32x64xbf16>,
    return
  }
  func.func @transform_0(%arg0: i32) -> (i32, i32) {
    %c0_i32 = arith.constant 0 : i32
    %c0_i32_0 = arith.constant 0 : i32
    return %arg0, %c0_i32 : i32, i32
  }
  func.func @transform_1(%arg0: i32) -> (i32, i32) {
    %c0_i32 = arith.constant 0 : i32
    %c0_i32_0 = arith.constant 0 : i32
    %c0_i32_1 = arith.constant 0 : i32
    return %c0_i32, %c0_i32_0 : i32, i32
  }
  func.func @transform_2(%arg0: i32) -> (i32, i32) {
    %c0_i32 = arith.constant 0 : i32
    %c0_i32_0 = arith.constant 0 : i32
    %c0_i32_1 = arith.constant 0 : i32
    return %c0_i32, %c0_i32_0 : i32, i32
  }
  func.func @transform_3(%arg0: i32) -> (i32, i32) {
    %c0_i32 = arith.constant 0 : i32
    %c0_i32_0 = arith.constant 0 : i32
    return %arg0, %c0_i32 : i32, i32
  }
}

module attributes {stable_mosaic.version = 11 : i64} {
  func.func @kernel(%arg0: i32, %arg1: memref<1x8x8x32xf32, #tpu.memory_space<vmem>>, %arg2: memref<9x32xf32, #tpu.memory_space<vmem>>, %arg3: memref<1x8x8x32xbf16, #tpu.memory_space<vmem>>, %arg4: memref<1x2x32xf32, #tpu.memory_space<vmem>>, %arg5: memref<10x10x32xf32, #tpu.memory_space<vmem>>) attributes {dimension_semantics = [#tpu.dimension_semantics<parallel>], iteration_bounds = array<i64: 2>, scalar_prefetch = 0 : i64, scratch_operands = 1 : i64, tpu.core_type = #tpu.core_type<tc>, window_params = [{transform_indices = @transform_0, window_bounds = array<i64: 1, 8, 8, 32>}, {pipeline_mode = #tpu.pipeline_mode<synchronous>, transform_indices = @transform_1, window_bounds = array<i64: 9, 32>}, {transform_indices = @transform_2, window_bounds = array<i64: 1, 8, 8, 32>}, {transform_indices = @transform_3, window_bounds = array<i64: 1, 2, 32>}]} {
    %cst = arith.constant 0.000000e+00 : f32
    %0 = vector.broadcast %cst : f32 to vector<10x10x32xf32>
    %c0 = arith.constant 0 : index
    %c0_0 = arith.constant 0 : index
    %c0_1 = arith.constant 0 : index
    %1 = vector.load %arg5[%c0, %c0_0, %c0_1] : memref<10x10x32xf32, #tpu.memory_space<vmem>>, vector<10x10x32xf32>
    tpu.vector_store %arg5[%c0, %c0_0, %c0_1], %0 {strides = array<i32>} : memref<10x10x32xf32, #tpu.memory_space<vmem>>, vector<10x10x32xf32>,
    %c0_2 = arith.constant 0 : index
    %c0_3 = arith.constant 0 : index
    %c0_4 = arith.constant 0 : index
    %c0_5 = arith.constant 0 : index
    %2 = vector.load %arg1[%c0_2, %c0_3, %c0_4, %c0_5] : memref<1x8x8x32xf32, #tpu.memory_space<vmem>>, vector<1x8x8x32xf32>
    %3 = vector.shape_cast %2 : vector<1x8x8x32xf32> to vector<8x8x32xf32>
    %c1 = arith.constant 1 : index
    %c1_6 = arith.constant 1 : index
    %c0_7 = arith.constant 0 : index
    %4 = vector.load %arg5[%c1, %c1_6, %c0_7] : memref<10x10x32xf32, #tpu.memory_space<vmem>>, vector<8x8x32xf32>
    tpu.vector_store %arg5[%c1, %c1_6, %c0_7], %3 {strides = array<i32>} : memref<10x10x32xf32, #tpu.memory_space<vmem>>, vector<8x8x32xf32>,
    %c0_8 = arith.constant 0 : index
    %c0_9 = arith.constant 0 : index
    %5 = vector.load %arg2[%c0_8, %c0_9] : memref<9x32xf32, #tpu.memory_space<vmem>>, vector<9x32xf32>
    %cst_10 = arith.constant 0.000000e+00 : f32
    %6 = vector.broadcast %cst_10 : f32 to vector<8x8x32xf32>
    %c0_11 = arith.constant 0 : index
    %c0_12 = arith.constant 0 : index
    %c0_13 = arith.constant 0 : index
    %7 = vector.load %arg5[%c0_11, %c0_12, %c0_13] : memref<10x10x32xf32, #tpu.memory_space<vmem>>, vector<8x8x32xf32>
    %8 = vector.extract_strided_slice %5 {offsets = [0, 0], sizes = [1, 32], strides = [1, 1]} : vector<9x32xf32> to vector<1x32xf32>
    %9 = vector.shape_cast %8 : vector<1x32xf32> to vector<32xf32>
    %10 = vector.shape_cast %9 : vector<32xf32> to vector<1x1x32xf32>
    %11 = vector.broadcast %10 : vector<1x1x32xf32> to vector<8x8x32xf32>
    %12 = arith.mulf %7, %11 : vector<8x8x32xf32>
    %13 = arith.addf %6, %12 : vector<8x8x32xf32>
    %c0_14 = arith.constant 0 : index
    %c1_15 = arith.constant 1 : index
    %c0_16 = arith.constant 0 : index
    %14 = vector.load %arg5[%c0_14, %c1_15, %c0_16] : memref<10x10x32xf32, #tpu.memory_space<vmem>>, vector<8x8x32xf32>
    %15 = vector.extract_strided_slice %5 {offsets = [1, 0], sizes = [1, 32], strides = [1, 1]} : vector<9x32xf32> to vector<1x32xf32>
    %16 = vector.shape_cast %15 : vector<1x32xf32> to vector<32xf32>
    %17 = vector.shape_cast %16 : vector<32xf32> to vector<1x1x32xf32>
    %18 = vector.broadcast %17 : vector<1x1x32xf32> to vector<8x8x32xf32>
    %19 = arith.mulf %14, %18 : vector<8x8x32xf32>
    %20 = arith.addf %13, %19 : vector<8x8x32xf32>
    %c0_17 = arith.constant 0 : index
    %c2 = arith.constant 2 : index
    %c0_18 = arith.constant 0 : index
    %21 = vector.load %arg5[%c0_17, %c2, %c0_18] : memref<10x10x32xf32, #tpu.memory_space<vmem>>, vector<8x8x32xf32>
    %22 = vector.extract_strided_slice %5 {offsets = [2, 0], sizes = [1, 32], strides = [1, 1]} : vector<9x32xf32> to vector<1x32xf32>
    %23 = vector.shape_cast %22 : vector<1x32xf32> to vector<32xf32>
    %24 = vector.shape_cast %23 : vector<32xf32> to vector<1x1x32xf32>
    %25 = vector.broadcast %24 : vector<1x1x32xf32> to vector<8x8x32xf32>
    %26 = arith.mulf %21, %25 : vector<8x8x32xf32>
    %27 = arith.addf %20, %26 : vector<8x8x32xf32>
    %c1_19 = arith.constant 1 : index
    %c0_20 = arith.constant 0 : index
    %c0_21 = arith.constant 0 : index
    %28 = vector.load %arg5[%c1_19, %c0_20, %c0_21] : memref<10x10x32xf32, #tpu.memory_space<vmem>>, vector<8x8x32xf32>
    %29 = vector.extract_strided_slice %5 {offsets = [3, 0], sizes = [1, 32], strides = [1, 1]} : vector<9x32xf32> to vector<1x32xf32>
    %30 = vector.shape_cast %29 : vector<1x32xf32> to vector<32xf32>
    %31 = vector.shape_cast %30 : vector<32xf32> to vector<1x1x32xf32>
    %32 = vector.broadcast %31 : vector<1x1x32xf32> to vector<8x8x32xf32>
    %33 = arith.mulf %28, %32 : vector<8x8x32xf32>
    %34 = arith.addf %27, %33 : vector<8x8x32xf32>
    %c1_22 = arith.constant 1 : index
    %c1_23 = arith.constant 1 : index
    %c0_24 = arith.constant 0 : index
    %35 = vector.load %arg5[%c1_22, %c1_23, %c0_24] : memref<10x10x32xf32, #tpu.memory_space<vmem>>, vector<8x8x32xf32>
    %36 = vector.extract_strided_slice %5 {offsets = [4, 0], sizes = [1, 32], strides = [1, 1]} : vector<9x32xf32> to vector<1x32xf32>
    %37 = vector.shape_cast %36 : vector<1x32xf32> to vector<32xf32>
    %38 = vector.shape_cast %37 : vector<32xf32> to vector<1x1x32xf32>
    %39 = vector.broadcast %38 : vector<1x1x32xf32> to vector<8x8x32xf32>
    %40 = arith.mulf %35, %39 : vector<8x8x32xf32>
    %41 = arith.addf %34, %40 : vector<8x8x32xf32>
    %c1_25 = arith.constant 1 : index
    %c2_26 = arith.constant 2 : index
    %c0_27 = arith.constant 0 : index
    %42 = vector.load %arg5[%c1_25, %c2_26, %c0_27] : memref<10x10x32xf32, #tpu.memory_space<vmem>>, vector<8x8x32xf32>
    %43 = vector.extract_strided_slice %5 {offsets = [5, 0], sizes = [1, 32], strides = [1, 1]} : vector<9x32xf32> to vector<1x32xf32>
    %44 = vector.shape_cast %43 : vector<1x32xf32> to vector<32xf32>
    %45 = vector.shape_cast %44 : vector<32xf32> to vector<1x1x32xf32>
    %46 = vector.broadcast %45 : vector<1x1x32xf32> to vector<8x8x32xf32>
    %47 = arith.mulf %42, %46 : vector<8x8x32xf32>
    %48 = arith.addf %41, %47 : vector<8x8x32xf32>
    %c2_28 = arith.constant 2 : index
    %c0_29 = arith.constant 0 : index
    %c0_30 = arith.constant 0 : index
    %49 = vector.load %arg5[%c2_28, %c0_29, %c0_30] : memref<10x10x32xf32, #tpu.memory_space<vmem>>, vector<8x8x32xf32>
    %50 = vector.extract_strided_slice %5 {offsets = [6, 0], sizes = [1, 32], strides = [1, 1]} : vector<9x32xf32> to vector<1x32xf32>
    %51 = vector.shape_cast %50 : vector<1x32xf32> to vector<32xf32>
    %52 = vector.shape_cast %51 : vector<32xf32> to vector<1x1x32xf32>
    %53 = vector.broadcast %52 : vector<1x1x32xf32> to vector<8x8x32xf32>
    %54 = arith.mulf %49, %53 : vector<8x8x32xf32>
    %55 = arith.addf %48, %54 : vector<8x8x32xf32>
    %c2_31 = arith.constant 2 : index
    %c1_32 = arith.constant 1 : index
    %c0_33 = arith.constant 0 : index
    %56 = vector.load %arg5[%c2_31, %c1_32, %c0_33] : memref<10x10x32xf32, #tpu.memory_space<vmem>>, vector<8x8x32xf32>
    %57 = vector.extract_strided_slice %5 {offsets = [7, 0], sizes = [1, 32], strides = [1, 1]} : vector<9x32xf32> to vector<1x32xf32>
    %58 = vector.shape_cast %57 : vector<1x32xf32> to vector<32xf32>
    %59 = vector.shape_cast %58 : vector<32xf32> to vector<1x1x32xf32>
    %60 = vector.broadcast %59 : vector<1x1x32xf32> to vector<8x8x32xf32>
    %61 = arith.mulf %56, %60 : vector<8x8x32xf32>
    %62 = arith.addf %55, %61 : vector<8x8x32xf32>
    %c2_34 = arith.constant 2 : index
    %c2_35 = arith.constant 2 : index
    %c0_36 = arith.constant 0 : index
    %63 = vector.load %arg5[%c2_34, %c2_35, %c0_36] : memref<10x10x32xf32, #tpu.memory_space<vmem>>, vector<8x8x32xf32>
    %64 = vector.extract_strided_slice %5 {offsets = [8, 0], sizes = [1, 32], strides = [1, 1]} : vector<9x32xf32> to vector<1x32xf32>
    %65 = vector.shape_cast %64 : vector<1x32xf32> to vector<32xf32>
    %66 = vector.shape_cast %65 : vector<32xf32> to vector<1x1x32xf32>
    %67 = vector.broadcast %66 : vector<1x1x32xf32> to vector<8x8x32xf32>
    %68 = arith.mulf %63, %67 : vector<8x8x32xf32>
    %69 = arith.addf %62, %68 : vector<8x8x32xf32>
    %70 = arith.truncf %69 : vector<8x8x32xf32> to vector<8x8x32xbf16>
    %c0_37 = arith.constant 0 : index
    %c0_38 = arith.constant 0 : index
    %c0_39 = arith.constant 0 : index
    %c0_40 = arith.constant 0 : index
    %71 = vector.load %arg3[%c0_37, %c0_38, %c0_39, %c0_40] : memref<1x8x8x32xbf16, #tpu.memory_space<vmem>>, vector<1x8x8x32xbf16>
    %72 = vector.shape_cast %71 : vector<1x8x8x32xbf16> to vector<8x8x32xbf16>
    %73 = vector.shape_cast %70 : vector<8x8x32xbf16> to vector<1x8x8x32xbf16>
    tpu.vector_store %arg3[%c0_37, %c0_38, %c0_39, %c0_40], %73 {strides = array<i32>} : memref<1x8x8x32xbf16, #tpu.memory_space<vmem>>, vector<1x8x8x32xbf16>,
    %74 = vector.shape_cast %69 : vector<8x8x32xf32> to vector<64x32xf32>
    %cst_41 = arith.constant dense<0.000000e+00> : vector<32xf32>
    %75 = vector.multi_reduction <add>, %74, %cst_41 [0] : vector<64x32xf32> to vector<32xf32>
    %76 = vector.shape_cast %75 : vector<32xf32> to vector<1x32xf32>
    %77 = arith.mulf %74, %74 : vector<64x32xf32>
    %cst_42 = arith.constant dense<0.000000e+00> : vector<32xf32>
    %78 = vector.multi_reduction <add>, %77, %cst_42 [0] : vector<64x32xf32> to vector<32xf32>
    %79 = vector.shape_cast %78 : vector<32xf32> to vector<1x32xf32>
    %80 = tpu.concatenate %76, %79 in 0 : vector<1x32xf32>, vector<1x32xf32> -> vector<2x32xf32>
    %c0_43 = arith.constant 0 : index
    %c0_44 = arith.constant 0 : index
    %c0_45 = arith.constant 0 : index
    %81 = vector.load %arg4[%c0_43, %c0_44, %c0_45] : memref<1x2x32xf32, #tpu.memory_space<vmem>>, vector<1x2x32xf32>
    %82 = vector.shape_cast %81 : vector<1x2x32xf32> to vector<2x32xf32>
    %83 = vector.shape_cast %80 : vector<2x32xf32> to vector<1x2x32xf32>
    tpu.vector_store %arg4[%c0_43, %c0_44, %c0_45], %83 {strides = array<i32>} : memref<1x2x32xf32, #tpu.memory_space<vmem>>, vector<1x2x32xf32>,
    return
  }
  func.func @transform_0(%arg0: i32) -> (i32, i32, i32, i32) {
    %c0_i32 = arith.constant 0 : i32
    %c0_i32_0 = arith.constant 0 : i32
    %c0_i32_1 = arith.constant 0 : i32
    %c0_i32_2 = arith.constant 0 : i32
    return %arg0, %c0_i32, %c0_i32_0, %c0_i32_1 : i32, i32, i32, i32
  }
  func.func @transform_1(%arg0: i32) -> (i32, i32) {
    %c0_i32 = arith.constant 0 : i32
    %c0_i32_0 = arith.constant 0 : i32
    %c0_i32_1 = arith.constant 0 : i32
    return %c0_i32, %c0_i32_0 : i32, i32
  }
  func.func @transform_2(%arg0: i32) -> (i32, i32, i32, i32) {
    %c0_i32 = arith.constant 0 : i32
    %c0_i32_0 = arith.constant 0 : i32
    %c0_i32_1 = arith.constant 0 : i32
    %c0_i32_2 = arith.constant 0 : i32
    return %arg0, %c0_i32, %c0_i32_0, %c0_i32_1 : i32, i32, i32, i32
  }
  func.func @transform_3(%arg0: i32) -> (i32, i32, i32) {
    %c0_i32 = arith.constant 0 : i32
    %c0_i32_0 = arith.constant 0 : i32
    %c0_i32_1 = arith.constant 0 : i32
    return %arg0, %c0_i32, %c0_i32_0 : i32, i32, i32
  }
}

module attributes {stable_mosaic.version = 11 : i64} {
  func.func @_matmul_bias_kernel(%arg0: i32, %arg1: memref<128x32xbf16, #tpu.memory_space<vmem>>, %arg2: memref<32x32xbf16, #tpu.memory_space<vmem>>, %arg3: memref<1x32xf32, #tpu.memory_space<vmem>>, %arg4: memref<128x32xbf16, #tpu.memory_space<vmem>>) attributes {dimension_semantics = [#tpu.dimension_semantics<parallel>], iteration_bounds = array<i64: 1>, scalar_prefetch = 0 : i64, scratch_operands = 0 : i64, tpu.core_type = #tpu.core_type<tc>, window_params = [{transform_indices = @transform_0, window_bounds = array<i64: 128, 32>}, {pipeline_mode = #tpu.pipeline_mode<synchronous>, transform_indices = @transform_1, window_bounds = array<i64: 32, 32>}, {pipeline_mode = #tpu.pipeline_mode<synchronous>, transform_indices = @transform_2, window_bounds = array<i64: 1, 32>}, {transform_indices = @transform_3, window_bounds = array<i64: 128, 32>}]} {
    %c0 = arith.constant 0 : index
    %c0_0 = arith.constant 0 : index
    %0 = vector.load %arg1[%c0, %c0_0] : memref<128x32xbf16, #tpu.memory_space<vmem>>, vector<128x32xbf16>
    %c0_1 = arith.constant 0 : index
    %c0_2 = arith.constant 0 : index
    %1 = vector.load %arg2[%c0_1, %c0_2] : memref<32x32xbf16, #tpu.memory_space<vmem>>, vector<32x32xbf16>
    %cst = arith.constant dense<0.000000e+00> : vector<128x32xf32>
    %2 = tpu.matmul %0, %1, %cst {dimension_numbers = #tpu.dot_dimension_numbers<[1], [0], [0], [1], [0, 0, 1, 1], [], []>} : vector<128x32xbf16>, vector<32x32xbf16>, vector<128x32xf32> -> vector<128x32xf32>
    %c0_3 = arith.constant 0 : index
    %c0_4 = arith.constant 0 : index
    %3 = vector.load %arg3[%c0_3, %c0_4] : memref<1x32xf32, #tpu.memory_space<vmem>>, vector<1x32xf32>
    %4 = vector.broadcast %3 : vector<1x32xf32> to vector<128x32xf32>
    %5 = arith.addf %2, %4 : vector<128x32xf32>
    %6 = arith.truncf %5 : vector<128x32xf32> to vector<128x32xbf16>
    %c0_5 = arith.constant 0 : index
    %c0_6 = arith.constant 0 : index
    %7 = vector.load %arg4[%c0_5, %c0_6] : memref<128x32xbf16, #tpu.memory_space<vmem>>, vector<128x32xbf16>
    tpu.vector_store %arg4[%c0_5, %c0_6], %6 {strides = array<i32>} : memref<128x32xbf16, #tpu.memory_space<vmem>>, vector<128x32xbf16>,
    return
  }
  func.func @transform_0(%arg0: i32) -> (i32, i32) {
    %c0_i32 = arith.constant 0 : i32
    %c0_i32_0 = arith.constant 0 : i32
    return %arg0, %c0_i32 : i32, i32
  }
  func.func @transform_1(%arg0: i32) -> (i32, i32) {
    %c0_i32 = arith.constant 0 : i32
    %c0_i32_0 = arith.constant 0 : i32
    %c0_i32_1 = arith.constant 0 : i32
    return %c0_i32, %c0_i32_0 : i32, i32
  }
  func.func @transform_2(%arg0: i32) -> (i32, i32) {
    %c0_i32 = arith.constant 0 : i32
    %c0_i32_0 = arith.constant 0 : i32
    %c0_i32_1 = arith.constant 0 : i32
    return %c0_i32, %c0_i32_0 : i32, i32
  }
  func.func @transform_3(%arg0: i32) -> (i32, i32) {
    %c0_i32 = arith.constant 0 : i32
    %c0_i32_0 = arith.constant 0 : i32
    return %arg0, %c0_i32 : i32, i32
  }
}

module attributes {stable_mosaic.version = 11 : i64} {
  func.func @kernel(%arg0: i32, %arg1: i32, %arg2: memref<1x64x32xbf16, #tpu.memory_space<vmem>>, %arg3: memref<1x16x32xbf16, #tpu.memory_space<vmem>>, %arg4: memref<1x16x32xbf16, #tpu.memory_space<vmem>>, %arg5: memref<1x64x32xbf16, #tpu.memory_space<vmem>>) attributes {dimension_semantics = [#tpu.dimension_semantics<parallel>, #tpu.dimension_semantics<parallel>], iteration_bounds = array<i64: 2, 1>, scalar_prefetch = 0 : i64, scratch_operands = 0 : i64, tpu.core_type = #tpu.core_type<tc>, window_params = [{transform_indices = @transform_0, window_bounds = array<i64: 1, 64, 32>}, {transform_indices = @transform_1, window_bounds = array<i64: 1, 16, 32>}, {transform_indices = @transform_2, window_bounds = array<i64: 1, 16, 32>}, {transform_indices = @transform_3, window_bounds = array<i64: 1, 64, 32>}]} {
    %c0 = arith.constant 0 : index
    %c0_0 = arith.constant 0 : index
    %c0_1 = arith.constant 0 : index
    %0 = vector.load %arg2[%c0, %c0_0, %c0_1] : memref<1x64x32xbf16, #tpu.memory_space<vmem>>, vector<1x64x32xbf16>
    %1 = vector.shape_cast %0 : vector<1x64x32xbf16> to vector<64x32xbf16>
    %c0_2 = arith.constant 0 : index
    %c0_3 = arith.constant 0 : index
    %c0_4 = arith.constant 0 : index
    %2 = vector.load %arg3[%c0_2, %c0_3, %c0_4] : memref<1x16x32xbf16, #tpu.memory_space<vmem>>, vector<1x16x32xbf16>
    %3 = vector.shape_cast %2 : vector<1x16x32xbf16> to vector<16x32xbf16>
    %c0_5 = arith.constant 0 : index
    %c0_6 = arith.constant 0 : index
    %c0_7 = arith.constant 0 : index
    %4 = vector.load %arg4[%c0_5, %c0_6, %c0_7] : memref<1x16x32xbf16, #tpu.memory_space<vmem>>, vector<1x16x32xbf16>
    %5 = vector.shape_cast %4 : vector<1x16x32xbf16> to vector<16x32xbf16>
    %6 = vector.extract_strided_slice %1 {offsets = [0, 0], sizes = [64, 16], strides = [1, 1]} : vector<64x32xbf16> to vector<64x16xbf16>
    %7 = vector.extract_strided_slice %1 {offsets = [0, 16], sizes = [64, 16], strides = [1, 1]} : vector<64x32xbf16> to vector<64x16xbf16>
    %8 = vector.shape_cast %6 : vector<64x16xbf16> to vector<1x64x16xbf16>
    %9 = vector.shape_cast %7 : vector<64x16xbf16> to vector<1x64x16xbf16>
    %10 = tpu.concatenate %8, %9 in 0 : vector<1x64x16xbf16>, vector<1x64x16xbf16> -> vector<2x64x16xbf16>
    %11 = vector.extract_strided_slice %3 {offsets = [0, 0], sizes = [16, 16], strides = [1, 1]} : vector<16x32xbf16> to vector<16x16xbf16>
    %12 = vector.extract_strided_slice %3 {offsets = [0, 16], sizes = [16, 16], strides = [1, 1]} : vector<16x32xbf16> to vector<16x16xbf16>
    %13 = vector.shape_cast %11 : vector<16x16xbf16> to vector<1x16x16xbf16>
    %14 = vector.shape_cast %12 : vector<16x16xbf16> to vector<1x16x16xbf16>
    %15 = tpu.concatenate %13, %14 in 0 : vector<1x16x16xbf16>, vector<1x16x16xbf16> -> vector<2x16x16xbf16>
    %16 = vector.extract_strided_slice %5 {offsets = [0, 0], sizes = [16, 16], strides = [1, 1]} : vector<16x32xbf16> to vector<16x16xbf16>
    %17 = vector.extract_strided_slice %5 {offsets = [0, 16], sizes = [16, 16], strides = [1, 1]} : vector<16x32xbf16> to vector<16x16xbf16>
    %18 = vector.shape_cast %16 : vector<16x16xbf16> to vector<1x16x16xbf16>
    %19 = vector.shape_cast %17 : vector<16x16xbf16> to vector<1x16x16xbf16>
    %20 = tpu.concatenate %18, %19 in 0 : vector<1x16x16xbf16>, vector<1x16x16xbf16> -> vector<2x16x16xbf16>
    "tpu.trace_start"() <{level = 10 : i32, message = "hqd,hkd->hqk"}> : () -> ()
    %cst = arith.constant dense<0.000000e+00> : vector<2x64x16xf32>
    %21 = tpu.matmul %10, %15, %cst {dimension_numbers = #tpu.dot_dimension_numbers<[2], [2], [1], [1], [0, 0, 0, 1, 1, 1], [0], [0]>} : vector<2x64x16xbf16>, vector<2x16x16xbf16>, vector<2x64x16xf32> -> vector<2x64x16xf32>
    "tpu.trace_stop"() : () -> ()
    %cst_8 = arith.constant 2.500000e-01 : f32
    %22 = vector.broadcast %cst_8 : f32 to vector<2x64x16xf32>
    %23 = arith.mulf %21, %22 : vector<2x64x16xf32>
    %cst_9 = arith.constant dense<0xFF800000> : vector<2x64xf32>
    %24 = vector.multi_reduction <maximumf>, %23, %cst_9 [2] : vector<2x64x16xf32> to vector<2x64xf32>
    %25 = vector.shape_cast %24 : vector<2x64xf32> to vector<2x64x1xf32>
    %26 = vector.broadcast %25 : vector<2x64x1xf32> to vector<2x64x16xf32>
    %27 = arith.subf %23, %26 : vector<2x64x16xf32>
    %28 = math.exp %27 : vector<2x64x16xf32>
    %cst_10 = arith.constant dense<0.000000e+00> : vector<2x64xf32>
    %29 = vector.multi_reduction <add>, %28, %cst_10 [2] : vector<2x64x16xf32> to vector<2x64xf32>
    %30 = vector.shape_cast %29 : vector<2x64xf32> to vector<2x64x1xf32>
    %31 = tpu.reciprocal %30 {approx = true} : vector<2x64x1xf32> -> vector<2x64x1xf32>
    %32 = vector.broadcast %31 : vector<2x64x1xf32> to vector<2x64x16xf32>
    %33 = arith.mulf %28, %32 : vector<2x64x16xf32>
    %34 = arith.truncf %33 : vector<2x64x16xf32> to vector<2x64x16xbf16>
    "tpu.trace_start"() <{level = 10 : i32, message = "hqk,hkd->hqd"}> : () -> ()
    %cst_11 = arith.constant dense<0.000000e+00> : vector<2x64x16xf32>
    %35 = tpu.matmul %34, %20, %cst_11 {dimension_numbers = #tpu.dot_dimension_numbers<[2], [1], [1], [2], [0, 0, 0, 1, 1, 2], [0], [0]>} : vector<2x64x16xbf16>, vector<2x16x16xbf16>, vector<2x64x16xf32> -> vector<2x64x16xf32>
    "tpu.trace_stop"() : () -> ()
    %36 = vector.extract_strided_slice %35 {offsets = [0, 0, 0], sizes = [1, 64, 16], strides = [1, 1, 1]} : vector<2x64x16xf32> to vector<1x64x16xf32>
    %37 = vector.shape_cast %36 : vector<1x64x16xf32> to vector<64x16xf32>
    %38 = arith.truncf %37 : vector<64x16xf32> to vector<64x16xbf16>
    %c0_12 = arith.constant 0 : index
    %c0_13 = arith.constant 0 : index
    %c0_14 = arith.constant 0 : index
    %39 = vector.load %arg5[%c0_12, %c0_13, %c0_14] : memref<1x64x32xbf16, #tpu.memory_space<vmem>>, vector<1x64x16xbf16>
    %40 = vector.shape_cast %39 : vector<1x64x16xbf16> to vector<64x16xbf16>
    %41 = vector.shape_cast %38 : vector<64x16xbf16> to vector<1x64x16xbf16>
    tpu.vector_store %arg5[%c0_12, %c0_13, %c0_14], %41 {strides = array<i32>} : memref<1x64x32xbf16, #tpu.memory_space<vmem>>, vector<1x64x16xbf16>,
    %42 = vector.extract_strided_slice %35 {offsets = [1, 0, 0], sizes = [1, 64, 16], strides = [1, 1, 1]} : vector<2x64x16xf32> to vector<1x64x16xf32>
    %43 = vector.shape_cast %42 : vector<1x64x16xf32> to vector<64x16xf32>
    %44 = arith.truncf %43 : vector<64x16xf32> to vector<64x16xbf16>
    %c0_15 = arith.constant 0 : index
    %c0_16 = arith.constant 0 : index
    %c16 = arith.constant 16 : index
    %45 = vector.load %arg5[%c0_15, %c0_16, %c16] : memref<1x64x32xbf16, #tpu.memory_space<vmem>>, vector<1x64x16xbf16>
    %46 = vector.shape_cast %45 : vector<1x64x16xbf16> to vector<64x16xbf16>
    %47 = vector.shape_cast %44 : vector<64x16xbf16> to vector<1x64x16xbf16>
    tpu.vector_store %arg5[%c0_15, %c0_16, %c16], %47 {strides = array<i32>} : memref<1x64x32xbf16, #tpu.memory_space<vmem>>, vector<1x64x16xbf16>,
    return
  }
  func.func @transform_0(%arg0: i32, %arg1: i32) -> (i32, i32, i32) {
    %c0_i32 = arith.constant 0 : i32
    %c0_i32_0 = arith.constant 0 : i32
    return %arg0, %arg1, %c0_i32 : i32, i32, i32
  }
  func.func @transform_1(%arg0: i32, %arg1: i32) -> (i32, i32, i32) {
    %c0_i32 = arith.constant 0 : i32
    %c0_i32_0 = arith.constant 0 : i32
    %c0_i32_1 = arith.constant 0 : i32
    return %arg0, %c0_i32, %c0_i32_0 : i32, i32, i32
  }
  func.func @transform_2(%arg0: i32, %arg1: i32) -> (i32, i32, i32) {
    %c0_i32 = arith.constant 0 : i32
    %c0_i32_0 = arith.constant 0 : i32
    %c0_i32_1 = arith.constant 0 : i32
    return %arg0, %c0_i32, %c0_i32_0 : i32, i32, i32
  }
  func.func @transform_3(%arg0: i32, %arg1: i32) -> (i32, i32, i32) {
    %c0_i32 = arith.constant 0 : i32
    %c0_i32_0 = arith.constant 0 : i32
    return %arg0, %arg1, %c0_i32 : i32, i32, i32
  }
}

module attributes {stable_mosaic.version = 11 : i64} {
  func.func @_matmul_bias_kernel(%arg0: i32, %arg1: memref<128x32xbf16, #tpu.memory_space<vmem>>, %arg2: memref<32x32xbf16, #tpu.memory_space<vmem>>, %arg3: memref<1x32xf32, #tpu.memory_space<vmem>>, %arg4: memref<128x32xf32, #tpu.memory_space<vmem>>) attributes {dimension_semantics = [#tpu.dimension_semantics<parallel>], iteration_bounds = array<i64: 1>, scalar_prefetch = 0 : i64, scratch_operands = 0 : i64, tpu.core_type = #tpu.core_type<tc>, window_params = [{transform_indices = @transform_0, window_bounds = array<i64: 128, 32>}, {pipeline_mode = #tpu.pipeline_mode<synchronous>, transform_indices = @transform_1, window_bounds = array<i64: 32, 32>}, {pipeline_mode = #tpu.pipeline_mode<synchronous>, transform_indices = @transform_2, window_bounds = array<i64: 1, 32>}, {transform_indices = @transform_3, window_bounds = array<i64: 128, 32>}]} {
    %c0 = arith.constant 0 : index
    %c0_0 = arith.constant 0 : index
    %0 = vector.load %arg1[%c0, %c0_0] : memref<128x32xbf16, #tpu.memory_space<vmem>>, vector<128x32xbf16>
    %c0_1 = arith.constant 0 : index
    %c0_2 = arith.constant 0 : index
    %1 = vector.load %arg2[%c0_1, %c0_2] : memref<32x32xbf16, #tpu.memory_space<vmem>>, vector<32x32xbf16>
    %cst = arith.constant dense<0.000000e+00> : vector<128x32xf32>
    %2 = tpu.matmul %0, %1, %cst {dimension_numbers = #tpu.dot_dimension_numbers<[1], [0], [0], [1], [0, 0, 1, 1], [], []>} : vector<128x32xbf16>, vector<32x32xbf16>, vector<128x32xf32> -> vector<128x32xf32>
    %c0_3 = arith.constant 0 : index
    %c0_4 = arith.constant 0 : index
    %3 = vector.load %arg3[%c0_3, %c0_4] : memref<1x32xf32, #tpu.memory_space<vmem>>, vector<1x32xf32>
    %4 = vector.broadcast %3 : vector<1x32xf32> to vector<128x32xf32>
    %5 = arith.addf %2, %4 : vector<128x32xf32>
    %c0_5 = arith.constant 0 : index
    %c0_6 = arith.constant 0 : index
    %6 = vector.load %arg4[%c0_5, %c0_6] : memref<128x32xf32, #tpu.memory_space<vmem>>, vector<128x32xf32>
    tpu.vector_store %arg4[%c0_5, %c0_6], %5 {strides = array<i32>} : memref<128x32xf32, #tpu.memory_space<vmem>>, vector<128x32xf32>,
    return
  }
  func.func @transform_0(%arg0: i32) -> (i32, i32) {
    %c0_i32 = arith.constant 0 : i32
    %c0_i32_0 = arith.constant 0 : i32
    return %arg0, %c0_i32 : i32, i32
  }
  func.func @transform_1(%arg0: i32) -> (i32, i32) {
    %c0_i32 = arith.constant 0 : i32
    %c0_i32_0 = arith.constant 0 : i32
    %c0_i32_1 = arith.constant 0 : i32
    return %c0_i32, %c0_i32_0 : i32, i32
  }
  func.func @transform_2(%arg0: i32) -> (i32, i32) {
    %c0_i32 = arith.constant 0 : i32
    %c0_i32_0 = arith.constant 0 : i32
    %c0_i32_1 = arith.constant 0 : i32
    return %c0_i32, %c0_i32_0 : i32, i32
  }
  func.func @transform_3(%arg0: i32) -> (i32, i32) {
    %c0_i32 = arith.constant 0 : i32
    %c0_i32_0 = arith.constant 0 : i32
    return %arg0, %c0_i32 : i32, i32
  }
}

</mosaic_0001>

<llo_original>
// kernel: attention_forward.8
$region0: #{attention_forward.8}
  #allocation0 [shape = 'u32[]', space=smem, size = 0x4, offset = 0x4, fixed_abs, tag = 'smem constant byte address 0x4 - core index']
  #allocation1 [shape = 'u32[72,128]{1,0:T(1,128)}', space=vmem, size = 0x9000, scoped, tag = 'internal scratch']
  #allocation2 [shape = 'f32[10,10,32]{2,1,0:T(8,128)}', space=vmem, size = 0x14000, scoped, tag = 'scratch operand']
  %s0 = inlined_call_operand.hbm [shape: f32[2,8,8,32], index: 0, kind: input, shape index: {}]
  %s1 = inlined_call_operand.vmem [shape: f32[9,32], index: 1, kind: input, shape index: {}]
  %s2 = inlined_call_operand.vmem [shape: bf16[2,4,4,32], index: 2, kind: output, shape index: {0}]
  %s3 = inlined_call_operand.vmem [shape: f32[2,2,32], index: 3, kind: output, shape index: {1}]
  %4 = xla_tuple %s2, %s3
  %s5 = sld [smem:[#allocation0]]
  $region53: #{attention_forward.8} parent=0
    _
  %s7 = ssub.s32 1, %s5
  %s8 = scalar_select 0, %s7, %s5
  $region1: #{attention_forward.8} parent=0
    #allocation3 [shape = 'u8[65536]{0}', space=vmem, size = 0x10000, scoped, tag = 'input window, operand 0']
    #allocation4 [shape = 's32[2]{0}', space=sflag, size = 0x8, scoped, tag = 'scoped memory for attention_forward.8']
    %9 = vsyncpa [#allocation4], 0
    %s10 = scalar_lea.sflag [#allocation4], 1
    %11 = vsyncpa %s10, 0
    loop: start=0, step=1, limit=4
    $region2: #{attention_forward.8} parent=1 // loop_pre_header
      _
    $region3: #{attention_forward.8} parent=1 // loop_header
      %s13 = sphi 0, %s17
      %p14 = scmp.ge.s32.totalorder %s13, 4
      %s23 = sphi 0, %s25
      %s26 = sphi 0, %s23
      %s27 = sphi 0, %s26
      %s43 = sphi 0, %s27
      %s47 = sphi 0, %s47
      %s49 = sphi 0, %s47
      %s50 = sphi 0, %s49
      %s64 = sphi 0, %s50
      %s70 = sphi 0, %s72
      %s73 = sphi 0, %s70
      %s74 = sphi 0, %s73
      %s90 = sphi 0, %s74
      %s96 = sphi 0, %s98
      %s99 = sphi 0, %s96
      %s100 = sphi 0, %s99
      %s116 = sphi 0, %s100
    $region4: #{attention_forward.8} parent=1 // loop_header_branch
      %16 = sbr.rel (%p14) target = $region8
    $region5: #{attention_forward.8} parent=1 // loop_body
      %s18 = ssub.s32 %s13, 1
      %s19 = ssub.s32 %s13, 2
      %s20 = sadd.s32 %s13, 1
      %s21 = ssub.s32 %s13, %s20
      %p22 = scmp.eq.s32.totalorder %s21, 0
      %s24 = sadd.s32 %s23, 1
      %s25 = scalar_select %p22, %s23, %s24
      %p28 = pneg %p22
      %p29 = scmp.eq.s32.totalorder %s13, 1
      %p30 = por %p28, %p29
      %p31 = scmp.ne.s32.totalorder %s23, %s26
      %p32 = scmp.eq.s32.totalorder %s13, 0
      %p33 = por %p31, %p32
      %p34 = scmp.ne.s32.totalorder %s23, %s26
      %p35 = scmp.eq.s32.totalorder %s18, 1
      %p36 = por %p34, %p35
      %p37 = scmp.ne.s32.totalorder %s26, %s27
      %p38 = scmp.eq.s32.totalorder %s18, 0
      %p39 = por %p37, %p38
      %p40 = scmp.ne.s32.totalorder %s26, %s27
      %p41 = scmp.eq.s32.totalorder %s19, 1
      %p42 = por %p40, %p41
      %p44 = scmp.ne.s32.totalorder %s27, %s43
      %p45 = scmp.eq.s32.totalorder %s19, 0
      %p46 = por %p44, %p45
      %s48 = sadd.s32 %s47, 1
      %p51 = scmp.eq.s32.totalorder %s13, 1
      %p52 = scmp.ne.s32.totalorder %s47, %s49
      %p53 = scmp.eq.s32.totalorder %s13, 0
      %p54 = por %p52, %p53
      %p55 = scmp.ne.s32.totalorder %s47, %s49
      %p56 = scmp.eq.s32.totalorder %s18, 1
      %p57 = por %p55, %p56
      %p58 = scmp.ne.s32.totalorder %s49, %s50
      %p59 = scmp.eq.s32.totalorder %s18, 0
      %p60 = por %p58, %p59
      %p61 = scmp.ne.s32.totalorder %s49, %s50
      %p62 = scmp.eq.s32.totalorder %s19, 1
      %p63 = por %p61, %p62
      %p65 = scmp.ne.s32.totalorder %s50, %s64
      %p66 = scmp.eq.s32.totalorder %s19, 0
      %p67 = por %p65, %p66
      %s68 = ssub.s32 %s13, %s20
      %p69 = scmp.eq.s32.totalorder %s68, 0
      %s71 = sadd.s32 %s70, 1
      %s72 = scalar_select %p69, %s70, %s71
      %p75 = pneg %p69
      %p76 = scmp.eq.s32.totalorder %s13, 1
      %p77 = por %p75, %p76
      %p78 = scmp.ne.s32.totalorder %s70, %s73
      %p79 = scmp.eq.s32.totalorder %s13, 0
      %p80 = por %p78, %p79
      %p81 = scmp.ne.s32.totalorder %s70, %s73
      %p82 = scmp.eq.s32.totalorder %s18, 1
      %p83 = por %p81, %p82
      %p84 = scmp.ne.s32.totalorder %s73, %s74
      %p85 = scmp.eq.s32.totalorder %s18, 0
      %p86 = por %p84, %p85
      %p87 = scmp.ne.s32.totalorder %s73, %s74
      %p88 = scmp.eq.s32.totalorder %s19, 1
      %p89 = por %p87, %p88
      %p91 = scmp.ne.s32.totalorder %s74, %s90
      %p92 = scmp.eq.s32.totalorder %s19, 0
      %p93 = por %p91, %p92
      %s94 = ssub.s32 %s13, %s20
      %p95 = scmp.eq.s32.totalorder %s94, 0
      %s97 = sadd.s32 %s96, 1
      %s98 = scalar_select %p95, %s96, %s97
      %p101 = pneg %p95
      %p102 = scmp.eq.s32.totalorder %s13, 1
      %p103 = por %p101, %p102
      %p104 = scmp.ne.s32.totalorder %s96, %s99
      %p105 = scmp.eq.s32.totalorder %s13, 0
      %p106 = por %p104, %p105
      %p107 = scmp.ne.s32.totalorder %s96, %s99
      %p108 = scmp.eq.s32.totalorder %s18, 1
      %p109 = por %p107, %p108
      %p110 = scmp.ne.s32.totalorder %s99, %s100
      %p111 = scmp.eq.s32.totalorder %s18, 0
      %p112 = por %p110, %p111
      %p113 = scmp.ne.s32.totalorder %s99, %s100
      %p114 = scmp.eq.s32.totalorder %s19, 1
      %p115 = por %p113, %p114
      %p117 = scmp.ne.s32.totalorder %s100, %s116
      %p118 = scmp.eq.s32.totalorder %s19, 0
      %p119 = por %p117, %p118
      %p120 = scmp.le.s32.totalorder 1, %s13
      %p121 = scmp.lt.s32.totalorder %s13, 3
      %p122 = pnand %p120, %p121
      %p123 = pneg %p122
      // Predicated region
      $region9: #{attention_forward.8} parent=5 // pred_check
        _
      $region10: #{attention_forward.8} parent=5 // pred_check_branch
        %125 = sbr.rel (%p122) target = $region12
      $region11: #{attention_forward.8} parent=5 // pred_region
        %s126 = ssub.s32 %s13, 1
        // Predicated region
        $region13: #{attention_forward.8} parent=11 // pred_check
          %p127 = pneg %p60
        $region14: #{attention_forward.8} parent=11 // pred_check_branch
          %129 = sbr.rel (%p127) target = $region16
        $region15: #{attention_forward.8} parent=11 // pred_region
          _
        $region16: #{attention_forward.8} parent=11 // pred_fallthru
          _
      $region12: #{attention_forward.8} parent=5 // pred_fallthru
        _
      %p130 = scmp.lt.s32.totalorder %s13, 2
      // Predicated region
      $region17: #{attention_forward.8} parent=5 // pred_check
        %p131 = pneg %p130
      $region18: #{attention_forward.8} parent=5 // pred_check_branch
        %133 = sbr.rel (%p131) target = $region20
      $region19: #{attention_forward.8} parent=5 // pred_region
        // Predicated region
        $region21: #{attention_forward.8} parent=19 // pred_check
          %p134 = pneg %p33
        $region22: #{attention_forward.8} parent=19 // pred_check_branch
          %136 = sbr.rel (%p134) target = $region24
        $region23: #{attention_forward.8} parent=19 // pred_region
          %s137 = sand.u32 %s23, 1
          %s138 = scalar_lea.sflag [#allocation4], %s137
          %s139 = sand.u32 %s23, 1
          %s140 = smul.addr %s139, 64
          %s141 = scalar_lea.vmem [#allocation3], %s140
          %143 = vsyncadd %s138, 0
          %s144 = smul.addr %s13, 8
          %s145 = smul.addr %s144, 8
          %s146 = scalar_lea.hbm %s0, %s145
          %s147 = sshll.u32 %s146, 4
          %s148 = int_to_ptr.hbm [resolvable:$true] %s147
          %s149 = sshll.u32 %s141, 4
          %s150 = int_to_ptr.vmem [resolvable:$true] %s149
          %155 = dma.hbm_to_vmem [thread:$0]  %s148, 1024, %s150, %s138, 128, 128, 8
        $region24: #{attention_forward.8} parent=19 // pred_fallthru
          _
      $region20: #{attention_forward.8} parent=5 // pred_fallthru
        _
      %p156 = scmp.le.s32.totalorder 1, %s13
      %p157 = scmp.lt.s32.totalorder %s13, 3
      %p158 = pnand %p156, %p157
      %p159 = pneg %p158
      // Predicated region
      $region25: #{attention_forward.8} parent=5 // pred_check
        _
      $region26: #{attention_forward.8} parent=5 // pred_check_branch
        %161 = sbr.rel (%p158) target = $region28
      $region27: #{attention_forward.8} parent=5 // pred_region
        %s162 = ssub.s32 %s13, 1
        %s163 = sand.u32 %s26, 1
        %s164 = scalar_lea.sflag [#allocation4], %s163
        %s165 = sand.u32 %s26, 1
        %s166 = smul.addr %s165, 64
        %s167 = scalar_lea.vmem [#allocation3], %s166
        // Predicated region
        $region29: #{attention_forward.8} parent=27 // pred_check
          %p168 = pneg %p39
        $region30: #{attention_forward.8} parent=27 // pred_check_branch
          %170 = sbr.rel (%p168) target = $region32
        $region31: #{attention_forward.8} parent=27 // pred_region
          %172 = dma.done %s164, 1024
        $region32: #{attention_forward.8} parent=27 // pred_fallthru
          _
        %s173 = sand.u32 %s26, 1
        %s174 = scalar_lea.sflag [#allocation4], %s173
        %s175 = sand.u32 %s26, 1
        %s176 = smul.addr %s175, 64
        %s177 = scalar_lea.vmem [#allocation3], %s176
        %p178 = pneg %p39
        %p179 = pneg %p36
        %p180 = pneg %p60
        %p181 = pneg %p57
        %p182 = pneg %p86
        %p183 = pneg %p83
        %p184 = scmp.lt.s32.totalorder %s18, 1
        %s185 = scalar_select %p184, %s18, 1
        %s186 = smul.addr %s185, 4
        %s187 = smul.addr %s186, 2
        %s188 = scalar_lea.vmem %s2, %s187
        %p189 = pneg %p112
        %p190 = pneg %p109
        %p191 = scmp.lt.s32.totalorder %s18, 1
        %s192 = scalar_select %p191, %s18, 1
        %s193 = smul.addr %s192, 2
        %s194 = scalar_lea.vmem %s3, %s193
        %p195 = scmp.lt.s32.totalorder %s18, 1
        %s196 = scalar_select %p195, %s18, 1
        %s197 = smul.addr %s196, 4
        %s198 = smul.addr %s197, 2
        %s199 = scalar_lea.vmem %s2, %s198
        %p200 = scmp.lt.s32.totalorder %s18, 1
        %s201 = scalar_select %p200, %s18, 1
        %s202 = smul.addr %s201, 2
        %s203 = scalar_lea.vmem %s3, %s202
        %vm204 = vcmask 261120
        %205 = vst.msk [vmem:[#allocation2] sm:$0xff] %vm204, 0.0
        %vm206 = vcmask 254976
        %207 = vst.msk [vmem:[#allocation2 + $0x8] sm:$0x3] %vm206, 0.0
        %208 = vst.msk [vmem:[#allocation2 + $0x10] sm:$0xff] %vm204, 0.0
        %209 = vst.msk [vmem:[#allocation2 + $0x18] sm:$0x3] %vm206, 0.0
        %210 = vst.msk [vmem:[#allocation2 + $0x20] sm:$0xff] %vm204, 0.0
        %211 = vst.msk [vmem:[#allocation2 + $0x28] sm:$0x3] %vm206, 0.0
        %212 = vst.msk [vmem:[#allocation2 + $0x30] sm:$0xff] %vm204, 0.0
        %213 = vst.msk [vmem:[#allocation2 + $0x38] sm:$0x3] %vm206, 0.0
        %214 = vst.msk [vmem:[#allocation2 + $0x40] sm:$0xff] %vm204, 0.0
        %215 = vst.msk [vmem:[#allocation2 + $0x48] sm:$0x3] %vm206, 0.0
        %216 = vst.msk [vmem:[#allocation2 + $0x50] sm:$0xff] %vm204, 0.0
        %217 = vst.msk [vmem:[#allocation2 + $0x58] sm:$0x3] %vm206, 0.0
        %218 = vst.msk [vmem:[#allocation2 + $0x60] sm:$0xff] %vm204, 0.0
        %219 = vst.msk [vmem:[#allocation2 + $0x68] sm:$0x3] %vm206, 0.0
        %220 = vst.msk [vmem:[#allocation2 + $0x70] sm:$0xff] %vm204, 0.0
        %221 = vst.msk [vmem:[#allocation2 + $0x78] sm:$0x3] %vm206, 0.0
        %222 = vst.msk [vmem:[#allocation2 + $0x80] sm:$0xff] %vm204, 0.0
        %223 = vst.msk [vmem:[#allocation2 + $0x88] sm:$0x3] %vm206, 0.0
        %224 = vst.msk [vmem:[#allocation2 + $0x90] sm:$0xff] %vm204, 0.0
        %225 = vst.msk [vmem:[#allocation2 + $0x98] sm:$0x3] %vm206, 0.0
        %v226 = vld [vmem:[%s167] sm:$0xff]
        %v227 = vld [vmem:[%s167 + $0x8] sm:$0xff]
        %v228 = vld [vmem:[%s167 + $0x10] sm:$0xff]
        %v229 = vld [vmem:[%s167 + $0x18] sm:$0xff]
        %v230 = vld [vmem:[%s167 + $0x20] sm:$0xff]
        %v231 = vld [vmem:[%s167 + $0x28] sm:$0xff]
        %v232 = vld [vmem:[%s167 + $0x30] sm:$0xff]
        %v233 = vld [vmem:[%s167 + $0x38] sm:$0xff]
        %s234 = scalar_lea.vmem [#allocation2], 16
        %235 = vst.msk [vmem:[%s234 + $0x1] sm:$0xff] %vm204, %v226
        %236 = vst.msk [vmem:[%s234 + $0x11] sm:$0xff] %vm204, %v227
        %237 = vst.msk [vmem:[%s234 + $0x21] sm:$0xff] %vm204, %v228
        %238 = vst.msk [vmem:[%s234 + $0x31] sm:$0xff] %vm204, %v229
        %239 = vst.msk [vmem:[%s234 + $0x41] sm:$0xff] %vm204, %v230
        %240 = vst.msk [vmem:[%s234 + $0x51] sm:$0xff] %vm204, %v231
        %241 = vst.msk [vmem:[%s234 + $0x61] sm:$0xff] %vm204, %v232
        %242 = vst.msk [vmem:[%s234 + $0x71] sm:$0xff] %vm204, %v233
        %v243 = vld [vmem:[%s1] sm:$0xff]
        %v244 = vld [vmem:[%s1 + $0x8] sm:$0x1]
        %v245 = vld [vmem:[#allocation2] ss:$2 sm:$0xf]
        %s246 = scalar_lea.vmem [#allocation2], 32
        %v247 = vld [vmem:[%s246] ss:$2 sm:$0xf]
        %s248 = scalar_lea.vmem [#allocation2], 64
        %v249 = vld [vmem:[%s248] ss:$2 sm:$0xf]
        %s250 = scalar_lea.vmem [#allocation2], 96
        %v251 = vld [vmem:[%s250] ss:$2 sm:$0xf]
        %v252 = vperm.slane %v243, 0
        %v253 = vmul.f32 %v245, %v252
        %v254 = vmul.f32 %v247, %v252
        %v255 = vmul.f32 %v249, %v252
        %v256 = vmul.f32 %v251, %v252
        %v257 = vadd.f32 %v253, 0.0
        %v258 = vadd.f32 %v254, 0.0
        %v259 = vadd.f32 %v255, 0.0
        %v260 = vadd.f32 %v256, 0.0
        %s261 = scalar_lea.vmem [#allocation2], 1
        %v262 = vld [vmem:[%s261] ss:$2 sm:$0xf]
        %s263 = scalar_lea.vmem [#allocation2], 33
        %v264 = vld [vmem:[%s263] ss:$2 sm:$0xf]
        %s265 = scalar_lea.vmem [#allocation2], 65
        %v266 = vld [vmem:[%s265] ss:$2 sm:$0xf]
        %s267 = scalar_lea.vmem [#allocation2], 97
        %v268 = vld [vmem:[%s267] ss:$2 sm:$0xf]
        %v269 = vperm.slane %v243, 1
        %v270 = vmul.f32 %v262, %v269
        %v271 = vmul.f32 %v264, %v269
        %v272 = vmul.f32 %v266, %v269
        %v273 = vmul.f32 %v268, %v269
        %v274 = vadd.f32 %v257, %v270
        %v275 = vadd.f32 %v258, %v271
        %v276 = vadd.f32 %v259, %v272
        %v277 = vadd.f32 %v260, %v273
        %s278 = scalar_lea.vmem [#allocation2], 2
        %v279 = vld [vmem:[%s278] ss:$2 sm:$0xf]
        %s280 = scalar_lea.vmem [#allocation2], 34
        %v281 = vld [vmem:[%s280] ss:$2 sm:$0xf]
        %s282 = scalar_lea.vmem [#allocation2], 66
        %v283 = vld [vmem:[%s282] ss:$2 sm:$0xf]
        %s284 = scalar_lea.vmem [#allocation2], 98
        %v285 = vld [vmem:[%s284] ss:$2 sm:$0xf]
        %v286 = vperm.slane %v243, 2
        %v287 = vmul.f32 %v279, %v286
        %v288 = vmul.f32 %v281, %v286
        %v289 = vmul.f32 %v283, %v286
        %v290 = vmul.f32 %v285, %v286
        %v291 = vadd.f32 %v274, %v287
        %v292 = vadd.f32 %v275, %v288
        %v293 = vadd.f32 %v276, %v289
        %v294 = vadd.f32 %v277, %v290
        %v295 = vld [vmem:[%s234] ss:$2 sm:$0xf]
        %s296 = scalar_lea.vmem %s234, 32 [#allocation2]
        %v297 = vld [vmem:[%s296] ss:$2 sm:$0xf]
        %s298 = scalar_lea.vmem %s234, 64 [#allocation2]
        %v299 = vld [vmem:[%s298] ss:$2 sm:$0xf]
        %s300 = scalar_lea.vmem %s234, 96 [#allocation2]
        %v301 = vld [vmem:[%s300] ss:$2 sm:$0xf]
        %v302 = vperm.slane %v243, 3
        %v303 = vmul.f32 %v295, %v302
        %v304 = vmul.f32 %v297, %v302
        %v305 = vmul.f32 %v299, %v302
        %v306 = vmul.f32 %v301, %v302
        %v307 = vadd.f32 %v291, %v303
        %v308 = vadd.f32 %v292, %v304
        %v309 = vadd.f32 %v293, %v305
        %v310 = vadd.f32 %v294, %v306
        %s311 = scalar_lea.vmem %s234, 1 [#allocation2]
        %v312 = vld [vmem:[%s311] ss:$2 sm:$0xf]
        %s313 = scalar_lea.vmem %s234, 33 [#allocation2]
        %v314 = vld [vmem:[%s313] ss:$2 sm:$0xf]
        %s315 = scalar_lea.vmem %s234, 65 [#allocation2]
        %v316 = vld [vmem:[%s315] ss:$2 sm:$0xf]
        %s317 = scalar_lea.vmem %s234, 97 [#allocation2]
        %v318 = vld [vmem:[%s317] ss:$2 sm:$0xf]
        %v319 = vperm.slane %v243, 4
        %v320 = vmul.f32 %v312, %v319
        %v321 = vmul.f32 %v314, %v319
        %v322 = vmul.f32 %v316, %v319
        %v323 = vmul.f32 %v318, %v319
        %v324 = vadd.f32 %v307, %v320
        %v325 = vadd.f32 %v308, %v321
        %v326 = vadd.f32 %v309, %v322
        %v327 = vadd.f32 %v310, %v323
        %s328 = scalar_lea.vmem %s234, 2 [#allocation2]
        %v329 = vld [vmem:[%s328] ss:$2 sm:$0xf]
        %s330 = scalar_lea.vmem %s234, 34 [#allocation2]
        %v331 = vld [vmem:[%s330] ss:$2 sm:$0xf]
        %s332 = scalar_lea.vmem %s234, 66 [#allocation2]
        %v333 = vld [vmem:[%s332] ss:$2 sm:$0xf]
        %s334 = scalar_lea.vmem %s234, 98 [#allocation2]
        %v335 = vld [vmem:[%s334] ss:$2 sm:$0xf]
        %v336 = vperm.slane %v243, 5
        %v337 = vmul.f32 %v329, %v336
        %v338 = vmul.f32 %v331, %v336
        %v339 = vmul.f32 %v333, %v336
        %v340 = vmul.f32 %v335, %v336
        %v341 = vadd.f32 %v324, %v337
        %v342 = vadd.f32 %v325, %v338
        %v343 = vadd.f32 %v326, %v339
        %v344 = vadd.f32 %v327, %v340
        %s345 = scalar_lea.vmem [#allocation2], 32
        %v346 = vld [vmem:[%s345] ss:$2 sm:$0xf]
        %s347 = scalar_lea.vmem %s345, 32 [#allocation2]
        %v348 = vld [vmem:[%s347] ss:$2 sm:$0xf]
        %s349 = scalar_lea.vmem %s345, 64 [#allocation2]
        %v350 = vld [vmem:[%s349] ss:$2 sm:$0xf]
        %s351 = scalar_lea.vmem %s345, 96 [#allocation2]
        %v352 = vld [vmem:[%s351] ss:$2 sm:$0xf]
        %v353 = vperm.slane %v243, 6
        %v354 = vmul.f32 %v346, %v353
        %v355 = vmul.f32 %v348, %v353
        %v356 = vmul.f32 %v350, %v353
        %v357 = vmul.f32 %v352, %v353
        %v358 = vadd.f32 %v341, %v354
        %v359 = vadd.f32 %v342, %v355
        %v360 = vadd.f32 %v343, %v356
        %v361 = vadd.f32 %v344, %v357
        %s362 = scalar_lea.vmem %s345, 1 [#allocation2]
        %v363 = vld [vmem:[%s362] ss:$2 sm:$0xf]
        %s364 = scalar_lea.vmem %s345, 33 [#allocation2]
        %v365 = vld [vmem:[%s364] ss:$2 sm:$0xf]
        %s366 = scalar_lea.vmem %s345, 65 [#allocation2]
        %v367 = vld [vmem:[%s366] ss:$2 sm:$0xf]
        %s368 = scalar_lea.vmem %s345, 97 [#allocation2]
        %v369 = vld [vmem:[%s368] ss:$2 sm:$0xf]
        %v370 = vperm.slane %v243, 7
        %v371 = vmul.f32 %v363, %v370
        %v372 = vmul.f32 %v365, %v370
        %v373 = vmul.f32 %v367, %v370
        %v374 = vmul.f32 %v369, %v370
        %v375 = vadd.f32 %v358, %v371
        %v376 = vadd.f32 %v359, %v372
        %v377 = vadd.f32 %v360, %v373
        %v378 = vadd.f32 %v361, %v374
        %s379 = scalar_lea.vmem %s345, 2 [#allocation2]
        %v380 = vld [vmem:[%s379] ss:$2 sm:$0xf]
        %s381 = scalar_lea.vmem %s345, 34 [#allocation2]
        %v382 = vld [vmem:[%s381] ss:$2 sm:$0xf]
        %s383 = scalar_lea.vmem %s345, 66 [#allocation2]
        %v384 = vld [vmem:[%s383] ss:$2 sm:$0xf]
        %s385 = scalar_lea.vmem %s345, 98 [#allocation2]
        %v386 = vld [vmem:[%s385] ss:$2 sm:$0xf]
        %v387 = vperm.slane %v244, 0
        %v388 = vmul.f32 %v380, %v387
        %v389 = vmul.f32 %v382, %v387
        %v390 = vmul.f32 %v384, %v387
        %v391 = vmul.f32 %v386, %v387
        %v392 = vadd.f32 %v375, %v388
        %v393 = vadd.f32 %v376, %v389
        %v394 = vadd.f32 %v377, %v390
        %v395 = vadd.f32 %v378, %v391
        %v396 = vpack.c.bf16 %v392, %v392
        %v397 = vpack.c.bf16 %v393, %v393
        %v398 = vpack.c.bf16 %v394, %v394
        %v399 = vpack.c.bf16 %v395, %v395
        %400 = vst.msk [vmem:[%s199] sm:$0x3] %vm206, %v396
        %401 = vst.msk [vmem:[%s199 + $0x2] sm:$0x3] %vm206, %v397
        %402 = vst.msk [vmem:[%s199 + $0x4] sm:$0x3] %vm206, %v398
        %403 = vst.msk [vmem:[%s199 + $0x6] sm:$0x3] %vm206, %v399
        %408 = vst [vmem:[#allocation1] ss:$2 sm:$0xff] %v392
        %s409 = scalar_lea.vmem [#allocation1], 1
        %410 = vst [vmem:[%s409] ss:$2 sm:$0xff] %v393
        %s411 = scalar_lea.vmem [#allocation1], 16
        %412 = vst [vmem:[%s411] ss:$2 sm:$0xff] %v394
        %s413 = scalar_lea.vmem [#allocation1], 17
        %414 = vst [vmem:[%s413] ss:$2 sm:$0xff] %v395
        %v415 = vld.sshfl [vmem:[#allocation1] sm:$0xff pattern:$0x75316420]
        %v416 = vld.sshfl [vmem:[#allocation1 + $0x10] sm:$0xff pattern:$0x75316420]
        %v419 = vsel %vm204, %v415, 0.0
        %v420 = vsel %vm204, %v416, 0.0
        %v421 = vadd.f32 %v419, %v420
        %v422 = vrot.slane %v421, 4
        %v423 = vadd.f32 %v421, %v422
        %v424 = vrot.slane %v423, 2
        %v425 = vadd.f32 %v423, %v424
        %v426 = vrot.slane %v425, 1
        %v427 = vadd.f32 %v425, %v426
        %v428 = vmul.f32 %v392, %v392
        %v429 = vmul.f32 %v393, %v393
        %v430 = vmul.f32 %v394, %v394
        %v431 = vmul.f32 %v395, %v395
        %436 = vst [vmem:[#allocation1] ss:$2 sm:$0xff] %v428
        %s437 = scalar_lea.vmem [#allocation1], 1
        %438 = vst [vmem:[%s437] ss:$2 sm:$0xff] %v429
        %s439 = scalar_lea.vmem [#allocation1], 16
        %440 = vst [vmem:[%s439] ss:$2 sm:$0xff] %v430
        %s441 = scalar_lea.vmem [#allocation1], 17
        %442 = vst [vmem:[%s441] ss:$2 sm:$0xff] %v431
        %v443 = vld.sshfl [vmem:[#allocation1] sm:$0xff pattern:$0x75316420]
        %v444 = vld.sshfl [vmem:[#allocation1 + $0x10] sm:$0xff pattern:$0x75316420]
        %v447 = vsel %vm204, %v443, 0.0
        %v448 = vsel %vm204, %v444, 0.0
        %v449 = vadd.f32 %v447, %v448
        %v450 = vrot.slane %v449, 4
        %v451 = vadd.f32 %v449, %v450
        %v452 = vrot.slane %v451, 2
        %v453 = vadd.f32 %v451, %v452
        %v454 = vrot.slane %v453, 1
        %v455 = vadd.f32 %v453, %v454
        %vm456 = vcmask 1040384
        %v457 = vsel %vm456, %v427, %v455
        %458 = vst.msk [vmem:[%s203] sm:$0x3] %vm206, %v457
        %p459 = scmp.lt.s32.totalorder %s18, 1
        %s460 = scalar_select %p459, %s18, 1
        %s461 = smul.addr %s460, 4
        %s462 = smul.addr %s461, 2
        %s463 = scalar_lea.vmem %s2, %s462
        %p464 = scmp.lt.s32.totalorder %s18, 1
        %s465 = scalar_select %p464, %s18, 1
        %s466 = smul.addr %s465, 2
        %s467 = scalar_lea.vmem %s3, %s466
        // Predicated region
        $region33: #{attention_forward.8} parent=27 // pred_check
          %p468 = pneg %p83
        $region34: #{attention_forward.8} parent=27 // pred_check_branch
          %470 = sbr.rel (%p468) target = $region36
        $region35: #{attention_forward.8} parent=27 // pred_region
          _
        $region36: #{attention_forward.8} parent=27 // pred_fallthru
          _
        // Predicated region
        $region37: #{attention_forward.8} parent=27 // pred_check
          %p471 = pneg %p109
        $region38: #{attention_forward.8} parent=27 // pred_check_branch
          %473 = sbr.rel (%p471) target = $region40
        $region39: #{attention_forward.8} parent=27 // pred_region
          _
        $region40: #{attention_forward.8} parent=27 // pred_fallthru
          _
      $region28: #{attention_forward.8} parent=5 // pred_fallthru
        _
      %p474 = scmp.le.s32.totalorder 2, %s13
      // Predicated region
      $region41: #{attention_forward.8} parent=5 // pred_check
        %p475 = pneg %p474
      $region42: #{attention_forward.8} parent=5 // pred_check_branch
        %477 = sbr.rel (%p475) target = $region44
      $region43: #{attention_forward.8} parent=5 // pred_region
        %s478 = ssub.s32 %s13, 2
        // Predicated region
        $region45: #{attention_forward.8} parent=43 // pred_check
          %p479 = pneg %p89
        $region46: #{attention_forward.8} parent=43 // pred_check_branch
          %481 = sbr.rel (%p479) target = $region48
        $region47: #{attention_forward.8} parent=43 // pred_region
          %p482 = scmp.lt.s32.totalorder %s19, 1
          %s483 = scalar_select %p482, %s19, 1
          %s484 = smul.addr %s483, 4
          %s485 = smul.addr %s484, 2
          %s486 = scalar_lea.vmem %s2, %s485
        $region48: #{attention_forward.8} parent=43 // pred_fallthru
          _
        // Predicated region
        $region49: #{attention_forward.8} parent=43 // pred_check
          %p487 = pneg %p115
        $region50: #{attention_forward.8} parent=43 // pred_check_branch
          %489 = sbr.rel (%p487) target = $region52
        $region51: #{attention_forward.8} parent=43 // pred_region
          %p490 = scmp.lt.s32.totalorder %s19, 1
          %s491 = scalar_select %p490, %s19, 1
          %s492 = smul.addr %s491, 2
          %s493 = scalar_lea.vmem %s3, %s492
        $region52: #{attention_forward.8} parent=43 // pred_fallthru
          _
      $region44: #{attention_forward.8} parent=5 // pred_fallthru
        _
    $region6: #{attention_forward.8} parent=1 // loop_footer
      %s17 = sadd.s32 1, %s13
    $region7: #{attention_forward.8} parent=1 // loop_footer_branch
      %12 = sbr.rel target = $region3
    $region8: #{attention_forward.8} parent=1 // loop_exit
      _
    %494 = vsyncpa [#allocation4], 1
    %s495 = scalar_lea.sflag [#allocation4], 1
    %496 = vsyncpa %s495, 1

// kernel: attention_forward.9
$region0: #{attention_forward.9}
  #allocation0 [shape = 'u32[]', space=smem, size = 0x4, offset = 0x4, fixed_abs, tag = 'smem constant byte address 0x4 - core index']
  #allocation1 [shape = 'u32[72,128]{1,0:T(1,128)}', space=vmem, size = 0x9000, scoped, tag = 'internal scratch']
  %s0 = inlined_call_operand.vmem [shape: bf16[32,32], index: 0, kind: input, shape index: {}]
  %s1 = inlined_call_operand.vmem [shape: bf16[32,64], index: 1, kind: input, shape index: {}]
  %s2 = inlined_call_operand.vmem [shape: f32[1,64], index: 2, kind: input, shape index: {}]
  %s3 = inlined_call_operand.vmem [shape: bf16[32,64], index: 3, kind: output, shape index: {}]
  %s4 = sld [smem:[#allocation0]]
  $region22: #{attention_forward.9} parent=0
    _
  %s6 = ssub.s32 1, %s4
  %s7 = scalar_select 0, %s6, %s4
  // Predicated region
  $region2: #{attention_forward.9} parent=0 // pred_check
    _
  $region3: #{attention_forward.9} parent=0 // pred_check_branch
    %9 = sbr.rel (0) target = $region5
  $region4: #{attention_forward.9} parent=0 // pred_region
    _
  $region5: #{attention_forward.9} parent=0 // pred_fallthru
    _
  // Predicated region
  $region6: #{attention_forward.9} parent=0 // pred_check
    _
  $region7: #{attention_forward.9} parent=0 // pred_check_branch
    %11 = sbr.rel (0) target = $region9
  $region8: #{attention_forward.9} parent=0 // pred_region
    _
  $region9: #{attention_forward.9} parent=0 // pred_fallthru
    _
  // Predicated region
  $region10: #{attention_forward.9} parent=0 // pred_check
    _
  $region11: #{attention_forward.9} parent=0 // pred_check_branch
    %13 = sbr.rel (0) target = $region13
  $region12: #{attention_forward.9} parent=0 // pred_region
    _
  $region13: #{attention_forward.9} parent=0 // pred_fallthru
    _
  %v15 = vld [vmem:[%s0] sm:$0xf]
  %v16 = vld [vmem:[%s0 + $0x4] sm:$0xf]
  %v17 = vld [vmem:[%s0 + $0x8] sm:$0xf]
  %v18 = vld [vmem:[%s0 + $0xc] sm:$0xf]
  %v19 = vld [vmem:[%s1] sm:$0xf]
  %v20 = vld [vmem:[%s1 + $0x4] sm:$0xf]
  %v21 = vld [vmem:[%s1 + $0x8] sm:$0xf]
  %v22 = vld [vmem:[%s1 + $0xc] sm:$0xf]
  %v23 = vld [vmem:[%s2] sm:$0x1]
  %v25 = vperm.slane %v23, 0
  %v31 = vunpack.c.l.b16 %v15
  %v32 = vunpack.c.l.b16 %v16
  %v33 = vunpack.c.l.b16 %v17
  %v34 = vunpack.c.l.b16 %v18
  %v35 = vpack.c.b16 %v32, %v31
  %v36 = vpack.c.b16 %v34, %v33
  %v41 = vunpack.c.l.b16 %v19
  %v42 = vunpack.c.l.b16 %v20
  %v43 = vunpack.c.l.b16 %v21
  %v44 = vunpack.c.l.b16 %v22
  %v45 = vpack.c.b16 %v42, %v41
  %v46 = vpack.c.b16 %v44, %v43
  %vm49 = vcmask 261120
  %v51 = vsel %vm49, %v35, 0
  %v54 = vsel %vm49, %v36, 0
  %56 = vmatpush.bf16.msra.mxu0 0
  %57 = vmatpush.bf16.msra.mxu0 0
  %58 = vmatpush.bf16.msra.mxu0 0
  %59 = vmatpush.bf16.msra.mxu0 0
  %60 = vmatpush.bf16.msra.mxu0 0
  %61 = vmatpush.bf16.msra.mxu0 0
  %62 = vmatpush.bf16.msra.mxu0 %v46
  %63 = vmatpush.bf16.msra.mxu0 %v45
  %64 = vmatmul.bf16.gmra.mxu0 %v51
  %v65 = vpop.f32.mrf.mxu0
  %v66 = vadd.f32 %v25, %v65
  %v67 = vpop.f32.mrf.mxu0
  %v68 = vadd.f32 %v25, %v67
  %69 = vmatmul.bf16.gmra.mxu0 %v54
  %v70 = vpop.f32.mrf.mxu0
  %v71 = vadd.f32 %v25, %v70
  %v72 = vpop.f32.mrf.mxu0
  %v73 = vadd.f32 %v25, %v72
  %74 = vdwg.mxu0
  %v75 = vpack.c.bf16 %v66, %v66
  %v76 = vpack.c.bf16 %v68, %v68
  %v77 = vpack.c.bf16 %v71, %v71
  %v78 = vpack.c.bf16 %v73, %v73
  %vm79 = vcmask 519168
  %80 = vst.msk [vmem:[%s3] sm:$0xf] %vm79, %v75
  %81 = vst.msk [vmem:[%s3 + $0x4] sm:$0xf] %vm79, %v76
  %82 = vst.msk [vmem:[%s3 + $0x8] sm:$0xf] %vm79, %v77
  %83 = vst.msk [vmem:[%s3 + $0xc] sm:$0xf] %vm79, %v78
  // Predicated region
  $region14: #{attention_forward.9} parent=0 // pred_check
    _
  $region15: #{attention_forward.9} parent=0 // pred_check_branch
    %85 = sbr.rel (0) target = $region17
  $region16: #{attention_forward.9} parent=0 // pred_region
    _
  $region17: #{attention_forward.9} parent=0 // pred_fallthru
    _
  // Predicated region
  $region18: #{attention_forward.9} parent=0 // pred_check
    _
  $region19: #{attention_forward.9} parent=0 // pred_check_branch
    %87 = sbr.rel (0) target = $region21
  $region20: #{attention_forward.9} parent=0 // pred_region
    _
  $region21: #{attention_forward.9} parent=0 // pred_fallthru
    _

// kernel: attention_forward.6
$region0: #{attention_forward.6}
  #allocation0 [shape = 'u32[]', space=smem, size = 0x4, offset = 0x4, fixed_abs, tag = 'smem constant byte address 0x4 - core index']
  #allocation1 [shape = 'u32[72,128]{1,0:T(1,128)}', space=vmem, size = 0x9000, scoped, tag = 'internal scratch']
  #allocation2 [shape = 'f32[10,10,32]{2,1,0:T(8,128)}', space=vmem, size = 0x14000, scoped, tag = 'scratch operand']
  %s0 = inlined_call_operand.hbm [shape: f32[2,8,8,32], index: 0, kind: input, shape index: {}]
  %s1 = inlined_call_operand.vmem [shape: f32[9,32], index: 1, kind: input, shape index: {}]
  %s2 = inlined_call_operand.vmem [shape: bf16[2,8,8,32], index: 2, kind: output, shape index: {0}]
  %s3 = inlined_call_operand.vmem [shape: f32[2,2,32], index: 3, kind: output, shape index: {1}]
  %4 = xla_tuple %s2, %s3
  %s5 = sld [smem:[#allocation0]]
  $region53: #{attention_forward.6} parent=0
    _
  %s7 = ssub.s32 1, %s5
  %s8 = scalar_select 0, %s7, %s5
  $region1: #{attention_forward.6} parent=0
    #allocation3 [shape = 'u8[65536]{0}', space=vmem, size = 0x10000, scoped, tag = 'input window, operand 0']
    #allocation4 [shape = 's32[2]{0}', space=sflag, size = 0x8, scoped, tag = 'scoped memory for attention_forward.6']
    %9 = vsyncpa [#allocation4], 0
    %s10 = scalar_lea.sflag [#allocation4], 1
    %11 = vsyncpa %s10, 0
    loop: start=0, step=1, limit=4
    $region2: #{attention_forward.6} parent=1 // loop_pre_header
      _
    $region3: #{attention_forward.6} parent=1 // loop_header
      %s13 = sphi 0, %s17
      %p14 = scmp.ge.s32.totalorder %s13, 4
      %s23 = sphi 0, %s25
      %s26 = sphi 0, %s23
      %s27 = sphi 0, %s26
      %s43 = sphi 0, %s27
      %s47 = sphi 0, %s47
      %s49 = sphi 0, %s47
      %s50 = sphi 0, %s49
      %s64 = sphi 0, %s50
      %s70 = sphi 0, %s72
      %s73 = sphi 0, %s70
      %s74 = sphi 0, %s73
      %s90 = sphi 0, %s74
      %s96 = sphi 0, %s98
      %s99 = sphi 0, %s96
      %s100 = sphi 0, %s99
      %s116 = sphi 0, %s100
    $region4: #{attention_forward.6} parent=1 // loop_header_branch
      %16 = sbr.rel (%p14) target = $region8
    $region5: #{attention_forward.6} parent=1 // loop_body
      %s18 = ssub.s32 %s13, 1
      %s19 = ssub.s32 %s13, 2
      %s20 = sadd.s32 %s13, 1
      %s21 = ssub.s32 %s13, %s20
      %p22 = scmp.eq.s32.totalorder %s21, 0
      %s24 = sadd.s32 %s23, 1
      %s25 = scalar_select %p22, %s23, %s24
      %p28 = pneg %p22
      %p29 = scmp.eq.s32.totalorder %s13, 1
      %p30 = por %p28, %p29
      %p31 = scmp.ne.s32.totalorder %s23, %s26
      %p32 = scmp.eq.s32.totalorder %s13, 0
      %p33 = por %p31, %p32
      %p34 = scmp.ne.s32.totalorder %s23, %s26
      %p35 = scmp.eq.s32.totalorder %s18, 1
      %p36 = por %p34, %p35
      %p37 = scmp.ne.s32.totalorder %s26, %s27
      %p38 = scmp.eq.s32.totalorder %s18, 0
      %p39 = por %p37, %p38
      %p40 = scmp.ne.s32.totalorder %s26, %s27
      %p41 = scmp.eq.s32.totalorder %s19, 1
      %p42 = por %p40, %p41
      %p44 = scmp.ne.s32.totalorder %s27, %s43
      %p45 = scmp.eq.s32.totalorder %s19, 0
      %p46 = por %p44, %p45
      %s48 = sadd.s32 %s47, 1
      %p51 = scmp.eq.s32.totalorder %s13, 1
      %p52 = scmp.ne.s32.totalorder %s47, %s49
      %p53 = scmp.eq.s32.totalorder %s13, 0
      %p54 = por %p52, %p53
      %p55 = scmp.ne.s32.totalorder %s47, %s49
      %p56 = scmp.eq.s32.totalorder %s18, 1
      %p57 = por %p55, %p56
      %p58 = scmp.ne.s32.totalorder %s49, %s50
      %p59 = scmp.eq.s32.totalorder %s18, 0
      %p60 = por %p58, %p59
      %p61 = scmp.ne.s32.totalorder %s49, %s50
      %p62 = scmp.eq.s32.totalorder %s19, 1
      %p63 = por %p61, %p62
      %p65 = scmp.ne.s32.totalorder %s50, %s64
      %p66 = scmp.eq.s32.totalorder %s19, 0
      %p67 = por %p65, %p66
      %s68 = ssub.s32 %s13, %s20
      %p69 = scmp.eq.s32.totalorder %s68, 0
      %s71 = sadd.s32 %s70, 1
      %s72 = scalar_select %p69, %s70, %s71
      %p75 = pneg %p69
      %p76 = scmp.eq.s32.totalorder %s13, 1
      %p77 = por %p75, %p76
      %p78 = scmp.ne.s32.totalorder %s70, %s73
      %p79 = scmp.eq.s32.totalorder %s13, 0
      %p80 = por %p78, %p79
      %p81 = scmp.ne.s32.totalorder %s70, %s73
      %p82 = scmp.eq.s32.totalorder %s18, 1
      %p83 = por %p81, %p82
      %p84 = scmp.ne.s32.totalorder %s73, %s74
      %p85 = scmp.eq.s32.totalorder %s18, 0
      %p86 = por %p84, %p85
      %p87 = scmp.ne.s32.totalorder %s73, %s74
      %p88 = scmp.eq.s32.totalorder %s19, 1
      %p89 = por %p87, %p88
      %p91 = scmp.ne.s32.totalorder %s74, %s90
      %p92 = scmp.eq.s32.totalorder %s19, 0
      %p93 = por %p91, %p92
      %s94 = ssub.s32 %s13, %s20
      %p95 = scmp.eq.s32.totalorder %s94, 0
      %s97 = sadd.s32 %s96, 1
      %s98 = scalar_select %p95, %s96, %s97
      %p101 = pneg %p95
      %p102 = scmp.eq.s32.totalorder %s13, 1
      %p103 = por %p101, %p102
      %p104 = scmp.ne.s32.totalorder %s96, %s99
      %p105 = scmp.eq.s32.totalorder %s13, 0
      %p106 = por %p104, %p105
      %p107 = scmp.ne.s32.totalorder %s96, %s99
      %p108 = scmp.eq.s32.totalorder %s18, 1
      %p109 = por %p107, %p108
      %p110 = scmp.ne.s32.totalorder %s99, %s100
      %p111 = scmp.eq.s32.totalorder %s18, 0
      %p112 = por %p110, %p111
      %p113 = scmp.ne.s32.totalorder %s99, %s100
      %p114 = scmp.eq.s32.totalorder %s19, 1
      %p115 = por %p113, %p114
      %p117 = scmp.ne.s32.totalorder %s100, %s116
      %p118 = scmp.eq.s32.totalorder %s19, 0
      %p119 = por %p117, %p118
      %p120 = scmp.le.s32.totalorder 1, %s13
      %p121 = scmp.lt.s32.totalorder %s13, 3
      %p122 = pnand %p120, %p121
      %p123 = pneg %p122
      // Predicated region
      $region9: #{attention_forward.6} parent=5 // pred_check
        _
      $region10: #{attention_forward.6} parent=5 // pred_check_branch
        %125 = sbr.rel (%p122) target = $region12
      $region11: #{attention_forward.6} parent=5 // pred_region
        %s126 = ssub.s32 %s13, 1
        // Predicated region
        $region13: #{attention_forward.6} parent=11 // pred_check
          %p127 = pneg %p60
        $region14: #{attention_forward.6} parent=11 // pred_check_branch
          %129 = sbr.rel (%p127) target = $region16
        $region15: #{attention_forward.6} parent=11 // pred_region
          _
        $region16: #{attention_forward.6} parent=11 // pred_fallthru
          _
      $region12: #{attention_forward.6} parent=5 // pred_fallthru
        _
      %p130 = scmp.lt.s32.totalorder %s13, 2
      // Predicated region
      $region17: #{attention_forward.6} parent=5 // pred_check
        %p131 = pneg %p130
      $region18: #{attention_forward.6} parent=5 // pred_check_branch
        %133 = sbr.rel (%p131) target = $region20
      $region19: #{attention_forward.6} parent=5 // pred_region
        // Predicated region
        $region21: #{attention_forward.6} parent=19 // pred_check
          %p134 = pneg %p33
        $region22: #{attention_forward.6} parent=19 // pred_check_branch
          %136 = sbr.rel (%p134) target = $region24
        $region23: #{attention_forward.6} parent=19 // pred_region
          %s137 = sand.u32 %s23, 1
          %s138 = scalar_lea.sflag [#allocation4], %s137
          %s139 = sand.u32 %s23, 1
          %s140 = smul.addr %s139, 64
          %s141 = scalar_lea.vmem [#allocation3], %s140
          %143 = vsyncadd %s138, 0
          %s144 = smul.addr %s13, 8
          %s145 = smul.addr %s144, 8
          %s146 = scalar_lea.hbm %s0, %s145
          %s147 = sshll.u32 %s146, 4
          %s148 = int_to_ptr.hbm [resolvable:$true] %s147
          %s149 = sshll.u32 %s141, 4
          %s150 = int_to_ptr.vmem [resolvable:$true] %s149
          %155 = dma.hbm_to_vmem [thread:$0]  %s148, 1024, %s150, %s138, 128, 128, 8
        $region24: #{attention_forward.6} parent=19 // pred_fallthru
          _
      $region20: #{attention_forward.6} parent=5 // pred_fallthru
        _
      %p156 = scmp.le.s32.totalorder 1, %s13
      %p157 = scmp.lt.s32.totalorder %s13, 3
      %p158 = pnand %p156, %p157
      %p159 = pneg %p158
      // Predicated region
      $region25: #{attention_forward.6} parent=5 // pred_check
        _
      $region26: #{attention_forward.6} parent=5 // pred_check_branch
        %161 = sbr.rel (%p158) target = $region28
      $region27: #{attention_forward.6} parent=5 // pred_region
        %s162 = ssub.s32 %s13, 1
        %s163 = sand.u32 %s26, 1
        %s164 = scalar_lea.sflag [#allocation4], %s163
        %s165 = sand.u32 %s26, 1
        %s166 = smul.addr %s165, 64
        %s167 = scalar_lea.vmem [#allocation3], %s166
        // Predicated region
        $region29: #{attention_forward.6} parent=27 // pred_check
          %p168 = pneg %p39
        $region30: #{attention_forward.6} parent=27 // pred_check_branch
          %170 = sbr.rel (%p168) target = $region32
        $region31: #{attention_forward.6} parent=27 // pred_region
          %172 = dma.done %s164, 1024
        $region32: #{attention_forward.6} parent=27 // pred_fallthru
          _
        %s173 = sand.u32 %s26, 1
        %s174 = scalar_lea.sflag [#allocation4], %s173
        %s175 = sand.u32 %s26, 1
        %s176 = smul.addr %s175, 64
        %s177 = scalar_lea.vmem [#allocation3], %s176
        %p178 = pneg %p39
        %p179 = pneg %p36
        %p180 = pneg %p60
        %p181 = pneg %p57
        %p182 = pneg %p86
        %p183 = pneg %p83
        %p184 = scmp.lt.s32.totalorder %s18, 1
        %s185 = scalar_select %p184, %s18, 1
        %s186 = smul.addr %s185, 8
        %s187 = smul.addr %s186, 4
        %s188 = scalar_lea.vmem %s2, %s187
        %p189 = pneg %p112
        %p190 = pneg %p109
        %p191 = scmp.lt.s32.totalorder %s18, 1
        %s192 = scalar_select %p191, %s18, 1
        %s193 = smul.addr %s192, 2
        %s194 = scalar_lea.vmem %s3, %s193
        %p195 = scmp.lt.s32.totalorder %s18, 1
        %s196 = scalar_select %p195, %s18, 1
        %s197 = smul.addr %s196, 8
        %s198 = smul.addr %s197, 4
        %s199 = scalar_lea.vmem %s2, %s198
        %p200 = scmp.lt.s32.totalorder %s18, 1
        %s201 = scalar_select %p200, %s18, 1
        %s202 = smul.addr %s201, 2
        %s203 = scalar_lea.vmem %s3, %s202
        %vm204 = vcmask 261120
        %205 = vst.msk [vmem:[#allocation2] sm:$0xff] %vm204, 0.0
        %vm206 = vcmask 254976
        %207 = vst.msk [vmem:[#allocation2 + $0x8] sm:$0x3] %vm206, 0.0
        %208 = vst.msk [vmem:[#allocation2 + $0x10] sm:$0xff] %vm204, 0.0
        %209 = vst.msk [vmem:[#allocation2 + $0x18] sm:$0x3] %vm206, 0.0
        %210 = vst.msk [vmem:[#allocation2 + $0x20] sm:$0xff] %vm204, 0.0
        %211 = vst.msk [vmem:[#allocation2 + $0x28] sm:$0x3] %vm206, 0.0
        %212 = vst.msk [vmem:[#allocation2 + $0x30] sm:$0xff] %vm204, 0.0
        %213 = vst.msk [vmem:[#allocation2 + $0x38] sm:$0x3] %vm206, 0.0
        %214 = vst.msk [vmem:[#allocation2 + $0x40] sm:$0xff] %vm204, 0.0
        %215 = vst.msk [vmem:[#allocation2 + $0x48] sm:$0x3] %vm206, 0.0
        %216 = vst.msk [vmem:[#allocation2 + $0x50] sm:$0xff] %vm204, 0.0
        %217 = vst.msk [vmem:[#allocation2 + $0x58] sm:$0x3] %vm206, 0.0
        %218 = vst.msk [vmem:[#allocation2 + $0x60] sm:$0xff] %vm204, 0.0
        %219 = vst.msk [vmem:[#allocation2 + $0x68] sm:$0x3] %vm206, 0.0
        %220 = vst.msk [vmem:[#allocation2 + $0x70] sm:$0xff] %vm204, 0.0
        %221 = vst.msk [vmem:[#allocation2 + $0x78] sm:$0x3] %vm206, 0.0
        %222 = vst.msk [vmem:[#allocation2 + $0x80] sm:$0xff] %vm204, 0.0
        %223 = vst.msk [vmem:[#allocation2 + $0x88] sm:$0x3] %vm206, 0.0
        %224 = vst.msk [vmem:[#allocation2 + $0x90] sm:$0xff] %vm204, 0.0
        %225 = vst.msk [vmem:[#allocation2 + $0x98] sm:$0x3] %vm206, 0.0
        %v226 = vld [vmem:[%s167] sm:$0xff]
        %v227 = vld [vmem:[%s167 + $0x8] sm:$0xff]
        %v228 = vld [vmem:[%s167 + $0x10] sm:$0xff]
        %v229 = vld [vmem:[%s167 + $0x18] sm:$0xff]
        %v230 = vld [vmem:[%s167 + $0x20] sm:$0xff]
        %v231 = vld [vmem:[%s167 + $0x28] sm:$0xff]
        %v232 = vld [vmem:[%s167 + $0x30] sm:$0xff]
        %v233 = vld [vmem:[%s167 + $0x38] sm:$0xff]
        %s234 = scalar_lea.vmem [#allocation2], 16
        %235 = vst.msk [vmem:[%s234 + $0x1] sm:$0xff] %vm204, %v226
        %236 = vst.msk [vmem:[%s234 + $0x11] sm:$0xff] %vm204, %v227
        %237 = vst.msk [vmem:[%s234 + $0x21] sm:$0xff] %vm204, %v228
        %238 = vst.msk [vmem:[%s234 + $0x31] sm:$0xff] %vm204, %v229
        %239 = vst.msk [vmem:[%s234 + $0x41] sm:$0xff] %vm204, %v230
        %240 = vst.msk [vmem:[%s234 + $0x51] sm:$0xff] %vm204, %v231
        %241 = vst.msk [vmem:[%s234 + $0x61] sm:$0xff] %vm204, %v232
        %242 = vst.msk [vmem:[%s234 + $0x71] sm:$0xff] %vm204, %v233
        %v243 = vld [vmem:[%s1] sm:$0xff]
        %v244 = vld [vmem:[%s1 + $0x8] sm:$0x1]
        %v245 = vld [vmem:[#allocation2] sm:$0xff]
        %v246 = vld [vmem:[#allocation2 + $0x10] sm:$0xff]
        %v247 = vld [vmem:[#allocation2 + $0x20] sm:$0xff]
        %v248 = vld [vmem:[#allocation2 + $0x30] sm:$0xff]
        %v249 = vld [vmem:[#allocation2 + $0x40] sm:$0xff]
        %v250 = vld [vmem:[#allocation2 + $0x50] sm:$0xff]
        %v251 = vld [vmem:[#allocation2 + $0x60] sm:$0xff]
        %v252 = vld [vmem:[#allocation2 + $0x70] sm:$0xff]
        %v253 = vperm.slane %v243, 0
        %v254 = vmul.f32 %v245, %v253
        %v255 = vmul.f32 %v246, %v253
        %v256 = vmul.f32 %v247, %v253
        %v257 = vmul.f32 %v248, %v253
        %v258 = vmul.f32 %v249, %v253
        %v259 = vmul.f32 %v250, %v253
        %v260 = vmul.f32 %v251, %v253
        %v261 = vmul.f32 %v252, %v253
        %v262 = vadd.f32 %v254, 0.0
        %v263 = vadd.f32 %v255, 0.0
        %v264 = vadd.f32 %v256, 0.0
        %v265 = vadd.f32 %v257, 0.0
        %v266 = vadd.f32 %v258, 0.0
        %v267 = vadd.f32 %v259, 0.0
        %v268 = vadd.f32 %v260, 0.0
        %v269 = vadd.f32 %v261, 0.0
        %v270 = vld [vmem:[#allocation2 + $0x1] sm:$0xff]
        %v271 = vld [vmem:[#allocation2 + $0x11] sm:$0xff]
        %v272 = vld [vmem:[#allocation2 + $0x21] sm:$0xff]
        %v273 = vld [vmem:[#allocation2 + $0x31] sm:$0xff]
        %v274 = vld [vmem:[#allocation2 + $0x41] sm:$0xff]
        %v275 = vld [vmem:[#allocation2 + $0x51] sm:$0xff]
        %v276 = vld [vmem:[#allocation2 + $0x61] sm:$0xff]
        %v277 = vld [vmem:[#allocation2 + $0x71] sm:$0xff]
        %v278 = vperm.slane %v243, 1
        %v279 = vmul.f32 %v270, %v278
        %v280 = vmul.f32 %v271, %v278
        %v281 = vmul.f32 %v272, %v278
        %v282 = vmul.f32 %v273, %v278
        %v283 = vmul.f32 %v274, %v278
        %v284 = vmul.f32 %v275, %v278
        %v285 = vmul.f32 %v276, %v278
        %v286 = vmul.f32 %v277, %v278
        %v287 = vadd.f32 %v262, %v279
        %v288 = vadd.f32 %v263, %v280
        %v289 = vadd.f32 %v264, %v281
        %v290 = vadd.f32 %v265, %v282
        %v291 = vadd.f32 %v266, %v283
        %v292 = vadd.f32 %v267, %v284
        %v293 = vadd.f32 %v268, %v285
        %v294 = vadd.f32 %v269, %v286
        %v295 = vld [vmem:[#allocation2 + $0x2] sm:$0xff]
        %v296 = vld [vmem:[#allocation2 + $0x12] sm:$0xff]
        %v297 = vld [vmem:[#allocation2 + $0x22] sm:$0xff]
        %v298 = vld [vmem:[#allocation2 + $0x32] sm:$0xff]
        %v299 = vld [vmem:[#allocation2 + $0x42] sm:$0xff]
        %v300 = vld [vmem:[#allocation2 + $0x52] sm:$0xff]
        %v301 = vld [vmem:[#allocation2 + $0x62] sm:$0xff]
        %v302 = vld [vmem:[#allocation2 + $0x72] sm:$0xff]
        %v303 = vperm.slane %v243, 2
        %v304 = vmul.f32 %v295, %v303
        %v305 = vmul.f32 %v296, %v303
        %v306 = vmul.f32 %v297, %v303
        %v307 = vmul.f32 %v298, %v303
        %v308 = vmul.f32 %v299, %v303
        %v309 = vmul.f32 %v300, %v303
        %v310 = vmul.f32 %v301, %v303
        %v311 = vmul.f32 %v302, %v303
        %v312 = vadd.f32 %v287, %v304
        %v313 = vadd.f32 %v288, %v305
        %v314 = vadd.f32 %v289, %v306
        %v315 = vadd.f32 %v290, %v307
        %v316 = vadd.f32 %v291, %v308
        %v317 = vadd.f32 %v292, %v309
        %v318 = vadd.f32 %v293, %v310
        %v319 = vadd.f32 %v294, %v311
        %v320 = vld [vmem:[%s234] sm:$0xff]
        %v321 = vld [vmem:[%s234 + $0x10] sm:$0xff]
        %v322 = vld [vmem:[%s234 + $0x20] sm:$0xff]
        %v323 = vld [vmem:[%s234 + $0x30] sm:$0xff]
        %v324 = vld [vmem:[%s234 + $0x40] sm:$0xff]
        %v325 = vld [vmem:[%s234 + $0x50] sm:$0xff]
        %v326 = vld [vmem:[%s234 + $0x60] sm:$0xff]
        %v327 = vld [vmem:[%s234 + $0x70] sm:$0xff]
        %v328 = vperm.slane %v243, 3
        %v329 = vmul.f32 %v320, %v328
        %v330 = vmul.f32 %v321, %v328
        %v331 = vmul.f32 %v322, %v328
        %v332 = vmul.f32 %v323, %v328
        %v333 = vmul.f32 %v324, %v328
        %v334 = vmul.f32 %v325, %v328
        %v335 = vmul.f32 %v326, %v328
        %v336 = vmul.f32 %v327, %v328
        %v337 = vadd.f32 %v312, %v329
        %v338 = vadd.f32 %v313, %v330
        %v339 = vadd.f32 %v314, %v331
        %v340 = vadd.f32 %v315, %v332
        %v341 = vadd.f32 %v316, %v333
        %v342 = vadd.f32 %v317, %v334
        %v343 = vadd.f32 %v318, %v335
        %v344 = vadd.f32 %v319, %v336
        %v345 = vld [vmem:[%s234 + $0x1] sm:$0xff]
        %v346 = vld [vmem:[%s234 + $0x11] sm:$0xff]
        %v347 = vld [vmem:[%s234 + $0x21] sm:$0xff]
        %v348 = vld [vmem:[%s234 + $0x31] sm:$0xff]
        %v349 = vld [vmem:[%s234 + $0x41] sm:$0xff]
        %v350 = vld [vmem:[%s234 + $0x51] sm:$0xff]
        %v351 = vld [vmem:[%s234 + $0x61] sm:$0xff]
        %v352 = vld [vmem:[%s234 + $0x71] sm:$0xff]
        %v353 = vperm.slane %v243, 4
        %v354 = vmul.f32 %v345, %v353
        %v355 = vmul.f32 %v346, %v353
        %v356 = vmul.f32 %v347, %v353
        %v357 = vmul.f32 %v348, %v353
        %v358 = vmul.f32 %v349, %v353
        %v359 = vmul.f32 %v350, %v353
        %v360 = vmul.f32 %v351, %v353
        %v361 = vmul.f32 %v352, %v353
        %v362 = vadd.f32 %v337, %v354
        %v363 = vadd.f32 %v338, %v355
        %v364 = vadd.f32 %v339, %v356
        %v365 = vadd.f32 %v340, %v357
        %v366 = vadd.f32 %v341, %v358
        %v367 = vadd.f32 %v342, %v359
        %v368 = vadd.f32 %v343, %v360
        %v369 = vadd.f32 %v344, %v361
        %v370 = vld [vmem:[%s234 + $0x2] sm:$0xff]
        %v371 = vld [vmem:[%s234 + $0x12] sm:$0xff]
        %v372 = vld [vmem:[%s234 + $0x22] sm:$0xff]
        %v373 = vld [vmem:[%s234 + $0x32] sm:$0xff]
        %v374 = vld [vmem:[%s234 + $0x42] sm:$0xff]
        %v375 = vld [vmem:[%s234 + $0x52] sm:$0xff]
        %v376 = vld [vmem:[%s234 + $0x62] sm:$0xff]
        %v377 = vld [vmem:[%s234 + $0x72] sm:$0xff]
        %v378 = vperm.slane %v243, 5
        %v379 = vmul.f32 %v370, %v378
        %v380 = vmul.f32 %v371, %v378
        %v381 = vmul.f32 %v372, %v378
        %v382 = vmul.f32 %v373, %v378
        %v383 = vmul.f32 %v374, %v378
        %v384 = vmul.f32 %v375, %v378
        %v385 = vmul.f32 %v376, %v378
        %v386 = vmul.f32 %v377, %v378
        %v387 = vadd.f32 %v362, %v379
        %v388 = vadd.f32 %v363, %v380
        %v389 = vadd.f32 %v364, %v381
        %v390 = vadd.f32 %v365, %v382
        %v391 = vadd.f32 %v366, %v383
        %v392 = vadd.f32 %v367, %v384
        %v393 = vadd.f32 %v368, %v385
        %v394 = vadd.f32 %v369, %v386
        %s395 = scalar_lea.vmem [#allocation2], 32
        %v396 = vld [vmem:[%s395] sm:$0xff]
        %v397 = vld [vmem:[%s395 + $0x10] sm:$0xff]
        %v398 = vld [vmem:[%s395 + $0x20] sm:$0xff]
        %v399 = vld [vmem:[%s395 + $0x30] sm:$0xff]
        %v400 = vld [vmem:[%s395 + $0x40] sm:$0xff]
        %v401 = vld [vmem:[%s395 + $0x50] sm:$0xff]
        %v402 = vld [vmem:[%s395 + $0x60] sm:$0xff]
        %v403 = vld [vmem:[%s395 + $0x70] sm:$0xff]
        %v404 = vperm.slane %v243, 6
        %v405 = vmul.f32 %v396, %v404
        %v406 = vmul.f32 %v397, %v404
        %v407 = vmul.f32 %v398, %v404
        %v408 = vmul.f32 %v399, %v404
        %v409 = vmul.f32 %v400, %v404
        %v410 = vmul.f32 %v401, %v404
        %v411 = vmul.f32 %v402, %v404
        %v412 = vmul.f32 %v403, %v404
        %v413 = vadd.f32 %v387, %v405
        %v414 = vadd.f32 %v388, %v406
        %v415 = vadd.f32 %v389, %v407
        %v416 = vadd.f32 %v390, %v408
        %v417 = vadd.f32 %v391, %v409
        %v418 = vadd.f32 %v392, %v410
        %v419 = vadd.f32 %v393, %v411
        %v420 = vadd.f32 %v394, %v412
        %v421 = vld [vmem:[%s395 + $0x1] sm:$0xff]
        %v422 = vld [vmem:[%s395 + $0x11] sm:$0xff]
        %v423 = vld [vmem:[%s395 + $0x21] sm:$0xff]
        %v424 = vld [vmem:[%s395 + $0x31] sm:$0xff]
        %v425 = vld [vmem:[%s395 + $0x41] sm:$0xff]
        %v426 = vld [vmem:[%s395 + $0x51] sm:$0xff]
        %v427 = vld [vmem:[%s395 + $0x61] sm:$0xff]
        %v428 = vld [vmem:[%s395 + $0x71] sm:$0xff]
        %v429 = vperm.slane %v243, 7
        %v430 = vmul.f32 %v421, %v429
        %v431 = vmul.f32 %v422, %v429
        %v432 = vmul.f32 %v423, %v429
        %v433 = vmul.f32 %v424, %v429
        %v434 = vmul.f32 %v425, %v429
        %v435 = vmul.f32 %v426, %v429
        %v436 = vmul.f32 %v427, %v429
        %v437 = vmul.f32 %v428, %v429
        %v438 = vadd.f32 %v413, %v430
        %v439 = vadd.f32 %v414, %v431
        %v440 = vadd.f32 %v415, %v432
        %v441 = vadd.f32 %v416, %v433
        %v442 = vadd.f32 %v417, %v434
        %v443 = vadd.f32 %v418, %v435
        %v444 = vadd.f32 %v419, %v436
        %v445 = vadd.f32 %v420, %v437
        %v446 = vld [vmem:[%s395 + $0x2] sm:$0xff]
        %v447 = vld [vmem:[%s395 + $0x12] sm:$0xff]
        %v448 = vld [vmem:[%s395 + $0x22] sm:$0xff]
        %v449 = vld [vmem:[%s395 + $0x32] sm:$0xff]
        %v450 = vld [vmem:[%s395 + $0x42] sm:$0xff]
        %v451 = vld [vmem:[%s395 + $0x52] sm:$0xff]
        %v452 = vld [vmem:[%s395 + $0x62] sm:$0xff]
        %v453 = vld [vmem:[%s395 + $0x72] sm:$0xff]
        %v454 = vperm.slane %v244, 0
        %v455 = vmul.f32 %v446, %v454
        %v456 = vmul.f32 %v447, %v454
        %v457 = vmul.f32 %v448, %v454
        %v458 = vmul.f32 %v449, %v454
        %v459 = vmul.f32 %v450, %v454
        %v460 = vmul.f32 %v451, %v454
        %v461 = vmul.f32 %v452, %v454
        %v462 = vmul.f32 %v453, %v454
        %v463 = vadd.f32 %v438, %v455
        %v464 = vadd.f32 %v439, %v456
        %v465 = vadd.f32 %v440, %v457
        %v466 = vadd.f32 %v441, %v458
        %v467 = vadd.f32 %v442, %v459
        %v468 = vadd.f32 %v443, %v460
        %v469 = vadd.f32 %v444, %v461
        %v470 = vadd.f32 %v445, %v462
        %v471 = vpack.c.bf16 %v463, %v463
        %v472 = vpack.c.bf16 %v464, %v464
        %v473 = vpack.c.bf16 %v465, %v465
        %v474 = vpack.c.bf16 %v466, %v466
        %v475 = vpack.c.bf16 %v467, %v467
        %v476 = vpack.c.bf16 %v468, %v468
        %v477 = vpack.c.bf16 %v469, %v469
        %v478 = vpack.c.bf16 %v470, %v470
        %vm479 = vcmask 257024
        %480 = vst.msk [vmem:[%s199] sm:$0xf] %vm479, %v471
        %481 = vst.msk [vmem:[%s199 + $0x4] sm:$0xf] %vm479, %v472
        %482 = vst.msk [vmem:[%s199 + $0x8] sm:$0xf] %vm479, %v473
        %483 = vst.msk [vmem:[%s199 + $0xc] sm:$0xf] %vm479, %v474
        %484 = vst.msk [vmem:[%s199 + $0x10] sm:$0xf] %vm479, %v475
        %485 = vst.msk [vmem:[%s199 + $0x14] sm:$0xf] %vm479, %v476
        %486 = vst.msk [vmem:[%s199 + $0x18] sm:$0xf] %vm479, %v477
        %487 = vst.msk [vmem:[%s199 + $0x1c] sm:$0xf] %vm479, %v478
        %v488 = vsel %vm204, %v463, 0.0
        %v489 = vsel %vm204, %v464, 0.0
        %v490 = vadd.f32 %v488, %v489
        %v491 = vsel %vm204, %v465, 0.0
        %v492 = vadd.f32 %v490, %v491
        %v493 = vsel %vm204, %v466, 0.0
        %v494 = vadd.f32 %v492, %v493
        %v495 = vsel %vm204, %v467, 0.0
        %v496 = vadd.f32 %v494, %v495
        %v497 = vsel %vm204, %v468, 0.0
        %v498 = vadd.f32 %v496, %v497
        %v499 = vsel %vm204, %v469, 0.0
        %v500 = vadd.f32 %v498, %v499
        %v501 = vsel %vm204, %v470, 0.0
        %v502 = vadd.f32 %v500, %v501
        %v503 = vrot.slane %v502, 4
        %v504 = vadd.f32 %v502, %v503
        %v505 = vrot.slane %v504, 2
        %v506 = vadd.f32 %v504, %v505
        %v507 = vrot.slane %v506, 1
        %v508 = vadd.f32 %v506, %v507
        %v509 = vmul.f32 %v463, %v463
        %v510 = vmul.f32 %v464, %v464
        %v511 = vmul.f32 %v465, %v465
        %v512 = vmul.f32 %v466, %v466
        %v513 = vmul.f32 %v467, %v467
        %v514 = vmul.f32 %v468, %v468
        %v515 = vmul.f32 %v469, %v469
        %v516 = vmul.f32 %v470, %v470
        %v517 = vsel %vm204, %v509, 0.0
        %v518 = vsel %vm204, %v510, 0.0
        %v519 = vadd.f32 %v517, %v518
        %v520 = vsel %vm204, %v511, 0.0
        %v521 = vadd.f32 %v519, %v520
        %v522 = vsel %vm204, %v512, 0.0
        %v523 = vadd.f32 %v521, %v522
        %v524 = vsel %vm204, %v513, 0.0
        %v525 = vadd.f32 %v523, %v524
        %v526 = vsel %vm204, %v514, 0.0
        %v527 = vadd.f32 %v525, %v526
        %v528 = vsel %vm204, %v515, 0.0
        %v529 = vadd.f32 %v527, %v528
        %v530 = vsel %vm204, %v516, 0.0
        %v531 = vadd.f32 %v529, %v530
        %v532 = vrot.slane %v531, 4
        %v533 = vadd.f32 %v531, %v532
        %v534 = vrot.slane %v533, 2
        %v535 = vadd.f32 %v533, %v534
        %v536 = vrot.slane %v535, 1
        %v537 = vadd.f32 %v535, %v536
        %vm538 = vcmask 1040384
        %v539 = vsel %vm538, %v508, %v537
        %540 = vst.msk [vmem:[%s203] sm:$0x3] %vm206, %v539
        %p541 = scmp.lt.s32.totalorder %s18, 1
        %s542 = scalar_select %p541, %s18, 1
        %s543 = smul.addr %s542, 8
        %s544 = smul.addr %s543, 4
        %s545 = scalar_lea.vmem %s2, %s544
        %p546 = scmp.lt.s32.totalorder %s18, 1
        %s547 = scalar_select %p546, %s18, 1
        %s548 = smul.addr %s547, 2
        %s549 = scalar_lea.vmem %s3, %s548
        // Predicated region
        $region33: #{attention_forward.6} parent=27 // pred_check
          %p550 = pneg %p83
        $region34: #{attention_forward.6} parent=27 // pred_check_branch
          %552 = sbr.rel (%p550) target = $region36
        $region35: #{attention_forward.6} parent=27 // pred_region
          _
        $region36: #{attention_forward.6} parent=27 // pred_fallthru
          _
        // Predicated region
        $region37: #{attention_forward.6} parent=27 // pred_check
          %p553 = pneg %p109
        $region38: #{attention_forward.6} parent=27 // pred_check_branch
          %555 = sbr.rel (%p553) target = $region40
        $region39: #{attention_forward.6} parent=27 // pred_region
          _
        $region40: #{attention_forward.6} parent=27 // pred_fallthru
          _
      $region28: #{attention_forward.6} parent=5 // pred_fallthru
        _
      %p556 = scmp.le.s32.totalorder 2, %s13
      // Predicated region
      $region41: #{attention_forward.6} parent=5 // pred_check
        %p557 = pneg %p556
      $region42: #{attention_forward.6} parent=5 // pred_check_branch
        %559 = sbr.rel (%p557) target = $region44
      $region43: #{attention_forward.6} parent=5 // pred_region
        %s560 = ssub.s32 %s13, 2
        // Predicated region
        $region45: #{attention_forward.6} parent=43 // pred_check
          %p561 = pneg %p89
        $region46: #{attention_forward.6} parent=43 // pred_check_branch
          %563 = sbr.rel (%p561) target = $region48
        $region47: #{attention_forward.6} parent=43 // pred_region
          %p564 = scmp.lt.s32.totalorder %s19, 1
          %s565 = scalar_select %p564, %s19, 1
          %s566 = smul.addr %s565, 8
          %s567 = smul.addr %s566, 4
          %s568 = scalar_lea.vmem %s2, %s567
        $region48: #{attention_forward.6} parent=43 // pred_fallthru
          _
        // Predicated region
        $region49: #{attention_forward.6} parent=43 // pred_check
          %p569 = pneg %p115
        $region50: #{attention_forward.6} parent=43 // pred_check_branch
          %571 = sbr.rel (%p569) target = $region52
        $region51: #{attention_forward.6} parent=43 // pred_region
          %p572 = scmp.lt.s32.totalorder %s19, 1
          %s573 = scalar_select %p572, %s19, 1
          %s574 = smul.addr %s573, 2
          %s575 = scalar_lea.vmem %s3, %s574
        $region52: #{attention_forward.6} parent=43 // pred_fallthru
          _
      $region44: #{attention_forward.6} parent=5 // pred_fallthru
        _
    $region6: #{attention_forward.6} parent=1 // loop_footer
      %s17 = sadd.s32 1, %s13
    $region7: #{attention_forward.6} parent=1 // loop_footer_branch
      %12 = sbr.rel target = $region3
    $region8: #{attention_forward.6} parent=1 // loop_exit
      _
    %576 = vsyncpa [#allocation4], 1
    %s577 = scalar_lea.sflag [#allocation4], 1
    %578 = vsyncpa %s577, 1

// kernel: attention_forward.7
$region0: #{attention_forward.7}
  #allocation0 [shape = 'u32[]', space=smem, size = 0x4, offset = 0x4, fixed_abs, tag = 'smem constant byte address 0x4 - core index']
  #allocation1 [shape = 'u32[72,128]{1,0:T(1,128)}', space=vmem, size = 0x9000, scoped, tag = 'internal scratch']
  %s0 = inlined_call_operand.vmem [shape: bf16[128,32], index: 0, kind: input, shape index: {}]
  %s1 = inlined_call_operand.vmem [shape: bf16[32,32], index: 1, kind: input, shape index: {}]
  %s2 = inlined_call_operand.vmem [shape: f32[1,32], index: 2, kind: input, shape index: {}]
  %s3 = inlined_call_operand.vmem [shape: bf16[128,32], index: 3, kind: output, shape index: {}]
  %s4 = sld [smem:[#allocation0]]
  $region22: #{attention_forward.7} parent=0
    _
  %s6 = ssub.s32 1, %s4
  %s7 = scalar_select 0, %s6, %s4
  // Predicated region
  $region2: #{attention_forward.7} parent=0 // pred_check
    _
  $region3: #{attention_forward.7} parent=0 // pred_check_branch
    %9 = sbr.rel (0) target = $region5
  $region4: #{attention_forward.7} parent=0 // pred_region
    _
  $region5: #{attention_forward.7} parent=0 // pred_fallthru
    _
  // Predicated region
  $region6: #{attention_forward.7} parent=0 // pred_check
    _
  $region7: #{attention_forward.7} parent=0 // pred_check_branch
    %11 = sbr.rel (0) target = $region9
  $region8: #{attention_forward.7} parent=0 // pred_region
    _
  $region9: #{attention_forward.7} parent=0 // pred_fallthru
    _
  // Predicated region
  $region10: #{attention_forward.7} parent=0 // pred_check
    _
  $region11: #{attention_forward.7} parent=0 // pred_check_branch
    %13 = sbr.rel (0) target = $region13
  $region12: #{attention_forward.7} parent=0 // pred_region
    _
  $region13: #{attention_forward.7} parent=0 // pred_fallthru
    _
  %v15 = vld [vmem:[%s0] sm:$0xf]
  %v16 = vld [vmem:[%s0 + $0x4] sm:$0xf]
  %v17 = vld [vmem:[%s0 + $0x8] sm:$0xf]
  %v18 = vld [vmem:[%s0 + $0xc] sm:$0xf]
  %v19 = vld [vmem:[%s0 + $0x10] sm:$0xf]
  %v20 = vld [vmem:[%s0 + $0x14] sm:$0xf]
  %v21 = vld [vmem:[%s0 + $0x18] sm:$0xf]
  %v22 = vld [vmem:[%s0 + $0x1c] sm:$0xf]
  %v23 = vld [vmem:[%s0 + $0x20] sm:$0xf]
  %v24 = vld [vmem:[%s0 + $0x24] sm:$0xf]
  %v25 = vld [vmem:[%s0 + $0x28] sm:$0xf]
  %v26 = vld [vmem:[%s0 + $0x2c] sm:$0xf]
  %v27 = vld [vmem:[%s0 + $0x30] sm:$0xf]
  %v28 = vld [vmem:[%s0 + $0x34] sm:$0xf]
  %v29 = vld [vmem:[%s0 + $0x38] sm:$0xf]
  %v30 = vld [vmem:[%s0 + $0x3c] sm:$0xf]
  %v31 = vld [vmem:[%s1] sm:$0xf]
  %v32 = vld [vmem:[%s1 + $0x4] sm:$0xf]
  %v33 = vld [vmem:[%s1 + $0x8] sm:$0xf]
  %v34 = vld [vmem:[%s1 + $0xc] sm:$0xf]
  %v35 = vld [vmem:[%s2] sm:$0x1]
  %v37 = vperm.slane %v35, 0
  %v55 = vunpack.c.l.b16 %v15
  %v56 = vunpack.c.l.b16 %v16
  %v57 = vunpack.c.l.b16 %v17
  %v58 = vunpack.c.l.b16 %v18
  %v59 = vunpack.c.l.b16 %v19
  %v60 = vunpack.c.l.b16 %v20
  %v61 = vunpack.c.l.b16 %v21
  %v62 = vunpack.c.l.b16 %v22
  %v63 = vunpack.c.l.b16 %v23
  %v64 = vunpack.c.l.b16 %v24
  %v65 = vunpack.c.l.b16 %v25
  %v66 = vunpack.c.l.b16 %v26
  %v67 = vunpack.c.l.b16 %v27
  %v68 = vunpack.c.l.b16 %v28
  %v69 = vunpack.c.l.b16 %v29
  %v70 = vunpack.c.l.b16 %v30
  %v71 = vpack.c.b16 %v56, %v55
  %v72 = vpack.c.b16 %v58, %v57
  %v73 = vpack.c.b16 %v60, %v59
  %v74 = vpack.c.b16 %v62, %v61
  %v75 = vpack.c.b16 %v64, %v63
  %v76 = vpack.c.b16 %v66, %v65
  %v77 = vpack.c.b16 %v68, %v67
  %v78 = vpack.c.b16 %v70, %v69
  %v83 = vunpack.c.l.b16 %v31
  %v84 = vunpack.c.l.b16 %v32
  %v85 = vunpack.c.l.b16 %v33
  %v86 = vunpack.c.l.b16 %v34
  %v87 = vpack.c.b16 %v84, %v83
  %v88 = vpack.c.b16 %v86, %v85
  %vm91 = vcmask 261120
  %v93 = vsel %vm91, %v71, 0
  %v96 = vsel %vm91, %v72, 0
  %v99 = vsel %vm91, %v73, 0
  %v102 = vsel %vm91, %v74, 0
  %v105 = vsel %vm91, %v75, 0
  %v108 = vsel %vm91, %v76, 0
  %v111 = vsel %vm91, %v77, 0
  %v114 = vsel %vm91, %v78, 0
  %116 = vmatpush.bf16.msra.mxu0 0
  %117 = vmatpush.bf16.msra.mxu0 0
  %118 = vmatpush.bf16.msra.mxu0 0
  %119 = vmatpush.bf16.msra.mxu0 0
  %120 = vmatpush.bf16.msra.mxu0 0
  %121 = vmatpush.bf16.msra.mxu0 0
  %122 = vmatpush.bf16.msra.mxu0 %v88
  %123 = vmatpush.bf16.msra.mxu0 %v87
  %124 = vmatmul.bf16.gmra.mxu0 %v93
  %v125 = vpop.f32.mrf.mxu0
  %v126 = vadd.f32 %v37, %v125
  %v127 = vpop.f32.mrf.mxu0
  %v128 = vadd.f32 %v37, %v127
  %129 = vmatmul.bf16.gmra.mxu0 %v96
  %v130 = vpop.f32.mrf.mxu0
  %v131 = vadd.f32 %v37, %v130
  %v132 = vpop.f32.mrf.mxu0
  %v133 = vadd.f32 %v37, %v132
  %134 = vmatmul.bf16.gmra.mxu0 %v99
  %v135 = vpop.f32.mrf.mxu0
  %v136 = vadd.f32 %v37, %v135
  %v137 = vpop.f32.mrf.mxu0
  %v138 = vadd.f32 %v37, %v137
  %139 = vmatmul.bf16.gmra.mxu0 %v102
  %v140 = vpop.f32.mrf.mxu0
  %v141 = vadd.f32 %v37, %v140
  %v142 = vpop.f32.mrf.mxu0
  %v143 = vadd.f32 %v37, %v142
  %144 = vmatmul.bf16.gmra.mxu0 %v105
  %v145 = vpop.f32.mrf.mxu0
  %v146 = vadd.f32 %v37, %v145
  %v147 = vpop.f32.mrf.mxu0
  %v148 = vadd.f32 %v37, %v147
  %149 = vmatmul.bf16.gmra.mxu0 %v108
  %v150 = vpop.f32.mrf.mxu0
  %v151 = vadd.f32 %v37, %v150
  %v152 = vpop.f32.mrf.mxu0
  %v153 = vadd.f32 %v37, %v152
  %154 = vmatmul.bf16.gmra.mxu0 %v111
  %v155 = vpop.f32.mrf.mxu0
  %v156 = vadd.f32 %v37, %v155
  %v157 = vpop.f32.mrf.mxu0
  %v158 = vadd.f32 %v37, %v157
  %159 = vmatmul.bf16.gmra.mxu0 %v114
  %v160 = vpop.f32.mrf.mxu0
  %v161 = vadd.f32 %v37, %v160
  %v162 = vpop.f32.mrf.mxu0
  %v163 = vadd.f32 %v37, %v162
  %164 = vdwg.mxu0
  %v165 = vpack.c.bf16 %v126, %v126
  %v166 = vpack.c.bf16 %v128, %v128
  %v167 = vpack.c.bf16 %v131, %v131
  %v168 = vpack.c.bf16 %v133, %v133
  %v169 = vpack.c.bf16 %v136, %v136
  %v170 = vpack.c.bf16 %v138, %v138
  %v171 = vpack.c.bf16 %v141, %v141
  %v172 = vpack.c.bf16 %v143, %v143
  %v173 = vpack.c.bf16 %v146, %v146
  %v174 = vpack.c.bf16 %v148, %v148
  %v175 = vpack.c.bf16 %v151, %v151
  %v176 = vpack.c.bf16 %v153, %v153
  %v177 = vpack.c.bf16 %v156, %v156
  %v178 = vpack.c.bf16 %v158, %v158
  %v179 = vpack.c.bf16 %v161, %v161
  %v180 = vpack.c.bf16 %v163, %v163
  %vm181 = vcmask 257024
  %182 = vst.msk [vmem:[%s3] sm:$0xf] %vm181, %v165
  %183 = vst.msk [vmem:[%s3 + $0x4] sm:$0xf] %vm181, %v166
  %184 = vst.msk [vmem:[%s3 + $0x8] sm:$0xf] %vm181, %v167
  %185 = vst.msk [vmem:[%s3 + $0xc] sm:$0xf] %vm181, %v168
  %186 = vst.msk [vmem:[%s3 + $0x10] sm:$0xf] %vm181, %v169
  %187 = vst.msk [vmem:[%s3 + $0x14] sm:$0xf] %vm181, %v170
  %188 = vst.msk [vmem:[%s3 + $0x18] sm:$0xf] %vm181, %v171
  %189 = vst.msk [vmem:[%s3 + $0x1c] sm:$0xf] %vm181, %v172
  %190 = vst.msk [vmem:[%s3 + $0x20] sm:$0xf] %vm181, %v173
  %191 = vst.msk [vmem:[%s3 + $0x24] sm:$0xf] %vm181, %v174
  %192 = vst.msk [vmem:[%s3 + $0x28] sm:$0xf] %vm181, %v175
  %193 = vst.msk [vmem:[%s3 + $0x2c] sm:$0xf] %vm181, %v176
  %194 = vst.msk [vmem:[%s3 + $0x30] sm:$0xf] %vm181, %v177
  %195 = vst.msk [vmem:[%s3 + $0x34] sm:$0xf] %vm181, %v178
  %196 = vst.msk [vmem:[%s3 + $0x38] sm:$0xf] %vm181, %v179
  %197 = vst.msk [vmem:[%s3 + $0x3c] sm:$0xf] %vm181, %v180
  // Predicated region
  $region14: #{attention_forward.7} parent=0 // pred_check
    _
  $region15: #{attention_forward.7} parent=0 // pred_check_branch
    %199 = sbr.rel (0) target = $region17
  $region16: #{attention_forward.7} parent=0 // pred_region
    _
  $region17: #{attention_forward.7} parent=0 // pred_fallthru
    _
  // Predicated region
  $region18: #{attention_forward.7} parent=0 // pred_check
    _
  $region19: #{attention_forward.7} parent=0 // pred_check_branch
    %201 = sbr.rel (0) target = $region21
  $region20: #{attention_forward.7} parent=0 // pred_region
    _
  $region21: #{attention_forward.7} parent=0 // pred_fallthru
    _

// kernel: attention_forward.11
$region0: #{attention_forward.11}
  #allocation0 [shape = 'u32[]', space=smem, size = 0x4, offset = 0x4, fixed_abs, tag = 'smem constant byte address 0x4 - core index']
  #allocation1 [shape = 'u32[72,128]{1,0:T(1,128)}', space=vmem, size = 0x9000, scoped, tag = 'internal scratch']
  %s0 = inlined_call_operand.vmem [shape: bf16[128,32], index: 0, kind: input, shape index: {}]
  %s1 = inlined_call_operand.vmem [shape: bf16[32,32], index: 1, kind: input, shape index: {}]
  %s2 = inlined_call_operand.vmem [shape: f32[1,32], index: 2, kind: input, shape index: {}]
  %s3 = inlined_call_operand.hbm [shape: f32[128,32], index: 3, kind: output, shape index: {}]
  %s4 = sld [smem:[#allocation0]]
  $region22: #{attention_forward.11} parent=0
    _
  %s6 = ssub.s32 1, %s4
  %s7 = scalar_select 0, %s6, %s4
  $region1: #{attention_forward.11} parent=0
    #allocation2 [shape = 'u8[65536]{0}', space=vmem, size = 0x10000, scoped, tag = 'output window, operand 0, single buffered']
    #allocation3 [shape = 's32[1]{0}', space=sflag, size = 0x4, scoped, tag = 'scoped memory for attention_forward.11']
    %8 = vsyncpa [#allocation3], 0
    // Predicated region
    $region2: #{attention_forward.11} parent=1 // pred_check
      _
    $region3: #{attention_forward.11} parent=1 // pred_check_branch
      %10 = sbr.rel (0) target = $region5
    $region4: #{attention_forward.11} parent=1 // pred_region
      _
    $region5: #{attention_forward.11} parent=1 // pred_fallthru
      _
    // Predicated region
    $region6: #{attention_forward.11} parent=1 // pred_check
      _
    $region7: #{attention_forward.11} parent=1 // pred_check_branch
      %12 = sbr.rel (0) target = $region9
    $region8: #{attention_forward.11} parent=1 // pred_region
      _
    $region9: #{attention_forward.11} parent=1 // pred_fallthru
      _
    // Predicated region
    $region10: #{attention_forward.11} parent=1 // pred_check
      _
    $region11: #{attention_forward.11} parent=1 // pred_check_branch
      %14 = sbr.rel (0) target = $region13
    $region12: #{attention_forward.11} parent=1 // pred_region
      _
    $region13: #{attention_forward.11} parent=1 // pred_fallthru
      _
    %v16 = vld [vmem:[%s0] sm:$0xf]
    %v17 = vld [vmem:[%s0 + $0x4] sm:$0xf]
    %v18 = vld [vmem:[%s0 + $0x8] sm:$0xf]
    %v19 = vld [vmem:[%s0 + $0xc] sm:$0xf]
    %v20 = vld [vmem:[%s0 + $0x10] sm:$0xf]
    %v21 = vld [vmem:[%s0 + $0x14] sm:$0xf]
    %v22 = vld [vmem:[%s0 + $0x18] sm:$0xf]
    %v23 = vld [vmem:[%s0 + $0x1c] sm:$0xf]
    %v24 = vld [vmem:[%s0 + $0x20] sm:$0xf]
    %v25 = vld [vmem:[%s0 + $0x24] sm:$0xf]
    %v26 = vld [vmem:[%s0 + $0x28] sm:$0xf]
    %v27 = vld [vmem:[%s0 + $0x2c] sm:$0xf]
    %v28 = vld [vmem:[%s0 + $0x30] sm:$0xf]
    %v29 = vld [vmem:[%s0 + $0x34] sm:$0xf]
    %v30 = vld [vmem:[%s0 + $0x38] sm:$0xf]
    %v31 = vld [vmem:[%s0 + $0x3c] sm:$0xf]
    %v32 = vld [vmem:[%s1] sm:$0xf]
    %v33 = vld [vmem:[%s1 + $0x4] sm:$0xf]
    %v34 = vld [vmem:[%s1 + $0x8] sm:$0xf]
    %v35 = vld [vmem:[%s1 + $0xc] sm:$0xf]
    %v36 = vld [vmem:[%s2] sm:$0x1]
    %v38 = vperm.slane %v36, 0
    %v56 = vunpack.c.l.b16 %v16
    %v57 = vunpack.c.l.b16 %v17
    %v58 = vunpack.c.l.b16 %v18
    %v59 = vunpack.c.l.b16 %v19
    %v60 = vunpack.c.l.b16 %v20
    %v61 = vunpack.c.l.b16 %v21
    %v62 = vunpack.c.l.b16 %v22
    %v63 = vunpack.c.l.b16 %v23
    %v64 = vunpack.c.l.b16 %v24
    %v65 = vunpack.c.l.b16 %v25
    %v66 = vunpack.c.l.b16 %v26
    %v67 = vunpack.c.l.b16 %v27
    %v68 = vunpack.c.l.b16 %v28
    %v69 = vunpack.c.l.b16 %v29
    %v70 = vunpack.c.l.b16 %v30
    %v71 = vunpack.c.l.b16 %v31
    %v72 = vpack.c.b16 %v57, %v56
    %v73 = vpack.c.b16 %v59, %v58
    %v74 = vpack.c.b16 %v61, %v60
    %v75 = vpack.c.b16 %v63, %v62
    %v76 = vpack.c.b16 %v65, %v64
    %v77 = vpack.c.b16 %v67, %v66
    %v78 = vpack.c.b16 %v69, %v68
    %v79 = vpack.c.b16 %v71, %v70
    %v84 = vunpack.c.l.b16 %v32
    %v85 = vunpack.c.l.b16 %v33
    %v86 = vunpack.c.l.b16 %v34
    %v87 = vunpack.c.l.b16 %v35
    %v88 = vpack.c.b16 %v85, %v84
    %v89 = vpack.c.b16 %v87, %v86
    %vm92 = vcmask 261120
    %v94 = vsel %vm92, %v72, 0
    %v97 = vsel %vm92, %v73, 0
    %v100 = vsel %vm92, %v74, 0
    %v103 = vsel %vm92, %v75, 0
    %v106 = vsel %vm92, %v76, 0
    %v109 = vsel %vm92, %v77, 0
    %v112 = vsel %vm92, %v78, 0
    %v115 = vsel %vm92, %v79, 0
    %117 = vmatpush.bf16.msra.mxu0 0
    %118 = vmatpush.bf16.msra.mxu0 0
    %119 = vmatpush.bf16.msra.mxu0 0
    %120 = vmatpush.bf16.msra.mxu0 0
    %121 = vmatpush.bf16.msra.mxu0 0
    %122 = vmatpush.bf16.msra.mxu0 0
    %123 = vmatpush.bf16.msra.mxu0 %v89
    %124 = vmatpush.bf16.msra.mxu0 %v88
    %125 = vmatmul.bf16.gmra.mxu0 %v94
    %v126 = vpop.f32.mrf.mxu0
    %v127 = vadd.f32 %v38, %v126
    %v128 = vpop.f32.mrf.mxu0
    %v129 = vadd.f32 %v38, %v128
    %130 = vmatmul.bf16.gmra.mxu0 %v97
    %v131 = vpop.f32.mrf.mxu0
    %v132 = vadd.f32 %v38, %v131
    %v133 = vpop.f32.mrf.mxu0
    %v134 = vadd.f32 %v38, %v133
    %135 = vmatmul.bf16.gmra.mxu0 %v100
    %v136 = vpop.f32.mrf.mxu0
    %v137 = vadd.f32 %v38, %v136
    %v138 = vpop.f32.mrf.mxu0
    %v139 = vadd.f32 %v38, %v138
    %140 = vmatmul.bf16.gmra.mxu0 %v103
    %v141 = vpop.f32.mrf.mxu0
    %v142 = vadd.f32 %v38, %v141
    %v143 = vpop.f32.mrf.mxu0
    %v144 = vadd.f32 %v38, %v143
    %145 = vmatmul.bf16.gmra.mxu0 %v106
    %v146 = vpop.f32.mrf.mxu0
    %v147 = vadd.f32 %v38, %v146
    %v148 = vpop.f32.mrf.mxu0
    %v149 = vadd.f32 %v38, %v148
    %150 = vmatmul.bf16.gmra.mxu0 %v109
    %v151 = vpop.f32.mrf.mxu0
    %v152 = vadd.f32 %v38, %v151
    %v153 = vpop.f32.mrf.mxu0
    %v154 = vadd.f32 %v38, %v153
    %155 = vmatmul.bf16.gmra.mxu0 %v112
    %v156 = vpop.f32.mrf.mxu0
    %v157 = vadd.f32 %v38, %v156
    %v158 = vpop.f32.mrf.mxu0
    %v159 = vadd.f32 %v38, %v158
    %160 = vmatmul.bf16.gmra.mxu0 %v115
    %v161 = vpop.f32.mrf.mxu0
    %v162 = vadd.f32 %v38, %v161
    %v163 = vpop.f32.mrf.mxu0
    %v164 = vadd.f32 %v38, %v163
    %165 = vdwg.mxu0
    %166 = vst.msk [vmem:[#allocation2] sm:$0xff] %vm92, %v127
    %167 = vst.msk [vmem:[#allocation2 + $0x8] sm:$0xff] %vm92, %v129
    %168 = vst.msk [vmem:[#allocation2 + $0x10] sm:$0xff] %vm92, %v132
    %169 = vst.msk [vmem:[#allocation2 + $0x18] sm:$0xff] %vm92, %v134
    %170 = vst.msk [vmem:[#allocation2 + $0x20] sm:$0xff] %vm92, %v137
    %171 = vst.msk [vmem:[#allocation2 + $0x28] sm:$0xff] %vm92, %v139
    %172 = vst.msk [vmem:[#allocation2 + $0x30] sm:$0xff] %vm92, %v142
    %173 = vst.msk [vmem:[#allocation2 + $0x38] sm:$0xff] %vm92, %v144
    %174 = vst.msk [vmem:[#allocation2 + $0x40] sm:$0xff] %vm92, %v147
    %175 = vst.msk [vmem:[#allocation2 + $0x48] sm:$0xff] %vm92, %v149
    %176 = vst.msk [vmem:[#allocation2 + $0x50] sm:$0xff] %vm92, %v152
    %177 = vst.msk [vmem:[#allocation2 + $0x58] sm:$0xff] %vm92, %v154
    %178 = vst.msk [vmem:[#allocation2 + $0x60] sm:$0xff] %vm92, %v157
    %179 = vst.msk [vmem:[#allocation2 + $0x68] sm:$0xff] %vm92, %v159
    %180 = vst.msk [vmem:[#allocation2 + $0x70] sm:$0xff] %vm92, %v162
    %181 = vst.msk [vmem:[#allocation2 + $0x78] sm:$0xff] %vm92, %v164
    // Predicated region
    $region14: #{attention_forward.11} parent=1 // pred_check
      _
    $region15: #{attention_forward.11} parent=1 // pred_check_branch
      %183 = sbr.rel (0) target = $region17
    $region16: #{attention_forward.11} parent=1 // pred_region
      %185 = vsyncadd [#allocation3], 0
      %s186 = sshll.u32 [#allocation2], 4
      %s187 = int_to_ptr.vmem [resolvable:$true] %s186
      %s188 = sshll.u32 %s3, 4
      %s189 = int_to_ptr.hbm [resolvable:$true] %s188
      %194 = dma.vmem_to_hbm [thread:$0]  %s187, 2048, %s189, [#allocation3], 128, 128, 8
    $region17: #{attention_forward.11} parent=1 // pred_fallthru
      _
    // Predicated region
    $region18: #{attention_forward.11} parent=1 // pred_check
      _
    $region19: #{attention_forward.11} parent=1 // pred_check_branch
      %196 = sbr.rel (0) target = $region21
    $region20: #{attention_forward.11} parent=1 // pred_region
      %198 = dma.done [#allocation3], 2048
    $region21: #{attention_forward.11} parent=1 // pred_fallthru
      _
    %199 = vsyncpa [#allocation3], 1

// kernel: attention_forward.10
$region0: #{attention_forward.10}
  #allocation0 [shape = 'u32[]', space=smem, size = 0x4, offset = 0x4, fixed_abs, tag = 'smem constant byte address 0x4 - core index']
  #allocation1 [shape = 'u32[72,128]{1,0:T(1,128)}', space=vmem, size = 0x9000, scoped, tag = 'internal scratch']
  %s0 = inlined_call_operand.vmem [shape: bf16[2,64,32], index: 0, kind: input, shape index: {}]
  %s1 = inlined_call_operand.vmem [shape: bf16[2,16,32], index: 1, kind: input, shape index: {}]
  %s2 = inlined_call_operand.vmem [shape: bf16[2,16,32], index: 2, kind: input, shape index: {}]
  %s3 = inlined_call_operand.vmem [shape: bf16[2,64,32], index: 3, kind: output, shape index: {}]
  %s4 = sld [smem:[#allocation0]]
  $region45: #{attention_forward.10} parent=0
    _
  %s6 = ssub.s32 1, %s4
  %s7 = scalar_select 0, %s6, %s4
  loop: start=0, step=1, limit=4
  $region2: #{attention_forward.10} parent=0 // loop_pre_header
    _
  $region3: #{attention_forward.10} parent=0 // loop_header
    %s9 = sphi 0, %s13
    %p10 = scmp.ge.s32.totalorder %s9, 4
    %s16 = sphi 0, %s28
    %s17 = sphi 0, %s24
    %s18 = sphi 0, %s16
    %s19 = sphi 0, %s17
    %s20 = sphi 0, %s18
    %s21 = sphi 0, %s19
    %s33 = sphi 0, %s35
    %s36 = sphi 0, %s33
    %s37 = sphi 0, %s36
    %s53 = sphi 0, %s37
    %s59 = sphi 0, %s61
    %s62 = sphi 0, %s59
    %s63 = sphi 0, %s62
    %s79 = sphi 0, %s63
    %s85 = sphi 0, %s87
    %s88 = sphi 0, %s85
    %s89 = sphi 0, %s88
    %s105 = sphi 0, %s89
    %s113 = sphi 0, %s115
    %s116 = sphi 0, %s113
    %s117 = sphi 0, %s116
    %s133 = sphi 0, %s117
  $region4: #{attention_forward.10} parent=0 // loop_header_branch
    %12 = sbr.rel (%p10) target = $region8
  $region5: #{attention_forward.10} parent=0 // loop_body
    %s14 = ssub.s32 %s9, 1
    %s15 = ssub.s32 %s9, 2
    %s22 = sadd.s32 1, %s17
    %p23 = scmp.ge.s32.totalorder %s22, 1
    %s24 = scalar_select %p23, 0, %s22
    %s25 = sadd.s32 1, %s16
    %s26 = scalar_select %p23, %s25, %s16
    %p27 = scmp.ge.s32.totalorder %s26, 2
    %s28 = scalar_select %p27, 0, %s26
    %s29 = ssub.s32 %s16, %s28
    %s30 = ssub.s32 %s17, %s24
    %s31 = sor.u32 %s29, %s30
    %p32 = scmp.eq.s32.totalorder %s31, 0
    %s34 = sadd.s32 %s33, 1
    %s35 = scalar_select %p32, %s33, %s34
    %p38 = pneg %p32
    %p39 = scmp.eq.s32.totalorder %s9, 1
    %p40 = por %p38, %p39
    %p41 = scmp.ne.s32.totalorder %s33, %s36
    %p42 = scmp.eq.s32.totalorder %s9, 0
    %p43 = por %p41, %p42
    %p44 = scmp.ne.s32.totalorder %s33, %s36
    %p45 = scmp.eq.s32.totalorder %s14, 1
    %p46 = por %p44, %p45
    %p47 = scmp.ne.s32.totalorder %s36, %s37
    %p48 = scmp.eq.s32.totalorder %s14, 0
    %p49 = por %p47, %p48
    %p50 = scmp.ne.s32.totalorder %s36, %s37
    %p51 = scmp.eq.s32.totalorder %s15, 1
    %p52 = por %p50, %p51
    %p54 = scmp.ne.s32.totalorder %s37, %s53
    %p55 = scmp.eq.s32.totalorder %s15, 0
    %p56 = por %p54, %p55
    %s57 = ssub.s32 %s16, %s28
    %p58 = scmp.eq.s32.totalorder %s57, 0
    %s60 = sadd.s32 %s59, 1
    %s61 = scalar_select %p58, %s59, %s60
    %p64 = pneg %p58
    %p65 = scmp.eq.s32.totalorder %s9, 1
    %p66 = por %p64, %p65
    %p67 = scmp.ne.s32.totalorder %s59, %s62
    %p68 = scmp.eq.s32.totalorder %s9, 0
    %p69 = por %p67, %p68
    %p70 = scmp.ne.s32.totalorder %s59, %s62
    %p71 = scmp.eq.s32.totalorder %s14, 1
    %p72 = por %p70, %p71
    %p73 = scmp.ne.s32.totalorder %s62, %s63
    %p74 = scmp.eq.s32.totalorder %s14, 0
    %p75 = por %p73, %p74
    %p76 = scmp.ne.s32.totalorder %s62, %s63
    %p77 = scmp.eq.s32.totalorder %s15, 1
    %p78 = por %p76, %p77
    %p80 = scmp.ne.s32.totalorder %s63, %s79
    %p81 = scmp.eq.s32.totalorder %s15, 0
    %p82 = por %p80, %p81
    %s83 = ssub.s32 %s16, %s28
    %p84 = scmp.eq.s32.totalorder %s83, 0
    %s86 = sadd.s32 %s85, 1
    %s87 = scalar_select %p84, %s85, %s86
    %p90 = pneg %p84
    %p91 = scmp.eq.s32.totalorder %s9, 1
    %p92 = por %p90, %p91
    %p93 = scmp.ne.s32.totalorder %s85, %s88
    %p94 = scmp.eq.s32.totalorder %s9, 0
    %p95 = por %p93, %p94
    %p96 = scmp.ne.s32.totalorder %s85, %s88
    %p97 = scmp.eq.s32.totalorder %s14, 1
    %p98 = por %p96, %p97
    %p99 = scmp.ne.s32.totalorder %s88, %s89
    %p100 = scmp.eq.s32.totalorder %s14, 0
    %p101 = por %p99, %p100
    %p102 = scmp.ne.s32.totalorder %s88, %s89
    %p103 = scmp.eq.s32.totalorder %s15, 1
    %p104 = por %p102, %p103
    %p106 = scmp.ne.s32.totalorder %s89, %s105
    %p107 = scmp.eq.s32.totalorder %s15, 0
    %p108 = por %p106, %p107
    %s109 = ssub.s32 %s16, %s28
    %s110 = ssub.s32 %s17, %s24
    %s111 = sor.u32 %s109, %s110
    %p112 = scmp.eq.s32.totalorder %s111, 0
    %s114 = sadd.s32 %s113, 1
    %s115 = scalar_select %p112, %s113, %s114
    %p118 = pneg %p112
    %p119 = scmp.eq.s32.totalorder %s9, 1
    %p120 = por %p118, %p119
    %p121 = scmp.ne.s32.totalorder %s113, %s116
    %p122 = scmp.eq.s32.totalorder %s9, 0
    %p123 = por %p121, %p122
    %p124 = scmp.ne.s32.totalorder %s113, %s116
    %p125 = scmp.eq.s32.totalorder %s14, 1
    %p126 = por %p124, %p125
    %p127 = scmp.ne.s32.totalorder %s116, %s117
    %p128 = scmp.eq.s32.totalorder %s14, 0
    %p129 = por %p127, %p128
    %p130 = scmp.ne.s32.totalorder %s116, %s117
    %p131 = scmp.eq.s32.totalorder %s15, 1
    %p132 = por %p130, %p131
    %p134 = scmp.ne.s32.totalorder %s117, %s133
    %p135 = scmp.eq.s32.totalorder %s15, 0
    %p136 = por %p134, %p135
    %p137 = scmp.le.s32.totalorder 1, %s9
    %p138 = scmp.lt.s32.totalorder %s9, 3
    %p139 = pnand %p137, %p138
    %p140 = pneg %p139
    // Predicated region
    $region9: #{attention_forward.10} parent=5 // pred_check
      _
    $region10: #{attention_forward.10} parent=5 // pred_check_branch
      %142 = sbr.rel (%p139) target = $region12
    $region11: #{attention_forward.10} parent=5 // pred_region
      %s143 = ssub.s32 %s9, 1
    $region12: #{attention_forward.10} parent=5 // pred_fallthru
      _
    %p144 = scmp.lt.s32.totalorder %s9, 2
    // Predicated region
    $region13: #{attention_forward.10} parent=5 // pred_check
      %p145 = pneg %p144
    $region14: #{attention_forward.10} parent=5 // pred_check_branch
      %147 = sbr.rel (%p145) target = $region16
    $region15: #{attention_forward.10} parent=5 // pred_region
      // Predicated region
      $region17: #{attention_forward.10} parent=15 // pred_check
        %p148 = pneg %p43
      $region18: #{attention_forward.10} parent=15 // pred_check_branch
        %150 = sbr.rel (%p148) target = $region20
      $region19: #{attention_forward.10} parent=15 // pred_region
        %s151 = smul.u32 8, %s17
        %p152 = scmp.lt.s32.totalorder %s16, 1
        %s153 = scalar_select %p152, %s16, 1
        %p154 = scmp.lt.s32.totalorder %s151, 7
        %s155 = scalar_select %p154, %s151, 7
        %s156 = smul.addr %s153, 8
        %s157 = sadd.s32 %s155, %s156
        %s158 = smul.addr %s157, 4
        %s159 = scalar_lea.vmem %s0, %s158
        %s160 = smul.u32 8, %s17
      $region20: #{attention_forward.10} parent=15 // pred_fallthru
        _
      // Predicated region
      $region21: #{attention_forward.10} parent=15 // pred_check
        %p161 = pneg %p69
      $region22: #{attention_forward.10} parent=15 // pred_check_branch
        %163 = sbr.rel (%p161) target = $region24
      $region23: #{attention_forward.10} parent=15 // pred_region
        %p164 = scmp.lt.s32.totalorder %s16, 1
        %s165 = scalar_select %p164, %s16, 1
        %s166 = smul.addr %s165, 2
        %s167 = smul.addr %s166, 4
        %s168 = scalar_lea.vmem %s1, %s167
      $region24: #{attention_forward.10} parent=15 // pred_fallthru
        _
      // Predicated region
      $region25: #{attention_forward.10} parent=15 // pred_check
        %p169 = pneg %p95
      $region26: #{attention_forward.10} parent=15 // pred_check_branch
        %171 = sbr.rel (%p169) target = $region28
      $region27: #{attention_forward.10} parent=15 // pred_region
        %p172 = scmp.lt.s32.totalorder %s16, 1
        %s173 = scalar_select %p172, %s16, 1
        %s174 = smul.addr %s173, 2
        %s175 = smul.addr %s174, 4
        %s176 = scalar_lea.vmem %s2, %s175
      $region28: #{attention_forward.10} parent=15 // pred_fallthru
        _
    $region16: #{attention_forward.10} parent=5 // pred_fallthru
      _
    %p177 = scmp.le.s32.totalorder 1, %s9
    %p178 = scmp.lt.s32.totalorder %s9, 3
    %p179 = pnand %p177, %p178
    %p180 = pneg %p179
    // Predicated region
    $region29: #{attention_forward.10} parent=5 // pred_check
      _
    $region30: #{attention_forward.10} parent=5 // pred_check_branch
      %182 = sbr.rel (%p179) target = $region32
    $region31: #{attention_forward.10} parent=5 // pred_region
      %s183 = ssub.s32 %s9, 1
      %s184 = smul.u32 8, %s19
      %p185 = scmp.lt.s32.totalorder %s18, 1
      %s186 = scalar_select %p185, %s18, 1
      %p187 = scmp.lt.s32.totalorder %s184, 7
      %s188 = scalar_select %p187, %s184, 7
      %s189 = smul.addr %s186, 8
      %s190 = sadd.s32 %s188, %s189
      %s191 = smul.addr %s190, 4
      %s192 = scalar_lea.vmem %s0, %s191
      %p193 = pneg %p49
      %p194 = pneg %p46
      %p195 = scmp.lt.s32.totalorder %s18, 1
      %s196 = scalar_select %p195, %s18, 1
      %s197 = smul.addr %s196, 2
      %s198 = smul.addr %s197, 4
      %s199 = scalar_lea.vmem %s1, %s198
      %p200 = pneg %p75
      %p201 = pneg %p72
      %p202 = scmp.lt.s32.totalorder %s18, 1
      %s203 = scalar_select %p202, %s18, 1
      %s204 = smul.addr %s203, 2
      %s205 = smul.addr %s204, 4
      %s206 = scalar_lea.vmem %s2, %s205
      %p207 = pneg %p101
      %p208 = pneg %p98
      %p209 = pneg %p129
      %p210 = pneg %p126
      %s211 = smul.u32 8, %s19
      %p212 = scmp.lt.s32.totalorder %s18, 1
      %s213 = scalar_select %p212, %s18, 1
      %p214 = scmp.lt.s32.totalorder %s211, 7
      %s215 = scalar_select %p214, %s211, 7
      %s216 = smul.addr %s213, 8
      %s217 = sadd.s32 %s215, %s216
      %s218 = smul.addr %s217, 4
      %s219 = scalar_lea.vmem %s3, %s218
      %s220 = smul.u32 8, %s19
      %p221 = scmp.lt.s32.totalorder %s18, 1
      %s222 = scalar_select %p221, %s18, 1
      %p223 = scmp.lt.s32.totalorder %s220, 7
      %s224 = scalar_select %p223, %s220, 7
      %s225 = smul.addr %s222, 8
      %s226 = sadd.s32 %s224, %s225
      %s227 = smul.addr %s226, 4
      %s228 = scalar_lea.vmem %s0, %s227
      %s229 = smul.u32 8, %s19
      %p230 = scmp.lt.s32.totalorder %s18, 1
      %s231 = scalar_select %p230, %s18, 1
      %s232 = smul.addr %s231, 2
      %s233 = smul.addr %s232, 4
      %s234 = scalar_lea.vmem %s1, %s233
      %p235 = scmp.lt.s32.totalorder %s18, 1
      %s236 = scalar_select %p235, %s18, 1
      %s237 = smul.addr %s236, 2
      %s238 = smul.addr %s237, 4
      %s239 = scalar_lea.vmem %s2, %s238
      %s240 = smul.u32 8, %s19
      %p241 = scmp.lt.s32.totalorder %s18, 1
      %s242 = scalar_select %p241, %s18, 1
      %p243 = scmp.lt.s32.totalorder %s240, 7
      %s244 = scalar_select %p243, %s240, 7
      %s245 = smul.addr %s242, 8
      %s246 = sadd.s32 %s244, %s245
      %s247 = smul.addr %s246, 4
      %s248 = scalar_lea.vmem %s3, %s247
      %s249 = smul.u32 8, %s19
      %v251 = vld [vmem:[%s228] sm:$0xf]
      %v252 = vld [vmem:[%s228 + $0x4] sm:$0xf]
      %v253 = vld [vmem:[%s228 + $0x8] sm:$0xf]
      %v254 = vld [vmem:[%s228 + $0xc] sm:$0xf]
      %v255 = vld [vmem:[%s228 + $0x10] sm:$0xf]
      %v256 = vld [vmem:[%s228 + $0x14] sm:$0xf]
      %v257 = vld [vmem:[%s228 + $0x18] sm:$0xf]
      %v258 = vld [vmem:[%s228 + $0x1c] sm:$0xf]
      %v259 = vld [vmem:[%s234] sm:$0xf]
      %v260 = vld [vmem:[%s234 + $0x4] sm:$0xf]
      %v261 = vld [vmem:[%s239] sm:$0xf]
      %v262 = vld [vmem:[%s239 + $0x4] sm:$0xf]
      %271 = vrot.lane.b32.xlu0 %v251, 112
      %v272 = vpop.permute.xlu0 %271
      %273 = vrot.lane.b32.xlu0 %v252, 112
      %v274 = vpop.permute.xlu0 %273
      %275 = vrot.lane.b32.xlu0 %v253, 112
      %v276 = vpop.permute.xlu0 %275
      %277 = vrot.lane.b32.xlu0 %v254, 112
      %v278 = vpop.permute.xlu0 %277
      %279 = vrot.lane.b32.xlu0 %v255, 112
      %v280 = vpop.permute.xlu0 %279
      %281 = vrot.lane.b32.xlu0 %v256, 112
      %v282 = vpop.permute.xlu0 %281
      %283 = vrot.lane.b32.xlu0 %v257, 112
      %v284 = vpop.permute.xlu0 %283
      %285 = vrot.lane.b32.xlu0 %v258, 112
      %v286 = vpop.permute.xlu0 %285
      %289 = vrot.lane.b32.xlu0 %v259, 112
      %v290 = vpop.permute.xlu0 %289
      %291 = vrot.lane.b32.xlu0 %v260, 112
      %v292 = vpop.permute.xlu0 %291
      %295 = vrot.lane.b32.xlu0 %v261, 112
      %v296 = vpop.permute.xlu0 %295
      %297 = vrot.lane.b32.xlu0 %v262, 112
      %v298 = vpop.permute.xlu0 %297
      %v299 = vunpack.c.l.b16 %v251
      %v300 = vunpack.c.l.b16 %v252
      %v301 = vunpack.c.l.b16 %v253
      %v302 = vunpack.c.l.b16 %v254
      %v303 = vunpack.c.l.b16 %v255
      %v304 = vunpack.c.l.b16 %v256
      %v305 = vunpack.c.l.b16 %v257
      %v306 = vunpack.c.l.b16 %v258
      %v307 = vpack.c.b16 %v300, %v299
      %v308 = vpack.c.b16 %v302, %v301
      %v309 = vpack.c.b16 %v304, %v303
      %v310 = vpack.c.b16 %v306, %v305
      %v311 = vunpack.c.l.b16 %v259
      %v312 = vunpack.c.l.b16 %v260
      %v313 = vpack.c.b16 %v312, %v311
      %vm314 = vcmask 130048
      %v316 = vsel %vm314, %v307, 0
      %v319 = vsel %vm314, %v308, 0
      %v322 = vsel %vm314, %v309, 0
      %v325 = vsel %vm314, %v310, 0
      %v328 = vsel %vm314, %v313, 0
      %330 = vmatpush.bf16.xpose.msra.mxu0 0
      %331 = vmatpush.bf16.xpose.msra.mxu0 0
      %332 = vmatpush.bf16.xpose.msra.mxu0 0
      %333 = vmatpush.bf16.xpose.msra.mxu0 0
      %334 = vmatpush.bf16.xpose.msra.mxu0 0
      %335 = vmatpush.bf16.xpose.msra.mxu0 0
      %336 = vmatpush.bf16.xpose.msra.mxu0 0
      %337 = vmatpush.bf16.xpose.msra.mxu0 %v328
      %338 = vmatmul.bf16.gmra.mxu0 %v316
      %v339 = vpop.f32.mrf.mxu0
      %v340 = vadd.f32 0.0, %v339
      %v341 = vpop.f32.mrf.mxu0
      %v342 = vadd.f32 0.0, %v341
      %343 = vmatmul.bf16.gmra.mxu0 %v319
      %v344 = vpop.f32.mrf.mxu0
      %v345 = vadd.f32 0.0, %v344
      %v346 = vpop.f32.mrf.mxu0
      %v347 = vadd.f32 0.0, %v346
      %348 = vmatmul.bf16.gmra.mxu0 %v322
      %v349 = vpop.f32.mrf.mxu0
      %v350 = vadd.f32 0.0, %v349
      %v351 = vpop.f32.mrf.mxu0
      %v352 = vadd.f32 0.0, %v351
      %353 = vmatmul.bf16.gmra.mxu0 %v325
      %v354 = vpop.f32.mrf.mxu0
      %v355 = vadd.f32 0.0, %v354
      %v356 = vpop.f32.mrf.mxu0
      %v357 = vadd.f32 0.0, %v356
      %358 = vdwg.mxu0
      %v359 = vunpack.c.l.b16 %v272
      %v360 = vunpack.c.l.b16 %v274
      %v361 = vunpack.c.l.b16 %v276
      %v362 = vunpack.c.l.b16 %v278
      %v363 = vunpack.c.l.b16 %v280
      %v364 = vunpack.c.l.b16 %v282
      %v365 = vunpack.c.l.b16 %v284
      %v366 = vunpack.c.l.b16 %v286
      %v367 = vpack.c.b16 %v360, %v359
      %v368 = vpack.c.b16 %v362, %v361
      %v369 = vpack.c.b16 %v364, %v363
      %v370 = vpack.c.b16 %v366, %v365
      %v371 = vunpack.c.l.b16 %v290
      %v372 = vunpack.c.l.b16 %v292
      %v373 = vpack.c.b16 %v372, %v371
      %v375 = vsel %vm314, %v367, 0
      %v378 = vsel %vm314, %v368, 0
      %v381 = vsel %vm314, %v369, 0
      %v384 = vsel %vm314, %v370, 0
      %v387 = vsel %vm314, %v373, 0
      %389 = vmatpush.bf16.xpose.msra.mxu0 0
      %390 = vmatpush.bf16.xpose.msra.mxu0 0
      %391 = vmatpush.bf16.xpose.msra.mxu0 0
      %392 = vmatpush.bf16.xpose.msra.mxu0 0
      %393 = vmatpush.bf16.xpose.msra.mxu0 0
      %394 = vmatpush.bf16.xpose.msra.mxu0 0
      %395 = vmatpush.bf16.xpose.msra.mxu0 0
      %396 = vmatpush.bf16.xpose.msra.mxu0 %v387
      %397 = vmatmul.bf16.gmra.mxu0 %v375
      %v398 = vpop.f32.mrf.mxu0
      %v399 = vadd.f32 0.0, %v398
      %v400 = vpop.f32.mrf.mxu0
      %v401 = vadd.f32 0.0, %v400
      %402 = vmatmul.bf16.gmra.mxu0 %v378
      %v403 = vpop.f32.mrf.mxu0
      %v404 = vadd.f32 0.0, %v403
      %v405 = vpop.f32.mrf.mxu0
      %v406 = vadd.f32 0.0, %v405
      %407 = vmatmul.bf16.gmra.mxu0 %v381
      %v408 = vpop.f32.mrf.mxu0
      %v409 = vadd.f32 0.0, %v408
      %v410 = vpop.f32.mrf.mxu0
      %v411 = vadd.f32 0.0, %v410
      %412 = vmatmul.bf16.gmra.mxu0 %v384
      %v413 = vpop.f32.mrf.mxu0
      %v414 = vadd.f32 0.0, %v413
      %v415 = vpop.f32.mrf.mxu0
      %v416 = vadd.f32 0.0, %v415
      %417 = vdwg.mxu0
      %v418 = vmul.f32 %v340, 0.25
      %v419 = vmul.f32 %v342, 0.25
      %v420 = vmul.f32 %v345, 0.25
      %v421 = vmul.f32 %v347, 0.25
      %v422 = vmul.f32 %v350, 0.25
      %v423 = vmul.f32 %v352, 0.25
      %v424 = vmul.f32 %v355, 0.25
      %v425 = vmul.f32 %v357, 0.25
      %v426 = vmul.f32 %v399, 0.25
      %v427 = vmul.f32 %v401, 0.25
      %v428 = vmul.f32 %v404, 0.25
      %v429 = vmul.f32 %v406, 0.25
      %v430 = vmul.f32 %v409, 0.25
      %v431 = vmul.f32 %v411, 0.25
      %v432 = vmul.f32 %v414, 0.25
      %v433 = vmul.f32 %v416, 0.25
      %v434 = vsel %vm314, %v418, -inf
      %435 = vmax.xlane.f32.xlu0 %v434
      %v436 = vpop.xlane.xlu0 %435
      %v437 = vsel %vm314, %v419, -inf
      %438 = vmax.xlane.f32.xlu0 %v437
      %v439 = vpop.xlane.xlu0 %438
      %v440 = vsel %vm314, %v420, -inf
      %441 = vmax.xlane.f32.xlu0 %v440
      %v442 = vpop.xlane.xlu0 %441
      %v443 = vsel %vm314, %v421, -inf
      %444 = vmax.xlane.f32.xlu0 %v443
      %v445 = vpop.xlane.xlu0 %444
      %v446 = vsel %vm314, %v422, -inf
      %447 = vmax.xlane.f32.xlu0 %v446
      %v448 = vpop.xlane.xlu0 %447
      %v449 = vsel %vm314, %v423, -inf
      %450 = vmax.xlane.f32.xlu0 %v449
      %v451 = vpop.xlane.xlu0 %450
      %v452 = vsel %vm314, %v424, -inf
      %453 = vmax.xlane.f32.xlu0 %v452
      %v454 = vpop.xlane.xlu0 %453
      %v455 = vsel %vm314, %v425, -inf
      %456 = vmax.xlane.f32.xlu0 %v455
      %v457 = vpop.xlane.xlu0 %456
      %v458 = vsel %vm314, %v426, -inf
      %459 = vmax.xlane.f32.xlu0 %v458
      %v460 = vpop.xlane.xlu0 %459
      %v461 = vsel %vm314, %v427, -inf
      %462 = vmax.xlane.f32.xlu0 %v461
      %v463 = vpop.xlane.xlu0 %462
      %v464 = vsel %vm314, %v428, -inf
      %465 = vmax.xlane.f32.xlu0 %v464
      %v466 = vpop.xlane.xlu0 %465
      %v467 = vsel %vm314, %v429, -inf
      %468 = vmax.xlane.f32.xlu0 %v467
      %v469 = vpop.xlane.xlu0 %468
      %v470 = vsel %vm314, %v430, -inf
      %471 = vmax.xlane.f32.xlu0 %v470
      %v472 = vpop.xlane.xlu0 %471
      %v473 = vsel %vm314, %v431, -inf
      %474 = vmax.xlane.f32.xlu0 %v473
      %v475 = vpop.xlane.xlu0 %474
      %v476 = vsel %vm314, %v432, -inf
      %477 = vmax.xlane.f32.xlu0 %v476
      %v478 = vpop.xlane.xlu0 %477
      %v479 = vsel %vm314, %v433, -inf
      %480 = vmax.xlane.f32.xlu0 %v479
      %v481 = vpop.xlane.xlu0 %480
      %v482 = vsub.f32 %v418, %v436
      %v483 = vsub.f32 %v419, %v439
      %v484 = vsub.f32 %v420, %v442
      %v485 = vsub.f32 %v421, %v445
      %v486 = vsub.f32 %v422, %v448
      %v487 = vsub.f32 %v423, %v451
      %v488 = vsub.f32 %v424, %v454
      %v489 = vsub.f32 %v425, %v457
      %v490 = vsub.f32 %v426, %v460
      %v491 = vsub.f32 %v427, %v463
      %v492 = vsub.f32 %v428, %v466
      %v493 = vsub.f32 %v429, %v469
      %v494 = vsub.f32 %v430, %v472
      %v495 = vsub.f32 %v431, %v475
      %v496 = vsub.f32 %v432, %v478
      %v497 = vsub.f32 %v433, %v481
      %v498 = vmul.f32 %v482, 1.442695
      %v499 = vpow.pop %v498
      %v500 = vmul.f32 %v483, 1.442695
      %v501 = vpow.pop %v500
      %v502 = vmul.f32 %v484, 1.442695
      %v503 = vpow.pop %v502
      %v504 = vmul.f32 %v485, 1.442695
      %v505 = vpow.pop %v504
      %v506 = vmul.f32 %v486, 1.442695
      %v507 = vpow.pop %v506
      %v508 = vmul.f32 %v487, 1.442695
      %v509 = vpow.pop %v508
      %v510 = vmul.f32 %v488, 1.442695
      %v511 = vpow.pop %v510
      %v512 = vmul.f32 %v489, 1.442695
      %v513 = vpow.pop %v512
      %v514 = vmul.f32 %v490, 1.442695
      %v515 = vpow.pop %v514
      %v516 = vmul.f32 %v491, 1.442695
      %v517 = vpow.pop %v516
      %v518 = vmul.f32 %v492, 1.442695
      %v519 = vpow.pop %v518
      %v520 = vmul.f32 %v493, 1.442695
      %v521 = vpow.pop %v520
      %v522 = vmul.f32 %v494, 1.442695
      %v523 = vpow.pop %v522
      %v524 = vmul.f32 %v495, 1.442695
      %v525 = vpow.pop %v524
      %v526 = vmul.f32 %v496, 1.442695
      %v527 = vpow.pop %v526
      %v528 = vmul.f32 %v497, 1.442695
      %v529 = vpow.pop %v528
      %v530 = vsel %vm314, %v499, 0.0
      %531 = vadd.xlane.f32.xlu0 %v530
      %v532 = vpop.xlane.xlu0 %531
      %v533 = vsel %vm314, %v501, 0.0
      %534 = vadd.xlane.f32.xlu0 %v533
      %v535 = vpop.xlane.xlu0 %534
      %v536 = vsel %vm314, %v503, 0.0
      %537 = vadd.xlane.f32.xlu0 %v536
      %v538 = vpop.xlane.xlu0 %537
      %v539 = vsel %vm314, %v505, 0.0
      %540 = vadd.xlane.f32.xlu0 %v539
      %v541 = vpop.xlane.xlu0 %540
      %v542 = vsel %vm314, %v507, 0.0
      %543 = vadd.xlane.f32.xlu0 %v542
      %v544 = vpop.xlane.xlu0 %543
      %v545 = vsel %vm314, %v509, 0.0
      %546 = vadd.xlane.f32.xlu0 %v545
      %v547 = vpop.xlane.xlu0 %546
      %v548 = vsel %vm314, %v511, 0.0
      %549 = vadd.xlane.f32.xlu0 %v548
      %v550 = vpop.xlane.xlu0 %549
      %v551 = vsel %vm314, %v513, 0.0
      %552 = vadd.xlane.f32.xlu0 %v551
      %v553 = vpop.xlane.xlu0 %552
      %v554 = vsel %vm314, %v515, 0.0
      %555 = vadd.xlane.f32.xlu0 %v554
      %v556 = vpop.xlane.xlu0 %555
      %v557 = vsel %vm314, %v517, 0.0
      %558 = vadd.xlane.f32.xlu0 %v557
      %v559 = vpop.xlane.xlu0 %558
      %v560 = vsel %vm314, %v519, 0.0
      %561 = vadd.xlane.f32.xlu0 %v560
      %v562 = vpop.xlane.xlu0 %561
      %v563 = vsel %vm314, %v521, 0.0
      %564 = vadd.xlane.f32.xlu0 %v563
      %v565 = vpop.xlane.xlu0 %564
      %v566 = vsel %vm314, %v523, 0.0
      %567 = vadd.xlane.f32.xlu0 %v566
      %v568 = vpop.xlane.xlu0 %567
      %v569 = vsel %vm314, %v525, 0.0
      %570 = vadd.xlane.f32.xlu0 %v569
      %v571 = vpop.xlane.xlu0 %570
      %v572 = vsel %vm314, %v527, 0.0
      %573 = vadd.xlane.f32.xlu0 %v572
      %v574 = vpop.xlane.xlu0 %573
      %v575 = vsel %vm314, %v529, 0.0
      %576 = vadd.xlane.f32.xlu0 %v575
      %v577 = vpop.xlane.xlu0 %576
      %v578 = vrcp.pop %v532
      %v579 = vrcp.pop %v535
      %v580 = vrcp.pop %v538
      %v581 = vrcp.pop %v541
      %v582 = vrcp.pop %v544
      %v583 = vrcp.pop %v547
      %v584 = vrcp.pop %v550
      %v585 = vrcp.pop %v553
      %v586 = vrcp.pop %v556
      %v587 = vrcp.pop %v559
      %v588 = vrcp.pop %v562
      %v589 = vrcp.pop %v565
      %v590 = vrcp.pop %v568
      %v591 = vrcp.pop %v571
      %v592 = vrcp.pop %v574
      %v593 = vrcp.pop %v577
      %v594 = vmul.f32 %v499, %v578
      %v595 = vmul.f32 %v501, %v579
      %v596 = vmul.f32 %v503, %v580
      %v597 = vmul.f32 %v505, %v581
      %v598 = vmul.f32 %v507, %v582
      %v599 = vmul.f32 %v509, %v583
      %v600 = vmul.f32 %v511, %v584
      %v601 = vmul.f32 %v513, %v585
      %v602 = vmul.f32 %v515, %v586
      %v603 = vmul.f32 %v517, %v587
      %v604 = vmul.f32 %v519, %v588
      %v605 = vmul.f32 %v521, %v589
      %v606 = vmul.f32 %v523, %v590
      %v607 = vmul.f32 %v525, %v591
      %v608 = vmul.f32 %v527, %v592
      %v609 = vmul.f32 %v529, %v593
      %v610 = vpack.c.bf16 %v594, %v594
      %v611 = vpack.c.bf16 %v595, %v595
      %v612 = vpack.c.bf16 %v596, %v596
      %v613 = vpack.c.bf16 %v597, %v597
      %v614 = vpack.c.bf16 %v598, %v598
      %v615 = vpack.c.bf16 %v599, %v599
      %v616 = vpack.c.bf16 %v600, %v600
      %v617 = vpack.c.bf16 %v601, %v601
      %v618 = vpack.c.bf16 %v602, %v602
      %v619 = vpack.c.bf16 %v603, %v603
      %v620 = vpack.c.bf16 %v604, %v604
      %v621 = vpack.c.bf16 %v605, %v605
      %v622 = vpack.c.bf16 %v606, %v606
      %v623 = vpack.c.bf16 %v607, %v607
      %v624 = vpack.c.bf16 %v608, %v608
      %v625 = vpack.c.bf16 %v609, %v609
      %v634 = vunpack.c.l.b16 %v610
      %v635 = vunpack.c.l.b16 %v611
      %v636 = vunpack.c.l.b16 %v612
      %v637 = vunpack.c.l.b16 %v613
      %v638 = vunpack.c.l.b16 %v614
      %v639 = vunpack.c.l.b16 %v615
      %v640 = vunpack.c.l.b16 %v616
      %v641 = vunpack.c.l.b16 %v617
      %v642 = vpack.c.b16 %v635, %v634
      %v643 = vpack.c.b16 %v637, %v636
      %v644 = vpack.c.b16 %v639, %v638
      %v645 = vpack.c.b16 %v641, %v640
      %v646 = vunpack.c.l.b16 %v261
      %v647 = vunpack.c.l.b16 %v262
      %v648 = vpack.c.b16 %v647, %v646
      %v651 = vsel %vm314, %v642, 0
      %v654 = vsel %vm314, %v643, 0
      %v657 = vsel %vm314, %v644, 0
      %v660 = vsel %vm314, %v645, 0
      %662 = vmatpush.bf16.msra.mxu0 0
      %663 = vmatpush.bf16.msra.mxu0 0
      %664 = vmatpush.bf16.msra.mxu0 0
      %665 = vmatpush.bf16.msra.mxu0 0
      %666 = vmatpush.bf16.msra.mxu0 0
      %667 = vmatpush.bf16.msra.mxu0 0
      %668 = vmatpush.bf16.msra.mxu0 0
      %669 = vmatpush.bf16.msra.mxu0 %v648
      %670 = vmatmul.bf16.gmra.mxu0 %v651
      %v671 = vpop.f32.mrf.mxu0
      %v672 = vadd.f32 0.0, %v671
      %v673 = vpop.f32.mrf.mxu0
      %v674 = vadd.f32 0.0, %v673
      %675 = vmatmul.bf16.gmra.mxu0 %v654
      %v676 = vpop.f32.mrf.mxu0
      %v677 = vadd.f32 0.0, %v676
      %v678 = vpop.f32.mrf.mxu0
      %v679 = vadd.f32 0.0, %v678
      %680 = vmatmul.bf16.gmra.mxu0 %v657
      %v681 = vpop.f32.mrf.mxu0
      %v682 = vadd.f32 0.0, %v681
      %v683 = vpop.f32.mrf.mxu0
      %v684 = vadd.f32 0.0, %v683
      %685 = vmatmul.bf16.gmra.mxu0 %v660
      %v686 = vpop.f32.mrf.mxu0
      %v687 = vadd.f32 0.0, %v686
      %v688 = vpop.f32.mrf.mxu0
      %v689 = vadd.f32 0.0, %v688
      %690 = vdwg.mxu0
      %v699 = vunpack.c.l.b16 %v618
      %v700 = vunpack.c.l.b16 %v619
      %v701 = vunpack.c.l.b16 %v620
      %v702 = vunpack.c.l.b16 %v621
      %v703 = vunpack.c.l.b16 %v622
      %v704 = vunpack.c.l.b16 %v623
      %v705 = vunpack.c.l.b16 %v624
      %v706 = vunpack.c.l.b16 %v625
      %v707 = vpack.c.b16 %v700, %v699
      %v708 = vpack.c.b16 %v702, %v701
      %v709 = vpack.c.b16 %v704, %v703
      %v710 = vpack.c.b16 %v706, %v705
      %v711 = vunpack.c.l.b16 %v296
      %v712 = vunpack.c.l.b16 %v298
      %v713 = vpack.c.b16 %v712, %v711
      %v716 = vsel %vm314, %v707, 0
      %v719 = vsel %vm314, %v708, 0
      %v722 = vsel %vm314, %v709, 0
      %v725 = vsel %vm314, %v710, 0
      %727 = vmatpush.bf16.msra.mxu0 0
      %728 = vmatpush.bf16.msra.mxu0 0
      %729 = vmatpush.bf16.msra.mxu0 0
      %730 = vmatpush.bf16.msra.mxu0 0
      %731 = vmatpush.bf16.msra.mxu0 0
      %732 = vmatpush.bf16.msra.mxu0 0
      %733 = vmatpush.bf16.msra.mxu0 0
      %734 = vmatpush.bf16.msra.mxu0 %v713
      %735 = vmatmul.bf16.gmra.mxu0 %v716
      %v736 = vpop.f32.mrf.mxu0
      %v737 = vadd.f32 0.0, %v736
      %v738 = vpop.f32.mrf.mxu0
      %v739 = vadd.f32 0.0, %v738
      %740 = vmatmul.bf16.gmra.mxu0 %v719
      %v741 = vpop.f32.mrf.mxu0
      %v742 = vadd.f32 0.0, %v741
      %v743 = vpop.f32.mrf.mxu0
      %v744 = vadd.f32 0.0, %v743
      %745 = vmatmul.bf16.gmra.mxu0 %v722
      %v746 = vpop.f32.mrf.mxu0
      %v747 = vadd.f32 0.0, %v746
      %v748 = vpop.f32.mrf.mxu0
      %v749 = vadd.f32 0.0, %v748
      %750 = vmatmul.bf16.gmra.mxu0 %v725
      %v751 = vpop.f32.mrf.mxu0
      %v752 = vadd.f32 0.0, %v751
      %v753 = vpop.f32.mrf.mxu0
      %v754 = vadd.f32 0.0, %v753
      %755 = vdwg.mxu0
      %v756 = vpack.c.bf16 %v672, %v672
      %v757 = vpack.c.bf16 %v674, %v674
      %v758 = vpack.c.bf16 %v677, %v677
      %v759 = vpack.c.bf16 %v679, %v679
      %v760 = vpack.c.bf16 %v682, %v682
      %v761 = vpack.c.bf16 %v684, %v684
      %v762 = vpack.c.bf16 %v687, %v687
      %v763 = vpack.c.bf16 %v689, %v689
      %vm764 = vcmask 125952
      %765 = vst.msk [vmem:[%s248] sm:$0xf] %vm764, %v756
      %766 = vst.msk [vmem:[%s248 + $0x4] sm:$0xf] %vm764, %v757
      %767 = vst.msk [vmem:[%s248 + $0x8] sm:$0xf] %vm764, %v758
      %768 = vst.msk [vmem:[%s248 + $0xc] sm:$0xf] %vm764, %v759
      %769 = vst.msk [vmem:[%s248 + $0x10] sm:$0xf] %vm764, %v760
      %770 = vst.msk [vmem:[%s248 + $0x14] sm:$0xf] %vm764, %v761
      %771 = vst.msk [vmem:[%s248 + $0x18] sm:$0xf] %vm764, %v762
      %772 = vst.msk [vmem:[%s248 + $0x1c] sm:$0xf] %vm764, %v763
      %v773 = vpack.c.bf16 %v737, %v737
      %v774 = vpack.c.bf16 %v739, %v739
      %v775 = vpack.c.bf16 %v742, %v742
      %v776 = vpack.c.bf16 %v744, %v744
      %v777 = vpack.c.bf16 %v747, %v747
      %v778 = vpack.c.bf16 %v749, %v749
      %v779 = vpack.c.bf16 %v752, %v752
      %v780 = vpack.c.bf16 %v754, %v754
      %789 = vrot.lane.b32.xlu0 %v773, 16
      %v790 = vpop.permute.xlu0 %789
      %791 = vrot.lane.b32.xlu0 %v774, 16
      %v792 = vpop.permute.xlu0 %791
      %793 = vrot.lane.b32.xlu0 %v775, 16
      %v794 = vpop.permute.xlu0 %793
      %795 = vrot.lane.b32.xlu0 %v776, 16
      %v796 = vpop.permute.xlu0 %795
      %797 = vrot.lane.b32.xlu0 %v777, 16
      %v798 = vpop.permute.xlu0 %797
      %799 = vrot.lane.b32.xlu0 %v778, 16
      %v800 = vpop.permute.xlu0 %799
      %801 = vrot.lane.b32.xlu0 %v779, 16
      %v802 = vpop.permute.xlu0 %801
      %803 = vrot.lane.b32.xlu0 %v780, 16
      %v804 = vpop.permute.xlu0 %803
      %vm813 = vcmask 257152
      %814 = vst.msk [vmem:[%s248] sm:$0xf] %vm813, %v790
      %815 = vst.msk [vmem:[%s248 + $0x4] sm:$0xf] %vm813, %v792
      %816 = vst.msk [vmem:[%s248 + $0x8] sm:$0xf] %vm813, %v794
      %817 = vst.msk [vmem:[%s248 + $0xc] sm:$0xf] %vm813, %v796
      %818 = vst.msk [vmem:[%s248 + $0x10] sm:$0xf] %vm813, %v798
      %819 = vst.msk [vmem:[%s248 + $0x14] sm:$0xf] %vm813, %v800
      %820 = vst.msk [vmem:[%s248 + $0x18] sm:$0xf] %vm813, %v802
      %821 = vst.msk [vmem:[%s248 + $0x1c] sm:$0xf] %vm813, %v804
      %s822 = smul.u32 8, %s19
      %p823 = scmp.lt.s32.totalorder %s18, 1
      %s824 = scalar_select %p823, %s18, 1
      %p825 = scmp.lt.s32.totalorder %s822, 7
      %s826 = scalar_select %p825, %s822, 7
      %s827 = smul.addr %s824, 8
      %s828 = sadd.s32 %s826, %s827
      %s829 = smul.addr %s828, 4
      %s830 = scalar_lea.vmem %s3, %s829
      // Predicated region
      $region33: #{attention_forward.10} parent=31 // pred_check
        %p831 = pneg %p126
      $region34: #{attention_forward.10} parent=31 // pred_check_branch
        %833 = sbr.rel (%p831) target = $region36
      $region35: #{attention_forward.10} parent=31 // pred_region
        %s834 = smul.u32 8, %s19
      $region36: #{attention_forward.10} parent=31 // pred_fallthru
        _
    $region32: #{attention_forward.10} parent=5 // pred_fallthru
      _
    %p835 = scmp.le.s32.totalorder 2, %s9
    // Predicated region
    $region37: #{attention_forward.10} parent=5 // pred_check
      %p836 = pneg %p835
    $region38: #{attention_forward.10} parent=5 // pred_check_branch
      %838 = sbr.rel (%p836) target = $region40
    $region39: #{attention_forward.10} parent=5 // pred_region
      %s839 = ssub.s32 %s9, 2
      // Predicated region
      $region41: #{attention_forward.10} parent=39 // pred_check
        %p840 = pneg %p132
      $region42: #{attention_forward.10} parent=39 // pred_check_branch
        %842 = sbr.rel (%p840) target = $region44
      $region43: #{attention_forward.10} parent=39 // pred_region
        %s843 = smul.u32 8, %s21
        %p844 = scmp.lt.s32.totalorder %s20, 1
        %s845 = scalar_select %p844, %s20, 1
        %p846 = scmp.lt.s32.totalorder %s843, 7
        %s847 = scalar_select %p846, %s843, 7
        %s848 = smul.addr %s845, 8
        %s849 = sadd.s32 %s847, %s848
        %s850 = smul.addr %s849, 4
        %s851 = scalar_lea.vmem %s3, %s850
      $region44: #{attention_forward.10} parent=39 // pred_fallthru
        _
    $region40: #{attention_forward.10} parent=5 // pred_fallthru
      _
  $region6: #{attention_forward.10} parent=0 // loop_footer
    %s13 = sadd.s32 1, %s9
  $region7: #{attention_forward.10} parent=0 // loop_footer_branch
    %8 = sbr.rel target = $region3
  $region8: #{attention_forward.10} parent=0 // loop_exit
    _

</llo_original>
